<compile_context>
chip_gen: v7x
topology: tpu7x:2x2x1
jax: 0.10.0
libtpu: 0.0.40
codegen_flags: <defaults>
</compile_context>

<pallas_src>
import jax
import jax.numpy as jnp
from jax.experimental import pallas as pl
from jax.experimental.pallas import tpu as pltpu

BN_EPS = 1e-5
_COMPUTE_DTYPE = jnp.bfloat16     # inter-pass activations & matmul operands


# --------------------------------------------------------------------------
# Kernels
# --------------------------------------------------------------------------
def _matmul_stats_kernel(x_ref, w_ref, out_ref, stats_ref):
    """1x1 conv (matmul) -> bf16 out + f32 partial BN stats (sum, sumsq)."""
    y = jnp.dot(x_ref[...], w_ref[...], preferred_element_type=jnp.float32)
    out_ref[...] = y.astype(out_ref.dtype)
    colsum = jnp.sum(y, axis=0, keepdims=True)            # (1, Cout)
    colsq = jnp.sum(y * y, axis=0, keepdims=True)          # (1, Cout)
    stats_ref[0] = jnp.concatenate([colsum, colsq], axis=0)


def _affine_relu_matmul_stats_kernel(x_ref, w_ref, scale_ref, bias_ref,
                                     out_ref, stats_ref):
    """Folded BN (scale/bias) + ReLU -> 1x1 conv (matmul) -> partial stats."""
    x = x_ref[...].astype(jnp.float32)
    x = jnp.maximum(x * scale_ref[...] + bias_ref[...], 0.0)
    y = jnp.dot(x.astype(w_ref.dtype), w_ref[...],
                preferred_element_type=jnp.float32)
    out_ref[...] = y.astype(out_ref.dtype)
    colsum = jnp.sum(y, axis=0, keepdims=True)
    colsq = jnp.sum(y * y, axis=0, keepdims=True)
    stats_ref[0] = jnp.concatenate([colsum, colsq], axis=0)


def _conv3x3_stats_kernel(o1_ref, w2_ref, scale_ref, bias_ref,
                          out_ref, stats_ref, pad_ref):
    """BN1+ReLU -> 3x3 conv (stride 1, pad 1) via 9 accumulating matmuls."""
    _, H, W, P = o1_ref.shape

    # Zero only the 1-pixel halo border; interior is fully rewritten below.
    zrow = jnp.zeros((1, W + 2, P), pad_ref.dtype)
    zcol = jnp.zeros((H + 2, 1, P), pad_ref.dtype)
    pad_ref[0:1, :, :] = zrow
    pad_ref[H + 1:H + 2, :, :] = zrow
    pad_ref[:, 0:1, :] = zcol
    pad_ref[:, W + 1:W + 2, :] = zcol

    o1 = o1_ref[0].astype(jnp.float32)                     # [H, W, P]
    pad_ref[1:H + 1, 1:W + 1, :] = jnp.maximum(
        o1 * scale_ref[...] + bias_ref[...], 0.0)

    # 9 shifted windows, each a bf16 MXU matmul accumulated in f32.
    # (No im2col concat / 9P-wide temp.)
    acc = jnp.zeros((H * W, P), jnp.float32)
    for k in range(9):
        dy, dx = k // 3, k % 3
        window = pad_ref[dy:dy + H, dx:dx + W, :].reshape(H * W, P)
        acc = acc + jnp.dot(window.astype(w2_ref.dtype), w2_ref[k],
                            preferred_element_type=jnp.float32)

    out_ref[...] = acc.reshape(1, H, W, P).astype(out_ref.dtype)
    colsum = jnp.sum(acc, axis=0, keepdims=True)
    colsq = jnp.sum(acc * acc, axis=0, keepdims=True)
    stats_ref[0] = jnp.concatenate([colsum, colsq], axis=0)


def _bn_residual_relu_kernel(y_ref, res_ref, scale_ref, bias_ref, out_ref):
    """BN3 (folded scale/bias) + identity residual + ReLU."""
    y = y_ref[...].astype(jnp.float32) * scale_ref[...] + bias_ref[...]
    y = y + res_ref[...].astype(jnp.float32)
    out_ref[...] = jnp.maximum(y, 0.0).astype(out_ref.dtype)


# --------------------------------------------------------------------------
# Host-side helpers
# --------------------------------------------------------------------------
def _pick_vmem_limit():
    """Per-generation scoped VMEM limit: ~3/4 of physical, capped at 96 MiB."""
    try:
        cap = pltpu.get_tpu_info().vmem_capacity_bytes
    except Exception:
        cap = 64 * 1024 * 1024
    return int(min(96 * 1024 * 1024, max(32 * 1024 * 1024, (cap * 3) // 4)))


def _pick_tile_rows(total_rows, bytes_per_row, target_bytes=2 * 1024 * 1024):
    """Largest multiple-of-8 divisor of total_rows with tile bytes near the
    target, preferring >=2 grid steps so v7x's two TensorCores split evenly."""
    cap = max(8, target_bytes // max(1, bytes_per_row))
    divs = [d for d in range(8, total_rows + 1, 8) if total_rows % d == 0]
    if not divs:
        # TODO(synk): pad R to a tile multiple and mask pad rows out of the
        # BN stats instead of falling back to one oversized block.
        return total_rows
    pref = [d for d in divs if d <= cap and d <= total_rows // 2]
    if pref:
        return max(pref)
    capped = [d for d in divs if d <= cap]
    if capped:
        return max(capped)
    return min(divs)


def _fold_bn(stats, count, gamma, beta):
    """Reduce per-tile (sum, sumsq) partials; fold BN into scale/bias per channel."""
    total_sum = jnp.sum(stats[:, 0, :], axis=0, keepdims=True)      # (1, C)
    total_sq = jnp.sum(stats[:, 1, :], axis=0, keepdims=True)       # (1, C)
    mean = total_sum / count
    # NOTE: E[x^2]-E[x]^2 in f32 (biased var, eps=1e-5). Fine at these scales;
    # switch to a shifted/Welford partial reduction for very large activations.
    var = total_sq / count - mean * mean
    scale = gamma * jax.lax.rsqrt(var + BN_EPS)
    bias = beta - mean * scale
    return scale, bias


def bottleneck_pallas(x_nchw, params):
    (w1, g1, b1, w2, g2, b2, w3, g3, b3) = params
    N, Cin, H, W = x_nchw.shape
    P = w1.shape[1]
    C4 = w3.shape[1]
    assert Cin == C4, "downsample=None requires inplanes == planes*4"

    cdt = _COMPUTE_DTYPE
    # TODO(synk): keep the surrounding network NHWC so this boundary transpose
    # (an extra HBM round trip of the largest tensor) disappears entirely.
    x_nhwc = jnp.transpose(x_nchw, (0, 2, 3, 1)).astype(cdt)
    R = N * H * W
    x2d = x_nhwc.reshape(R, Cin)

    w1c = w1.astype(cdt)                       # [Cin, P]
    w2c = w2.reshape(9, P, P).astype(cdt)      # HWIO -> [tap, cin, cout]
    w3c = w3.astype(cdt)                       # [P, C4]

    vmem_limit = _pick_vmem_limit()
    row_params = pltpu.CompilerParams(
        dimension_semantics=("parallel",), vmem_limit_bytes=vmem_limit)

    bytes_per_row = 2 * max(Cin, C4, P)        # bf16 bytes of the widest operand
    tile_r = _pick_tile_rows(R, bytes_per_row)
    n_tiles = R // tile_r

    # ---- pass 1: conv1 (1x1) + BN1 partial stats --------------------------
    o1_raw, stats1 = pl.pallas_call(
        _matmul_stats_kernel,
        out_shape=(jax.ShapeDtypeStruct((R, P), cdt),
                   jax.ShapeDtypeStruct((n_tiles, 2, P), jnp.float32)),
        grid=(n_tiles,),
        in_specs=[pl.BlockSpec((tile_r, Cin), lambda i: (i, 0)),
                  pl.BlockSpec((Cin, P), lambda i: (0, 0))],
        out_specs=(pl.BlockSpec((tile_r, P), lambda i: (i, 0)),
                   pl.BlockSpec((1, 2, P), lambda i: (i, 0, 0))),
        compiler_params=row_params,
    )(x2d, w1c)
    scale1, bias1 = _fold_bn(stats1, R, g1, b1)

    # ---- pass 2: BN1+ReLU -> conv2 (3x3) + BN2 partial stats ---------------
    # TODO(synk): re-tile to (N, H-strips) with a 1-row halo for deeper
    # pipelining / smaller per-step working set at large H,W.
    o1_img = o1_raw.reshape(N, H, W, P)
    o2_raw, stats2 = pl.pallas_call(
        _conv3x3_stats_kernel,
        out_shape=(jax.ShapeDtypeStruct((N, H, W, P), cdt),
                   jax.ShapeDtypeStruct((N, 2, P), jnp.float32)),
        grid=(N,),
        in_specs=[pl.BlockSpec((1, H, W, P), lambda n: (n, 0, 0, 0)),
                  pl.BlockSpec((9, P, P), lambda n: (0, 0, 0)),
                  pl.BlockSpec((1, P), lambda n: (0, 0)),
                  pl.BlockSpec((1, P), lambda n: (0, 0))],
        out_specs=(pl.BlockSpec((1, H, W, P), lambda n: (n, 0, 0, 0)),
                   pl.BlockSpec((1, 2, P), lambda n: (n, 0, 0))),
        scratch_shapes=[pltpu.VMEM((H + 2, W + 2, P), jnp.float32)],
        compiler_params=pltpu.CompilerParams(
            dimension_semantics=("parallel",), vmem_limit_bytes=vmem_limit),
    )(o1_img, w2c, scale1, bias1)
    scale2, bias2 = _fold_bn(stats2, R, g2, b2)

    # ---- pass 3: BN2+ReLU -> conv3 (1x1) + BN3 partial stats ---------------
    o2_2d = o2_raw.reshape(R, P)
    o3_raw, stats3 = pl.pallas_call(
        _affine_relu_matmul_stats_kernel,
        out_shape=(jax.ShapeDtypeStruct((R, C4), cdt),
                   jax.ShapeDtypeStruct((n_tiles, 2, C4), jnp.float32)),
        grid=(n_tiles,),
        in_specs=[pl.BlockSpec((tile_r, P), lambda i: (i, 0)),
                  pl.BlockSpec((P, C4), lambda i: (0, 0)),
                  pl.BlockSpec((1, P), lambda i: (0, 0)),
                  pl.BlockSpec((1, P), lambda i: (0, 0))],
        out_specs=(pl.BlockSpec((tile_r, C4), lambda i: (i, 0)),
                   pl.BlockSpec((1, 2, C4), lambda i: (i, 0, 0))),
        compiler_params=row_params,
    )(o2_2d, w3c, scale2, bias2)
    scale3, bias3 = _fold_bn(stats3, R, g3, b3)

    # ---- pass 4: BN3 + identity residual + ReLU -----------------------------
    out2d = pl.pallas_call(
        _bn_residual_relu_kernel,
        out_shape=jax.ShapeDtypeStruct((R, C4), jnp.float32),
        grid=(n_tiles,),
        in_specs=[pl.BlockSpec((tile_r, C4), lambda i: (i, 0)),
                  pl.BlockSpec((tile_r, C4), lambda i: (i, 0)),   # residual re-read
                  pl.BlockSpec((1, C4), lambda i: (0, 0)),
                  pl.BlockSpec((1, C4), lambda i: (0, 0))],
        out_specs=pl.BlockSpec((tile_r, C4), lambda i: (i, 0)),
        compiler_params=row_params,
    )(o3_raw, x2d, scale3, bias3)

    out = out2d.reshape(N, H, W, C4)
    return jnp.transpose(out, (0, 3, 1, 2))      # back to NCHW


# --------------------------------------------------------------------------
# Pure-JAX reference (same forward semantics, full f32) for validation
# --------------------------------------------------------------------------
def bottleneck_reference(x_nchw, params):
    (w1, g1, b1, w2, g2, b2, w3, g3, b3) = params
    x = jnp.transpose(x_nchw, (0, 2, 3, 1)).astype(jnp.float32)   # NHWC

    def bn(y, gamma, beta):
        mean = jnp.mean(y, axis=(0, 1, 2), keepdims=True)
        var = jnp.mean((y - mean) ** 2, axis=(0, 1, 2), keepdims=True)
        return (y - mean) * jax.lax.rsqrt(var + BN_EPS) * gamma[0] + beta[0]

    o = jnp.einsum('nhwc,cp->nhwp', x, w1)
    o = jax.nn.relu(bn(o, g1, b1))
    o = jax.lax.conv_general_dilated(
        o, w2, window_strides=(1, 1), padding=((1, 1), (1, 1)),
        dimension_numbers=('NHWC', 'HWIO', 'NHWC'))
    o = jax.nn.relu(bn(o, g2, b2))
    o = jnp.einsum('nhwc,cp->nhwp', o, w3)
    o = bn(o, g3, b3) + x
    o = jax.nn.relu(o)
    return jnp.transpose(o, (0, 3, 1, 2))


def make_params(key, inplanes, planes):
    c4 = planes * 4
    assert inplanes == c4, "downsample=None requires inplanes == planes*4"
    ks = jax.random.split(key, 9)
    w1 = jax.random.normal(ks[0], (inplanes, planes), jnp.float32) * 0.1      # 1x1, IO
    g1 = 1.0 + 0.1 * jax.random.normal(ks[1], (1, planes), jnp.float32)
    b1 = 0.1 * jax.random.normal(ks[2], (1, planes), jnp.float32)
    w2 = jax.random.normal(ks[3], (3, 3, planes, planes), jnp.float32) * 0.1  # HWIO
    g2 = 1.0 + 0.1 * jax.random.normal(ks[4], (1, planes), jnp.float32)
    b2 = 0.1 * jax.random.normal(ks[5], (1, planes), jnp.float32)
    w3 = jax.random.normal(ks[6], (planes, c4), jnp.float32) * 0.1            # 1x1, IO
    g3 = 1.0 + 0.1 * jax.random.normal(ks[7], (1, c4), jnp.float32)
    b3 = 0.1 * jax.random.normal(ks[8], (1, c4), jnp.float32)
    return (w1, g1, b1, w2, g2, b2, w3, g3, b3)


if __name__ == "__main__":
    key = jax.random.PRNGKey(0)
    k_x, k_p = jax.random.split(key)

    # Small shapes: batch=2, inplanes=16, planes=4 (expansion 4), spatial=16x16
    N, inplanes, planes, H, W = 2, 16, 4, 16, 16
    x = jax.random.normal(k_x, (N, inplanes, H, W), jnp.float32)   # NCHW like PyTorch
    params = make_params(k_p, inplanes, planes)

    fwd = jax.jit(bottleneck_pallas)
    out = jax.block_until_ready(fwd(x, params))
    ref = jax.block_until_ready(bottleneck_reference(x, params))

    assert out.shape == (N, planes * 4, H, W)
    # bf16 inter-pass activations vs full-f32 reference -> loosened tolerance.
    assert jnp.allclose(out, ref, rtol=5e-2, atol=5e-2), "mismatch vs JAX reference"

    print("KERNEL_OK")
</pallas_src>

<mosaic_0001>
module attributes {stable_mosaic.version = 11 : i64} {
  func.func @_matmul_stats_kernel(%arg0: i32, %arg1: memref<256x16xbf16, #tpu.memory_space<vmem>>, %arg2: memref<16x4xbf16, #tpu.memory_space<vmem>>, %arg3: memref<256x4xbf16, #tpu.memory_space<vmem>>, %arg4: memref<1x2x4xf32, #tpu.memory_space<vmem>>) attributes {dimension_semantics = [#tpu.dimension_semantics<parallel>], iteration_bounds = array<i64: 2>, scalar_prefetch = 0 : i64, scratch_operands = 0 : i64, tpu.core_type = #tpu.core_type<tc>, window_params = [{transform_indices = @transform_0, window_bounds = array<i64: 256, 16>}, {pipeline_mode = #tpu.pipeline_mode<synchronous>, transform_indices = @transform_1, window_bounds = array<i64: 16, 4>}, {transform_indices = @transform_2, window_bounds = array<i64: 256, 4>}, {transform_indices = @transform_3, window_bounds = array<i64: 1, 2, 4>}]} {
    %c0 = arith.constant 0 : index
    %c0_0 = arith.constant 0 : index
    %0 = vector.load %arg1[%c0, %c0_0] : memref<256x16xbf16, #tpu.memory_space<vmem>>, vector<256x16xbf16>
    %c0_1 = arith.constant 0 : index
    %c0_2 = arith.constant 0 : index
    %1 = vector.load %arg2[%c0_1, %c0_2] : memref<16x4xbf16, #tpu.memory_space<vmem>>, vector<16x4xbf16>
    %cst = arith.constant dense<0.000000e+00> : vector<256x4xf32>
    %2 = tpu.matmul %0, %1, %cst {dimension_numbers = #tpu.dot_dimension_numbers<[1], [0], [0], [1], [0, 0, 1, 1], [], []>} : vector<256x16xbf16>, vector<16x4xbf16>, vector<256x4xf32> -> vector<256x4xf32>
    %3 = arith.truncf %2 : vector<256x4xf32> to vector<256x4xbf16>
    %c0_3 = arith.constant 0 : index
    %c0_4 = arith.constant 0 : index
    %4 = vector.load %arg3[%c0_3, %c0_4] : memref<256x4xbf16, #tpu.memory_space<vmem>>, vector<256x4xbf16>
    tpu.vector_store %arg3[%c0_3, %c0_4], %3 {strides = array<i32>} : memref<256x4xbf16, #tpu.memory_space<vmem>>, vector<256x4xbf16>,
    %cst_5 = arith.constant dense<0.000000e+00> : vector<4xf32>
    %5 = vector.multi_reduction <add>, %2, %cst_5 [0] : vector<256x4xf32> to vector<4xf32>
    %6 = vector.shape_cast %5 : vector<4xf32> to vector<1x4xf32>
    %7 = arith.mulf %2, %2 : vector<256x4xf32>
    %cst_6 = arith.constant dense<0.000000e+00> : vector<4xf32>
    %8 = vector.multi_reduction <add>, %7, %cst_6 [0] : vector<256x4xf32> to vector<4xf32>
    %9 = vector.shape_cast %8 : vector<4xf32> to vector<1x4xf32>
    %10 = tpu.concatenate %6, %9 in 0 : vector<1x4xf32>, vector<1x4xf32> -> vector<2x4xf32>
    %c0_7 = arith.constant 0 : index
    %c0_8 = arith.constant 0 : index
    %c0_9 = arith.constant 0 : index
    %11 = vector.load %arg4[%c0_7, %c0_8, %c0_9] : memref<1x2x4xf32, #tpu.memory_space<vmem>>, vector<1x2x4xf32>
    %12 = vector.shape_cast %11 : vector<1x2x4xf32> to vector<2x4xf32>
    %13 = vector.shape_cast %10 : vector<2x4xf32> to vector<1x2x4xf32>
    tpu.vector_store %arg4[%c0_7, %c0_8, %c0_9], %13 {strides = array<i32>} : memref<1x2x4xf32, #tpu.memory_space<vmem>>, vector<1x2x4xf32>,
    return
  }
  func.func @transform_0(%arg0: i32) -> (i32, i32) {
    %c0_i32 = arith.constant 0 : i32
    %c0_i32_0 = arith.constant 0 : i32
    return %arg0, %c0_i32 : i32, i32
  }
  func.func @transform_1(%arg0: i32) -> (i32, i32) {
    %c0_i32 = arith.constant 0 : i32
    %c0_i32_0 = arith.constant 0 : i32
    %c0_i32_1 = arith.constant 0 : i32
    return %c0_i32, %c0_i32_0 : i32, i32
  }
  func.func @transform_2(%arg0: i32) -> (i32, i32) {
    %c0_i32 = arith.constant 0 : i32
    %c0_i32_0 = arith.constant 0 : i32
    return %arg0, %c0_i32 : i32, i32
  }
  func.func @transform_3(%arg0: i32) -> (i32, i32, i32) {
    %c0_i32 = arith.constant 0 : i32
    %c0_i32_0 = arith.constant 0 : i32
    %c0_i32_1 = arith.constant 0 : i32
    return %arg0, %c0_i32, %c0_i32_0 : i32, i32, i32
  }
}

module attributes {stable_mosaic.version = 11 : i64} {
  func.func @_affine_relu_matmul_stats_kernel(%arg0: i32, %arg1: memref<256x4xbf16, #tpu.memory_space<vmem>>, %arg2: memref<4x16xbf16, #tpu.memory_space<vmem>>, %arg3: memref<1x4xf32, #tpu.memory_space<vmem>>, %arg4: memref<1x4xf32, #tpu.memory_space<vmem>>, %arg5: memref<256x16xbf16, #tpu.memory_space<vmem>>, %arg6: memref<1x2x16xf32, #tpu.memory_space<vmem>>) attributes {dimension_semantics = [#tpu.dimension_semantics<parallel>], iteration_bounds = array<i64: 2>, scalar_prefetch = 0 : i64, scratch_operands = 0 : i64, tpu.core_type = #tpu.core_type<tc>, window_params = [{transform_indices = @transform_0, window_bounds = array<i64: 256, 4>}, {pipeline_mode = #tpu.pipeline_mode<synchronous>, transform_indices = @transform_1, window_bounds = array<i64: 4, 16>}, {pipeline_mode = #tpu.pipeline_mode<synchronous>, transform_indices = @transform_2, window_bounds = array<i64: 1, 4>}, {pipeline_mode = #tpu.pipeline_mode<synchronous>, transform_indices = @transform_3, window_bounds = array<i64: 1, 4>}, {transform_indices = @transform_4, window_bounds = array<i64: 256, 16>}, {transform_indices = @transform_5, window_bounds = array<i64: 1, 2, 16>}]} {
    %c0 = arith.constant 0 : index
    %c0_0 = arith.constant 0 : index
    %0 = vector.load %arg1[%c0, %c0_0] : memref<256x4xbf16, #tpu.memory_space<vmem>>, vector<256x4xbf16>
    %1 = arith.extf %0 : vector<256x4xbf16> to vector<256x4xf32>
    %c0_1 = arith.constant 0 : index
    %c0_2 = arith.constant 0 : index
    %2 = vector.load %arg3[%c0_1, %c0_2] : memref<1x4xf32, #tpu.memory_space<vmem>>, vector<1x4xf32>
    %3 = vector.broadcast %2 : vector<1x4xf32> to vector<256x4xf32>
    %4 = arith.mulf %1, %3 : vector<256x4xf32>
    %c0_3 = arith.constant 0 : index
    %c0_4 = arith.constant 0 : index
    %5 = vector.load %arg4[%c0_3, %c0_4] : memref<1x4xf32, #tpu.memory_space<vmem>>, vector<1x4xf32>
    %6 = vector.broadcast %5 : vector<1x4xf32> to vector<256x4xf32>
    %7 = arith.addf %4, %6 : vector<256x4xf32>
    %cst = arith.constant 0.000000e+00 : f32
    %8 = vector.broadcast %cst : f32 to vector<256x4xf32>
    %9 = arith.maximumf %7, %8 : vector<256x4xf32>
    %10 = arith.truncf %9 : vector<256x4xf32> to vector<256x4xbf16>
    %c0_5 = arith.constant 0 : index
    %c0_6 = arith.constant 0 : index
    %11 = vector.load %arg2[%c0_5, %c0_6] : memref<4x16xbf16, #tpu.memory_space<vmem>>, vector<4x16xbf16>
    %cst_7 = arith.constant dense<0.000000e+00> : vector<256x16xf32>
    %12 = tpu.matmul %10, %11, %cst_7 {dimension_numbers = #tpu.dot_dimension_numbers<[1], [0], [0], [1], [0, 0, 1, 1], [], []>} : vector<256x4xbf16>, vector<4x16xbf16>, vector<256x16xf32> -> vector<256x16xf32>
    %13 = arith.truncf %12 : vector<256x16xf32> to vector<256x16xbf16>
    %c0_8 = arith.constant 0 : index
    %c0_9 = arith.constant 0 : index
    %14 = vector.load %arg5[%c0_8, %c0_9] : memref<256x16xbf16, #tpu.memory_space<vmem>>, vector<256x16xbf16>
    tpu.vector_store %arg5[%c0_8, %c0_9], %13 {strides = array<i32>} : memref<256x16xbf16, #tpu.memory_space<vmem>>, vector<256x16xbf16>,
    %cst_10 = arith.constant dense<0.000000e+00> : vector<16xf32>
    %15 = vector.multi_reduction <add>, %12, %cst_10 [0] : vector<256x16xf32> to vector<16xf32>
    %16 = vector.shape_cast %15 : vector<16xf32> to vector<1x16xf32>
    %17 = arith.mulf %12, %12 : vector<256x16xf32>
    %cst_11 = arith.constant dense<0.000000e+00> : vector<16xf32>
    %18 = vector.multi_reduction <add>, %17, %cst_11 [0] : vector<256x16xf32> to vector<16xf32>
    %19 = vector.shape_cast %18 : vector<16xf32> to vector<1x16xf32>
    %20 = tpu.concatenate %16, %19 in 0 : vector<1x16xf32>, vector<1x16xf32> -> vector<2x16xf32>
    %c0_12 = arith.constant 0 : index
    %c0_13 = arith.constant 0 : index
    %c0_14 = arith.constant 0 : index
    %21 = vector.load %arg6[%c0_12, %c0_13, %c0_14] : memref<1x2x16xf32, #tpu.memory_space<vmem>>, vector<1x2x16xf32>
    %22 = vector.shape_cast %21 : vector<1x2x16xf32> to vector<2x16xf32>
    %23 = vector.shape_cast %20 : vector<2x16xf32> to vector<1x2x16xf32>
    tpu.vector_store %arg6[%c0_12, %c0_13, %c0_14], %23 {strides = array<i32>} : memref<1x2x16xf32, #tpu.memory_space<vmem>>, vector<1x2x16xf32>,
    return
  }
  func.func @transform_0(%arg0: i32) -> (i32, i32) {
    %c0_i32 = arith.constant 0 : i32
    %c0_i32_0 = arith.constant 0 : i32
    return %arg0, %c0_i32 : i32, i32
  }
  func.func @transform_1(%arg0: i32) -> (i32, i32) {
    %c0_i32 = arith.constant 0 : i32
    %c0_i32_0 = arith.constant 0 : i32
    %c0_i32_1 = arith.constant 0 : i32
    return %c0_i32, %c0_i32_0 : i32, i32
  }
  func.func @transform_2(%arg0: i32) -> (i32, i32) {
    %c0_i32 = arith.constant 0 : i32
    %c0_i32_0 = arith.constant 0 : i32
    %c0_i32_1 = arith.constant 0 : i32
    return %c0_i32, %c0_i32_0 : i32, i32
  }
  func.func @transform_3(%arg0: i32) -> (i32, i32) {
    %c0_i32 = arith.constant 0 : i32
    %c0_i32_0 = arith.constant 0 : i32
    %c0_i32_1 = arith.constant 0 : i32
    return %c0_i32, %c0_i32_0 : i32, i32
  }
  func.func @transform_4(%arg0: i32) -> (i32, i32) {
    %c0_i32 = arith.constant 0 : i32
    %c0_i32_0 = arith.constant 0 : i32
    return %arg0, %c0_i32 : i32, i32
  }
  func.func @transform_5(%arg0: i32) -> (i32, i32, i32) {
    %c0_i32 = arith.constant 0 : i32
    %c0_i32_0 = arith.constant 0 : i32
    %c0_i32_1 = arith.constant 0 : i32
    return %arg0, %c0_i32, %c0_i32_0 : i32, i32, i32
  }
}

module attributes {stable_mosaic.version = 11 : i64} {
  func.func @_conv3x3_stats_kernel(%arg0: i32, %arg1: memref<1x16x16x4xbf16, #tpu.memory_space<vmem>>, %arg2: memref<9x4x4xbf16, #tpu.memory_space<vmem>>, %arg3: memref<1x4xf32, #tpu.memory_space<vmem>>, %arg4: memref<1x4xf32, #tpu.memory_space<vmem>>, %arg5: memref<1x16x16x4xbf16, #tpu.memory_space<vmem>>, %arg6: memref<1x2x4xf32, #tpu.memory_space<vmem>>, %arg7: memref<18x18x4xf32, #tpu.memory_space<vmem>>) attributes {dimension_semantics = [#tpu.dimension_semantics<parallel>], iteration_bounds = array<i64: 2>, scalar_prefetch = 0 : i64, scratch_operands = 1 : i64, tpu.core_type = #tpu.core_type<tc>, window_params = [{transform_indices = @transform_0, window_bounds = array<i64: 1, 16, 16, 4>}, {pipeline_mode = #tpu.pipeline_mode<synchronous>, transform_indices = @transform_1, window_bounds = array<i64: 9, 4, 4>}, {pipeline_mode = #tpu.pipeline_mode<synchronous>, transform_indices = @transform_2, window_bounds = array<i64: 1, 4>}, {pipeline_mode = #tpu.pipeline_mode<synchronous>, transform_indices = @transform_3, window_bounds = array<i64: 1, 4>}, {transform_indices = @transform_4, window_bounds = array<i64: 1, 16, 16, 4>}, {transform_indices = @transform_5, window_bounds = array<i64: 1, 2, 4>}]} {
    %cst = arith.constant 0.000000e+00 : f32
    %0 = vector.broadcast %cst : f32 to vector<1x18x4xf32>
    %cst_0 = arith.constant 0.000000e+00 : f32
    %1 = vector.broadcast %cst_0 : f32 to vector<18x1x4xf32>
    %c0 = arith.constant 0 : index
    %c0_1 = arith.constant 0 : index
    %c0_2 = arith.constant 0 : index
    %2 = vector.load %arg7[%c0, %c0_1, %c0_2] : memref<18x18x4xf32, #tpu.memory_space<vmem>>, vector<1x18x4xf32>
    tpu.vector_store %arg7[%c0, %c0_1, %c0_2], %0 {strides = array<i32>} : memref<18x18x4xf32, #tpu.memory_space<vmem>>, vector<1x18x4xf32>,
    %c17 = arith.constant 17 : index
    %c0_3 = arith.constant 0 : index
    %c0_4 = arith.constant 0 : index
    %3 = vector.load %arg7[%c17, %c0_3, %c0_4] : memref<18x18x4xf32, #tpu.memory_space<vmem>>, vector<1x18x4xf32>
    tpu.vector_store %arg7[%c17, %c0_3, %c0_4], %0 {strides = array<i32>} : memref<18x18x4xf32, #tpu.memory_space<vmem>>, vector<1x18x4xf32>,
    %c0_5 = arith.constant 0 : index
    %c0_6 = arith.constant 0 : index
    %c0_7 = arith.constant 0 : index
    %4 = vector.load %arg7[%c0_5, %c0_6, %c0_7] : memref<18x18x4xf32, #tpu.memory_space<vmem>>, vector<18x1x4xf32>
    tpu.vector_store %arg7[%c0_5, %c0_6, %c0_7], %1 {strides = array<i32>} : memref<18x18x4xf32, #tpu.memory_space<vmem>>, vector<18x1x4xf32>,
    %c0_8 = arith.constant 0 : index
    %c17_9 = arith.constant 17 : index
    %c0_10 = arith.constant 0 : index
    %5 = vector.load %arg7[%c0_8, %c17_9, %c0_10] : memref<18x18x4xf32, #tpu.memory_space<vmem>>, vector<18x1x4xf32>
    tpu.vector_store %arg7[%c0_8, %c17_9, %c0_10], %1 {strides = array<i32>} : memref<18x18x4xf32, #tpu.memory_space<vmem>>, vector<18x1x4xf32>,
    %c0_11 = arith.constant 0 : index
    %c0_12 = arith.constant 0 : index
    %c0_13 = arith.constant 0 : index
    %c0_14 = arith.constant 0 : index
    %6 = vector.load %arg1[%c0_11, %c0_12, %c0_13, %c0_14] : memref<1x16x16x4xbf16, #tpu.memory_space<vmem>>, vector<1x16x16x4xbf16>
    %7 = vector.shape_cast %6 : vector<1x16x16x4xbf16> to vector<16x16x4xbf16>
    %8 = arith.extf %7 : vector<16x16x4xbf16> to vector<16x16x4xf32>
    %c0_15 = arith.constant 0 : index
    %c0_16 = arith.constant 0 : index
    %9 = vector.load %arg3[%c0_15, %c0_16] : memref<1x4xf32, #tpu.memory_space<vmem>>, vector<1x4xf32>
    %10 = vector.shape_cast %9 : vector<1x4xf32> to vector<1x1x4xf32>
    %11 = vector.broadcast %10 : vector<1x1x4xf32> to vector<16x16x4xf32>
    %12 = arith.mulf %8, %11 : vector<16x16x4xf32>
    %c0_17 = arith.constant 0 : index
    %c0_18 = arith.constant 0 : index
    %13 = vector.load %arg4[%c0_17, %c0_18] : memref<1x4xf32, #tpu.memory_space<vmem>>, vector<1x4xf32>
    %14 = vector.shape_cast %13 : vector<1x4xf32> to vector<1x1x4xf32>
    %15 = vector.broadcast %14 : vector<1x1x4xf32> to vector<16x16x4xf32>
    %16 = arith.addf %12, %15 : vector<16x16x4xf32>
    %cst_19 = arith.constant 0.000000e+00 : f32
    %17 = vector.broadcast %cst_19 : f32 to vector<16x16x4xf32>
    %18 = arith.maximumf %16, %17 : vector<16x16x4xf32>
    %c1 = arith.constant 1 : index
    %c1_20 = arith.constant 1 : index
    %c0_21 = arith.constant 0 : index
    %19 = vector.load %arg7[%c1, %c1_20, %c0_21] : memref<18x18x4xf32, #tpu.memory_space<vmem>>, vector<16x16x4xf32>
    tpu.vector_store %arg7[%c1, %c1_20, %c0_21], %18 {strides = array<i32>} : memref<18x18x4xf32, #tpu.memory_space<vmem>>, vector<16x16x4xf32>,
    %cst_22 = arith.constant 0.000000e+00 : f32
    %20 = vector.broadcast %cst_22 : f32 to vector<256x4xf32>
    %c0_23 = arith.constant 0 : index
    %c0_24 = arith.constant 0 : index
    %c0_25 = arith.constant 0 : index
    %21 = vector.load %arg7[%c0_23, %c0_24, %c0_25] : memref<18x18x4xf32, #tpu.memory_space<vmem>>, vector<16x16x4xf32>
    %22 = vector.shape_cast %21 : vector<16x16x4xf32> to vector<256x4xf32>
    %23 = arith.truncf %22 : vector<256x4xf32> to vector<256x4xbf16>
    %c0_26 = arith.constant 0 : index
    %c0_27 = arith.constant 0 : index
    %c0_28 = arith.constant 0 : index
    %24 = vector.load %arg2[%c0_26, %c0_27, %c0_28] : memref<9x4x4xbf16, #tpu.memory_space<vmem>>, vector<1x4x4xbf16>
    %25 = vector.shape_cast %24 : vector<1x4x4xbf16> to vector<4x4xbf16>
    %cst_29 = arith.constant dense<0.000000e+00> : vector<256x4xf32>
    %26 = tpu.matmul %23, %25, %cst_29 {dimension_numbers = #tpu.dot_dimension_numbers<[1], [0], [0], [1], [0, 0, 1, 1], [], []>} : vector<256x4xbf16>, vector<4x4xbf16>, vector<256x4xf32> -> vector<256x4xf32>
    %27 = arith.addf %20, %26 : vector<256x4xf32>
    %c0_30 = arith.constant 0 : index
    %c1_31 = arith.constant 1 : index
    %c0_32 = arith.constant 0 : index
    %28 = vector.load %arg7[%c0_30, %c1_31, %c0_32] : memref<18x18x4xf32, #tpu.memory_space<vmem>>, vector<16x16x4xf32>
    %29 = vector.shape_cast %28 : vector<16x16x4xf32> to vector<256x4xf32>
    %30 = arith.truncf %29 : vector<256x4xf32> to vector<256x4xbf16>
    %c1_33 = arith.constant 1 : index
    %c0_34 = arith.constant 0 : index
    %c0_35 = arith.constant 0 : index
    %31 = vector.load %arg2[%c1_33, %c0_34, %c0_35] : memref<9x4x4xbf16, #tpu.memory_space<vmem>>, vector<1x4x4xbf16>
    %32 = vector.shape_cast %31 : vector<1x4x4xbf16> to vector<4x4xbf16>
    %cst_36 = arith.constant dense<0.000000e+00> : vector<256x4xf32>
    %33 = tpu.matmul %30, %32, %cst_36 {dimension_numbers = #tpu.dot_dimension_numbers<[1], [0], [0], [1], [0, 0, 1, 1], [], []>} : vector<256x4xbf16>, vector<4x4xbf16>, vector<256x4xf32> -> vector<256x4xf32>
    %34 = arith.addf %27, %33 : vector<256x4xf32>
    %c0_37 = arith.constant 0 : index
    %c2 = arith.constant 2 : index
    %c0_38 = arith.constant 0 : index
    %35 = vector.load %arg7[%c0_37, %c2, %c0_38] : memref<18x18x4xf32, #tpu.memory_space<vmem>>, vector<16x16x4xf32>
    %36 = vector.shape_cast %35 : vector<16x16x4xf32> to vector<256x4xf32>
    %37 = arith.truncf %36 : vector<256x4xf32> to vector<256x4xbf16>
    %c2_39 = arith.constant 2 : index
    %c0_40 = arith.constant 0 : index
    %c0_41 = arith.constant 0 : index
    %38 = vector.load %arg2[%c2_39, %c0_40, %c0_41] : memref<9x4x4xbf16, #tpu.memory_space<vmem>>, vector<1x4x4xbf16>
    %39 = vector.shape_cast %38 : vector<1x4x4xbf16> to vector<4x4xbf16>
    %cst_42 = arith.constant dense<0.000000e+00> : vector<256x4xf32>
    %40 = tpu.matmul %37, %39, %cst_42 {dimension_numbers = #tpu.dot_dimension_numbers<[1], [0], [0], [1], [0, 0, 1, 1], [], []>} : vector<256x4xbf16>, vector<4x4xbf16>, vector<256x4xf32> -> vector<256x4xf32>
    %41 = arith.addf %34, %40 : vector<256x4xf32>
    %c1_43 = arith.constant 1 : index
    %c0_44 = arith.constant 0 : index
    %c0_45 = arith.constant 0 : index
    %42 = vector.load %arg7[%c1_43, %c0_44, %c0_45] : memref<18x18x4xf32, #tpu.memory_space<vmem>>, vector<16x16x4xf32>
    %43 = vector.shape_cast %42 : vector<16x16x4xf32> to vector<256x4xf32>
    %44 = arith.truncf %43 : vector<256x4xf32> to vector<256x4xbf16>
    %c3 = arith.constant 3 : index
    %c0_46 = arith.constant 0 : index
    %c0_47 = arith.constant 0 : index
    %45 = vector.load %arg2[%c3, %c0_46, %c0_47] : memref<9x4x4xbf16, #tpu.memory_space<vmem>>, vector<1x4x4xbf16>
    %46 = vector.shape_cast %45 : vector<1x4x4xbf16> to vector<4x4xbf16>
    %cst_48 = arith.constant dense<0.000000e+00> : vector<256x4xf32>
    %47 = tpu.matmul %44, %46, %cst_48 {dimension_numbers = #tpu.dot_dimension_numbers<[1], [0], [0], [1], [0, 0, 1, 1], [], []>} : vector<256x4xbf16>, vector<4x4xbf16>, vector<256x4xf32> -> vector<256x4xf32>
    %48 = arith.addf %41, %47 : vector<256x4xf32>
    %c1_49 = arith.constant 1 : index
    %c1_50 = arith.constant 1 : index
    %c0_51 = arith.constant 0 : index
    %49 = vector.load %arg7[%c1_49, %c1_50, %c0_51] : memref<18x18x4xf32, #tpu.memory_space<vmem>>, vector<16x16x4xf32>
    %50 = vector.shape_cast %49 : vector<16x16x4xf32> to vector<256x4xf32>
    %51 = arith.truncf %50 : vector<256x4xf32> to vector<256x4xbf16>
    %c4 = arith.constant 4 : index
    %c0_52 = arith.constant 0 : index
    %c0_53 = arith.constant 0 : index
    %52 = vector.load %arg2[%c4, %c0_52, %c0_53] : memref<9x4x4xbf16, #tpu.memory_space<vmem>>, vector<1x4x4xbf16>
    %53 = vector.shape_cast %52 : vector<1x4x4xbf16> to vector<4x4xbf16>
    %cst_54 = arith.constant dense<0.000000e+00> : vector<256x4xf32>
    %54 = tpu.matmul %51, %53, %cst_54 {dimension_numbers = #tpu.dot_dimension_numbers<[1], [0], [0], [1], [0, 0, 1, 1], [], []>} : vector<256x4xbf16>, vector<4x4xbf16>, vector<256x4xf32> -> vector<256x4xf32>
    %55 = arith.addf %48, %54 : vector<256x4xf32>
    %c1_55 = arith.constant 1 : index
    %c2_56 = arith.constant 2 : index
    %c0_57 = arith.constant 0 : index
    %56 = vector.load %arg7[%c1_55, %c2_56, %c0_57] : memref<18x18x4xf32, #tpu.memory_space<vmem>>, vector<16x16x4xf32>
    %57 = vector.shape_cast %56 : vector<16x16x4xf32> to vector<256x4xf32>
    %58 = arith.truncf %57 : vector<256x4xf32> to vector<256x4xbf16>
    %c5 = arith.constant 5 : index
    %c0_58 = arith.constant 0 : index
    %c0_59 = arith.constant 0 : index
    %59 = vector.load %arg2[%c5, %c0_58, %c0_59] : memref<9x4x4xbf16, #tpu.memory_space<vmem>>, vector<1x4x4xbf16>
    %60 = vector.shape_cast %59 : vector<1x4x4xbf16> to vector<4x4xbf16>
    %cst_60 = arith.constant dense<0.000000e+00> : vector<256x4xf32>
    %61 = tpu.matmul %58, %60, %cst_60 {dimension_numbers = #tpu.dot_dimension_numbers<[1], [0], [0], [1], [0, 0, 1, 1], [], []>} : vector<256x4xbf16>, vector<4x4xbf16>, vector<256x4xf32> -> vector<256x4xf32>
    %62 = arith.addf %55, %61 : vector<256x4xf32>
    %c2_61 = arith.constant 2 : index
    %c0_62 = arith.constant 0 : index
    %c0_63 = arith.constant 0 : index
    %63 = vector.load %arg7[%c2_61, %c0_62, %c0_63] : memref<18x18x4xf32, #tpu.memory_space<vmem>>, vector<16x16x4xf32>
    %64 = vector.shape_cast %63 : vector<16x16x4xf32> to vector<256x4xf32>
    %65 = arith.truncf %64 : vector<256x4xf32> to vector<256x4xbf16>
    %c6 = arith.constant 6 : index
    %c0_64 = arith.constant 0 : index
    %c0_65 = arith.constant 0 : index
    %66 = vector.load %arg2[%c6, %c0_64, %c0_65] : memref<9x4x4xbf16, #tpu.memory_space<vmem>>, vector<1x4x4xbf16>
    %67 = vector.shape_cast %66 : vector<1x4x4xbf16> to vector<4x4xbf16>
    %cst_66 = arith.constant dense<0.000000e+00> : vector<256x4xf32>
    %68 = tpu.matmul %65, %67, %cst_66 {dimension_numbers = #tpu.dot_dimension_numbers<[1], [0], [0], [1], [0, 0, 1, 1], [], []>} : vector<256x4xbf16>, vector<4x4xbf16>, vector<256x4xf32> -> vector<256x4xf32>
    %69 = arith.addf %62, %68 : vector<256x4xf32>
    %c2_67 = arith.constant 2 : index
    %c1_68 = arith.constant 1 : index
    %c0_69 = arith.constant 0 : index
    %70 = vector.load %arg7[%c2_67, %c1_68, %c0_69] : memref<18x18x4xf32, #tpu.memory_space<vmem>>, vector<16x16x4xf32>
    %71 = vector.shape_cast %70 : vector<16x16x4xf32> to vector<256x4xf32>
    %72 = arith.truncf %71 : vector<256x4xf32> to vector<256x4xbf16>
    %c7 = arith.constant 7 : index
    %c0_70 = arith.constant 0 : index
    %c0_71 = arith.constant 0 : index
    %73 = vector.load %arg2[%c7, %c0_70, %c0_71] : memref<9x4x4xbf16, #tpu.memory_space<vmem>>, vector<1x4x4xbf16>
    %74 = vector.shape_cast %73 : vector<1x4x4xbf16> to vector<4x4xbf16>
    %cst_72 = arith.constant dense<0.000000e+00> : vector<256x4xf32>
    %75 = tpu.matmul %72, %74, %cst_72 {dimension_numbers = #tpu.dot_dimension_numbers<[1], [0], [0], [1], [0, 0, 1, 1], [], []>} : vector<256x4xbf16>, vector<4x4xbf16>, vector<256x4xf32> -> vector<256x4xf32>
    %76 = arith.addf %69, %75 : vector<256x4xf32>
    %c2_73 = arith.constant 2 : index
    %c2_74 = arith.constant 2 : index
    %c0_75 = arith.constant 0 : index
    %77 = vector.load %arg7[%c2_73, %c2_74, %c0_75] : memref<18x18x4xf32, #tpu.memory_space<vmem>>, vector<16x16x4xf32>
    %78 = vector.shape_cast %77 : vector<16x16x4xf32> to vector<256x4xf32>
    %79 = arith.truncf %78 : vector<256x4xf32> to vector<256x4xbf16>
    %c8 = arith.constant 8 : index
    %c0_76 = arith.constant 0 : index
    %c0_77 = arith.constant 0 : index
    %80 = vector.load %arg2[%c8, %c0_76, %c0_77] : memref<9x4x4xbf16, #tpu.memory_space<vmem>>, vector<1x4x4xbf16>
    %81 = vector.shape_cast %80 : vector<1x4x4xbf16> to vector<4x4xbf16>
    %cst_78 = arith.constant dense<0.000000e+00> : vector<256x4xf32>
    %82 = tpu.matmul %79, %81, %cst_78 {dimension_numbers = #tpu.dot_dimension_numbers<[1], [0], [0], [1], [0, 0, 1, 1], [], []>} : vector<256x4xbf16>, vector<4x4xbf16>, vector<256x4xf32> -> vector<256x4xf32>
    %83 = arith.addf %76, %82 : vector<256x4xf32>
    %84 = vector.shape_cast %83 : vector<256x4xf32> to vector<1x16x16x4xf32>
    %85 = arith.truncf %84 : vector<1x16x16x4xf32> to vector<1x16x16x4xbf16>
    %c0_79 = arith.constant 0 : index
    %c0_80 = arith.constant 0 : index
    %c0_81 = arith.constant 0 : index
    %c0_82 = arith.constant 0 : index
    %86 = vector.load %arg5[%c0_79, %c0_80, %c0_81, %c0_82] : memref<1x16x16x4xbf16, #tpu.memory_space<vmem>>, vector<1x16x16x4xbf16>
    tpu.vector_store %arg5[%c0_79, %c0_80, %c0_81, %c0_82], %85 {strides = array<i32>} : memref<1x16x16x4xbf16, #tpu.memory_space<vmem>>, vector<1x16x16x4xbf16>,
    %cst_83 = arith.constant dense<0.000000e+00> : vector<4xf32>
    %87 = vector.multi_reduction <add>, %83, %cst_83 [0] : vector<256x4xf32> to vector<4xf32>
    %88 = vector.shape_cast %87 : vector<4xf32> to vector<1x4xf32>
    %89 = arith.mulf %83, %83 : vector<256x4xf32>
    %cst_84 = arith.constant dense<0.000000e+00> : vector<4xf32>
    %90 = vector.multi_reduction <add>, %89, %cst_84 [0] : vector<256x4xf32> to vector<4xf32>
    %91 = vector.shape_cast %90 : vector<4xf32> to vector<1x4xf32>
    %92 = tpu.concatenate %88, %91 in 0 : vector<1x4xf32>, vector<1x4xf32> -> vector<2x4xf32>
    %c0_85 = arith.constant 0 : index
    %c0_86 = arith.constant 0 : index
    %c0_87 = arith.constant 0 : index
    %93 = vector.load %arg6[%c0_85, %c0_86, %c0_87] : memref<1x2x4xf32, #tpu.memory_space<vmem>>, vector<1x2x4xf32>
    %94 = vector.shape_cast %93 : vector<1x2x4xf32> to vector<2x4xf32>
    %95 = vector.shape_cast %92 : vector<2x4xf32> to vector<1x2x4xf32>
    tpu.vector_store %arg6[%c0_85, %c0_86, %c0_87], %95 {strides = array<i32>} : memref<1x2x4xf32, #tpu.memory_space<vmem>>, vector<1x2x4xf32>,
    return
  }
  func.func @transform_0(%arg0: i32) -> (i32, i32, i32, i32) {
    %c0_i32 = arith.constant 0 : i32
    %c0_i32_0 = arith.constant 0 : i32
    %c0_i32_1 = arith.constant 0 : i32
    %c0_i32_2 = arith.constant 0 : i32
    return %arg0, %c0_i32, %c0_i32_0, %c0_i32_1 : i32, i32, i32, i32
  }
  func.func @transform_1(%arg0: i32) -> (i32, i32, i32) {
    %c0_i32 = arith.constant 0 : i32
    %c0_i32_0 = arith.constant 0 : i32
    %c0_i32_1 = arith.constant 0 : i32
    %c0_i32_2 = arith.constant 0 : i32
    return %c0_i32, %c0_i32_0, %c0_i32_1 : i32, i32, i32
  }
  func.func @transform_2(%arg0: i32) -> (i32, i32) {
    %c0_i32 = arith.constant 0 : i32
    %c0_i32_0 = arith.constant 0 : i32
    %c0_i32_1 = arith.constant 0 : i32
    return %c0_i32, %c0_i32_0 : i32, i32
  }
  func.func @transform_3(%arg0: i32) -> (i32, i32) {
    %c0_i32 = arith.constant 0 : i32
    %c0_i32_0 = arith.constant 0 : i32
    %c0_i32_1 = arith.constant 0 : i32
    return %c0_i32, %c0_i32_0 : i32, i32
  }
  func.func @transform_4(%arg0: i32) -> (i32, i32, i32, i32) {
    %c0_i32 = arith.constant 0 : i32
    %c0_i32_0 = arith.constant 0 : i32
    %c0_i32_1 = arith.constant 0 : i32
    %c0_i32_2 = arith.constant 0 : i32
    return %arg0, %c0_i32, %c0_i32_0, %c0_i32_1 : i32, i32, i32, i32
  }
  func.func @transform_5(%arg0: i32) -> (i32, i32, i32) {
    %c0_i32 = arith.constant 0 : i32
    %c0_i32_0 = arith.constant 0 : i32
    %c0_i32_1 = arith.constant 0 : i32
    return %arg0, %c0_i32, %c0_i32_0 : i32, i32, i32
  }
}

module attributes {stable_mosaic.version = 11 : i64} {
  func.func @_bn_residual_relu_kernel(%arg0: i32, %arg1: memref<256x16xbf16, #tpu.memory_space<vmem>>, %arg2: memref<256x16xbf16, #tpu.memory_space<vmem>>, %arg3: memref<1x16xf32, #tpu.memory_space<vmem>>, %arg4: memref<1x16xf32, #tpu.memory_space<vmem>>, %arg5: memref<256x16xf32, #tpu.memory_space<vmem>>) attributes {dimension_semantics = [#tpu.dimension_semantics<parallel>], iteration_bounds = array<i64: 2>, scalar_prefetch = 0 : i64, scratch_operands = 0 : i64, tpu.core_type = #tpu.core_type<tc>, window_params = [{transform_indices = @transform_0, window_bounds = array<i64: 256, 16>}, {transform_indices = @transform_1, window_bounds = array<i64: 256, 16>}, {pipeline_mode = #tpu.pipeline_mode<synchronous>, transform_indices = @transform_2, window_bounds = array<i64: 1, 16>}, {pipeline_mode = #tpu.pipeline_mode<synchronous>, transform_indices = @transform_3, window_bounds = array<i64: 1, 16>}, {transform_indices = @transform_4, window_bounds = array<i64: 256, 16>}]} {
    %c0 = arith.constant 0 : index
    %c0_0 = arith.constant 0 : index
    %0 = vector.load %arg1[%c0, %c0_0] : memref<256x16xbf16, #tpu.memory_space<vmem>>, vector<256x16xbf16>
    %1 = arith.extf %0 : vector<256x16xbf16> to vector<256x16xf32>
    %c0_1 = arith.constant 0 : index
    %c0_2 = arith.constant 0 : index
    %2 = vector.load %arg3[%c0_1, %c0_2] : memref<1x16xf32, #tpu.memory_space<vmem>>, vector<1x16xf32>
    %3 = vector.broadcast %2 : vector<1x16xf32> to vector<256x16xf32>
    %4 = arith.mulf %1, %3 : vector<256x16xf32>
    %c0_3 = arith.constant 0 : index
    %c0_4 = arith.constant 0 : index
    %5 = vector.load %arg4[%c0_3, %c0_4] : memref<1x16xf32, #tpu.memory_space<vmem>>, vector<1x16xf32>
    %6 = vector.broadcast %5 : vector<1x16xf32> to vector<256x16xf32>
    %7 = arith.addf %4, %6 : vector<256x16xf32>
    %c0_5 = arith.constant 0 : index
    %c0_6 = arith.constant 0 : index
    %8 = vector.load %arg2[%c0_5, %c0_6] : memref<256x16xbf16, #tpu.memory_space<vmem>>, vector<256x16xbf16>
    %9 = arith.extf %8 : vector<256x16xbf16> to vector<256x16xf32>
    %10 = arith.addf %7, %9 : vector<256x16xf32>
    %cst = arith.constant 0.000000e+00 : f32
    %11 = vector.broadcast %cst : f32 to vector<256x16xf32>
    %12 = arith.maximumf %10, %11 : vector<256x16xf32>
    %c0_7 = arith.constant 0 : index
    %c0_8 = arith.constant 0 : index
    %13 = vector.load %arg5[%c0_7, %c0_8] : memref<256x16xf32, #tpu.memory_space<vmem>>, vector<256x16xf32>
    tpu.vector_store %arg5[%c0_7, %c0_8], %12 {strides = array<i32>} : memref<256x16xf32, #tpu.memory_space<vmem>>, vector<256x16xf32>,
    return
  }
  func.func @transform_0(%arg0: i32) -> (i32, i32) {
    %c0_i32 = arith.constant 0 : i32
    %c0_i32_0 = arith.constant 0 : i32
    return %arg0, %c0_i32 : i32, i32
  }
  func.func @transform_1(%arg0: i32) -> (i32, i32) {
    %c0_i32 = arith.constant 0 : i32
    %c0_i32_0 = arith.constant 0 : i32
    return %arg0, %c0_i32 : i32, i32
  }
  func.func @transform_2(%arg0: i32) -> (i32, i32) {
    %c0_i32 = arith.constant 0 : i32
    %c0_i32_0 = arith.constant 0 : i32
    %c0_i32_1 = arith.constant 0 : i32
    return %c0_i32, %c0_i32_0 : i32, i32
  }
  func.func @transform_3(%arg0: i32) -> (i32, i32) {
    %c0_i32 = arith.constant 0 : i32
    %c0_i32_0 = arith.constant 0 : i32
    %c0_i32_1 = arith.constant 0 : i32
    return %c0_i32, %c0_i32_0 : i32, i32
  }
  func.func @transform_4(%arg0: i32) -> (i32, i32) {
    %c0_i32 = arith.constant 0 : i32
    %c0_i32_0 = arith.constant 0 : i32
    return %arg0, %c0_i32 : i32, i32
  }
}

</mosaic_0001>

<llo_original>
// kernel: bottleneck_pallas.4
$region0: #{bottleneck_pallas.4}
  #allocation0 [shape = 'u32[]', space=smem, size = 0x4, offset = 0x4, fixed_abs, tag = 'smem constant byte address 0x4 - core index']
  #allocation1 [shape = 'u32[144,128]{1,0:T(1,128)}', space=vmem, size = 0x12000, scoped, tag = 'internal scratch']
  %s0 = inlined_call_operand.vmem [shape: bf16[512,16], index: 0, kind: input, shape index: {}]
  %s1 = inlined_call_operand.vmem [shape: bf16[16,4], index: 1, kind: input, shape index: {}]
  %s2 = inlined_call_operand.vmem [shape: bf16[512,4], index: 2, kind: output, shape index: {0}]
  %s3 = inlined_call_operand.vmem [shape: f32[2,2,4], index: 3, kind: output, shape index: {1}]
  %4 = xla_tuple %s2, %s3
  %s5 = sld [smem:[#allocation0]]
  $region49: #{bottleneck_pallas.4} parent=0
    _
  %s7 = ssub.s32 1, %s5
  %s8 = scalar_select 0, %s7, %s5
  loop: start=0, step=1, limit=4
  $region2: #{bottleneck_pallas.4} parent=0 // loop_pre_header
    _
  $region3: #{bottleneck_pallas.4} parent=0 // loop_header
    %s10 = sphi 0, %s14
    %p11 = scmp.ge.s32.totalorder %s10, 4
    %s20 = sphi 0, %s22
    %s23 = sphi 0, %s20
    %s24 = sphi 0, %s23
    %s40 = sphi 0, %s24
    %s44 = sphi 0, %s44
    %s46 = sphi 0, %s44
    %s47 = sphi 0, %s46
    %s61 = sphi 0, %s47
    %s67 = sphi 0, %s69
    %s70 = sphi 0, %s67
    %s71 = sphi 0, %s70
    %s87 = sphi 0, %s71
    %s93 = sphi 0, %s95
    %s96 = sphi 0, %s93
    %s97 = sphi 0, %s96
    %s113 = sphi 0, %s97
  $region4: #{bottleneck_pallas.4} parent=0 // loop_header_branch
    %13 = sbr.rel (%p11) target = $region8
  $region5: #{bottleneck_pallas.4} parent=0 // loop_body
    %s15 = ssub.s32 %s10, 1
    %s16 = ssub.s32 %s10, 2
    %s17 = sadd.s32 %s10, 1
    %s18 = ssub.s32 %s10, %s17
    %p19 = scmp.eq.s32.totalorder %s18, 0
    %s21 = sadd.s32 %s20, 1
    %s22 = scalar_select %p19, %s20, %s21
    %p25 = pneg %p19
    %p26 = scmp.eq.s32.totalorder %s10, 1
    %p27 = por %p25, %p26
    %p28 = scmp.ne.s32.totalorder %s20, %s23
    %p29 = scmp.eq.s32.totalorder %s10, 0
    %p30 = por %p28, %p29
    %p31 = scmp.ne.s32.totalorder %s20, %s23
    %p32 = scmp.eq.s32.totalorder %s15, 1
    %p33 = por %p31, %p32
    %p34 = scmp.ne.s32.totalorder %s23, %s24
    %p35 = scmp.eq.s32.totalorder %s15, 0
    %p36 = por %p34, %p35
    %p37 = scmp.ne.s32.totalorder %s23, %s24
    %p38 = scmp.eq.s32.totalorder %s16, 1
    %p39 = por %p37, %p38
    %p41 = scmp.ne.s32.totalorder %s24, %s40
    %p42 = scmp.eq.s32.totalorder %s16, 0
    %p43 = por %p41, %p42
    %s45 = sadd.s32 %s44, 1
    %p48 = scmp.eq.s32.totalorder %s10, 1
    %p49 = scmp.ne.s32.totalorder %s44, %s46
    %p50 = scmp.eq.s32.totalorder %s10, 0
    %p51 = por %p49, %p50
    %p52 = scmp.ne.s32.totalorder %s44, %s46
    %p53 = scmp.eq.s32.totalorder %s15, 1
    %p54 = por %p52, %p53
    %p55 = scmp.ne.s32.totalorder %s46, %s47
    %p56 = scmp.eq.s32.totalorder %s15, 0
    %p57 = por %p55, %p56
    %p58 = scmp.ne.s32.totalorder %s46, %s47
    %p59 = scmp.eq.s32.totalorder %s16, 1
    %p60 = por %p58, %p59
    %p62 = scmp.ne.s32.totalorder %s47, %s61
    %p63 = scmp.eq.s32.totalorder %s16, 0
    %p64 = por %p62, %p63
    %s65 = ssub.s32 %s10, %s17
    %p66 = scmp.eq.s32.totalorder %s65, 0
    %s68 = sadd.s32 %s67, 1
    %s69 = scalar_select %p66, %s67, %s68
    %p72 = pneg %p66
    %p73 = scmp.eq.s32.totalorder %s10, 1
    %p74 = por %p72, %p73
    %p75 = scmp.ne.s32.totalorder %s67, %s70
    %p76 = scmp.eq.s32.totalorder %s10, 0
    %p77 = por %p75, %p76
    %p78 = scmp.ne.s32.totalorder %s67, %s70
    %p79 = scmp.eq.s32.totalorder %s15, 1
    %p80 = por %p78, %p79
    %p81 = scmp.ne.s32.totalorder %s70, %s71
    %p82 = scmp.eq.s32.totalorder %s15, 0
    %p83 = por %p81, %p82
    %p84 = scmp.ne.s32.totalorder %s70, %s71
    %p85 = scmp.eq.s32.totalorder %s16, 1
    %p86 = por %p84, %p85
    %p88 = scmp.ne.s32.totalorder %s71, %s87
    %p89 = scmp.eq.s32.totalorder %s16, 0
    %p90 = por %p88, %p89
    %s91 = ssub.s32 %s10, %s17
    %p92 = scmp.eq.s32.totalorder %s91, 0
    %s94 = sadd.s32 %s93, 1
    %s95 = scalar_select %p92, %s93, %s94
    %p98 = pneg %p92
    %p99 = scmp.eq.s32.totalorder %s10, 1
    %p100 = por %p98, %p99
    %p101 = scmp.ne.s32.totalorder %s93, %s96
    %p102 = scmp.eq.s32.totalorder %s10, 0
    %p103 = por %p101, %p102
    %p104 = scmp.ne.s32.totalorder %s93, %s96
    %p105 = scmp.eq.s32.totalorder %s15, 1
    %p106 = por %p104, %p105
    %p107 = scmp.ne.s32.totalorder %s96, %s97
    %p108 = scmp.eq.s32.totalorder %s15, 0
    %p109 = por %p107, %p108
    %p110 = scmp.ne.s32.totalorder %s96, %s97
    %p111 = scmp.eq.s32.totalorder %s16, 1
    %p112 = por %p110, %p111
    %p114 = scmp.ne.s32.totalorder %s97, %s113
    %p115 = scmp.eq.s32.totalorder %s16, 0
    %p116 = por %p114, %p115
    %p117 = scmp.le.s32.totalorder 1, %s10
    %p118 = scmp.lt.s32.totalorder %s10, 3
    %p119 = pnand %p117, %p118
    %p120 = pneg %p119
    // Predicated region
    $region9: #{bottleneck_pallas.4} parent=5 // pred_check
      _
    $region10: #{bottleneck_pallas.4} parent=5 // pred_check_branch
      %122 = sbr.rel (%p119) target = $region12
    $region11: #{bottleneck_pallas.4} parent=5 // pred_region
      %s123 = ssub.s32 %s10, 1
      // Predicated region
      $region13: #{bottleneck_pallas.4} parent=11 // pred_check
        %p124 = pneg %p57
      $region14: #{bottleneck_pallas.4} parent=11 // pred_check_branch
        %126 = sbr.rel (%p124) target = $region16
      $region15: #{bottleneck_pallas.4} parent=11 // pred_region
        _
      $region16: #{bottleneck_pallas.4} parent=11 // pred_fallthru
        _
    $region12: #{bottleneck_pallas.4} parent=5 // pred_fallthru
      _
    %p127 = scmp.lt.s32.totalorder %s10, 2
    // Predicated region
    $region17: #{bottleneck_pallas.4} parent=5 // pred_check
      %p128 = pneg %p127
    $region18: #{bottleneck_pallas.4} parent=5 // pred_check_branch
      %130 = sbr.rel (%p128) target = $region20
    $region19: #{bottleneck_pallas.4} parent=5 // pred_region
      // Predicated region
      $region21: #{bottleneck_pallas.4} parent=19 // pred_check
        %p131 = pneg %p30
      $region22: #{bottleneck_pallas.4} parent=19 // pred_check_branch
        %133 = sbr.rel (%p131) target = $region24
      $region23: #{bottleneck_pallas.4} parent=19 // pred_region
        %s134 = smul.u32 32, %s10
        %p135 = scmp.lt.s32.totalorder %s134, 63
        %s136 = scalar_select %p135, %s134, 63
        %s137 = smul.addr %s136, 4
        %s138 = scalar_lea.vmem %s0, %s137
        %s139 = smul.u32 32, %s10
      $region24: #{bottleneck_pallas.4} parent=19 // pred_fallthru
        _
    $region20: #{bottleneck_pallas.4} parent=5 // pred_fallthru
      _
    %p140 = scmp.le.s32.totalorder 1, %s10
    %p141 = scmp.lt.s32.totalorder %s10, 3
    %p142 = pnand %p140, %p141
    %p143 = pneg %p142
    // Predicated region
    $region25: #{bottleneck_pallas.4} parent=5 // pred_check
      _
    $region26: #{bottleneck_pallas.4} parent=5 // pred_check_branch
      %145 = sbr.rel (%p142) target = $region28
    $region27: #{bottleneck_pallas.4} parent=5 // pred_region
      %s146 = ssub.s32 %s10, 1
      %s147 = smul.u32 32, %s15
      %p148 = scmp.lt.s32.totalorder %s147, 63
      %s149 = scalar_select %p148, %s147, 63
      %s150 = smul.addr %s149, 4
      %s151 = scalar_lea.vmem %s0, %s150
      %p152 = pneg %p36
      %p153 = pneg %p33
      %p154 = pneg %p57
      %p155 = pneg %p54
      %p156 = pneg %p83
      %p157 = pneg %p80
      %s158 = smul.u32 32, %s15
      %p159 = scmp.lt.s32.totalorder %s158, 63
      %s160 = scalar_select %p159, %s158, 63
      %s161 = smul.addr %s160, 4
      %s162 = scalar_lea.vmem %s2, %s161
      %p163 = pneg %p109
      %p164 = pneg %p106
      %p165 = scmp.lt.s32.totalorder %s15, 1
      %s166 = scalar_select %p165, %s15, 1
      %s167 = smul.addr %s166, 2
      %s168 = scalar_lea.vmem %s3, %s167
      %s169 = smul.u32 32, %s15
      %p170 = scmp.lt.s32.totalorder %s169, 63
      %s171 = scalar_select %p170, %s169, 63
      %s172 = smul.addr %s171, 4
      %s173 = scalar_lea.vmem %s0, %s172
      %s174 = smul.u32 32, %s15
      %s175 = smul.u32 32, %s15
      %p176 = scmp.lt.s32.totalorder %s175, 63
      %s177 = scalar_select %p176, %s175, 63
      %s178 = smul.addr %s177, 4
      %s179 = scalar_lea.vmem %s2, %s178
      %s180 = smul.u32 32, %s15
      %p181 = scmp.lt.s32.totalorder %s15, 1
      %s182 = scalar_select %p181, %s15, 1
      %s183 = smul.addr %s182, 2
      %s184 = scalar_lea.vmem %s3, %s183
      %v186 = vld [vmem:[%s173] sm:$0xf]
      %v187 = vld [vmem:[%s173 + $0x4] sm:$0xf]
      %v188 = vld [vmem:[%s173 + $0x8] sm:$0xf]
      %v189 = vld [vmem:[%s173 + $0xc] sm:$0xf]
      %v190 = vld [vmem:[%s173 + $0x10] sm:$0xf]
      %v191 = vld [vmem:[%s173 + $0x14] sm:$0xf]
      %v192 = vld [vmem:[%s173 + $0x18] sm:$0xf]
      %v193 = vld [vmem:[%s173 + $0x1c] sm:$0xf]
      %v194 = vld [vmem:[%s173 + $0x20] sm:$0xf]
      %v195 = vld [vmem:[%s173 + $0x24] sm:$0xf]
      %v196 = vld [vmem:[%s173 + $0x28] sm:$0xf]
      %v197 = vld [vmem:[%s173 + $0x2c] sm:$0xf]
      %v198 = vld [vmem:[%s173 + $0x30] sm:$0xf]
      %v199 = vld [vmem:[%s173 + $0x34] sm:$0xf]
      %v200 = vld [vmem:[%s173 + $0x38] sm:$0xf]
      %v201 = vld [vmem:[%s173 + $0x3c] sm:$0xf]
      %v202 = vld [vmem:[%s173 + $0x40] sm:$0xf]
      %v203 = vld [vmem:[%s173 + $0x44] sm:$0xf]
      %v204 = vld [vmem:[%s173 + $0x48] sm:$0xf]
      %v205 = vld [vmem:[%s173 + $0x4c] sm:$0xf]
      %v206 = vld [vmem:[%s173 + $0x50] sm:$0xf]
      %v207 = vld [vmem:[%s173 + $0x54] sm:$0xf]
      %v208 = vld [vmem:[%s173 + $0x58] sm:$0xf]
      %v209 = vld [vmem:[%s173 + $0x5c] sm:$0xf]
      %v210 = vld [vmem:[%s173 + $0x60] sm:$0xf]
      %v211 = vld [vmem:[%s173 + $0x64] sm:$0xf]
      %v212 = vld [vmem:[%s173 + $0x68] sm:$0xf]
      %v213 = vld [vmem:[%s173 + $0x6c] sm:$0xf]
      %v214 = vld [vmem:[%s173 + $0x70] sm:$0xf]
      %v215 = vld [vmem:[%s173 + $0x74] sm:$0xf]
      %v216 = vld [vmem:[%s173 + $0x78] sm:$0xf]
      %v217 = vld [vmem:[%s173 + $0x7c] sm:$0xf]
      %v218 = vld [vmem:[%s1] sm:$0xf]
      %v219 = vld [vmem:[%s1 + $0x4] sm:$0xf]
      %v252 = vunpack.c.l.b16 %v186
      %v253 = vunpack.c.l.b16 %v187
      %v254 = vunpack.c.l.b16 %v188
      %v255 = vunpack.c.l.b16 %v189
      %v256 = vunpack.c.l.b16 %v190
      %v257 = vunpack.c.l.b16 %v191
      %v258 = vunpack.c.l.b16 %v192
      %v259 = vunpack.c.l.b16 %v193
      %v260 = vunpack.c.l.b16 %v194
      %v261 = vunpack.c.l.b16 %v195
      %v262 = vunpack.c.l.b16 %v196
      %v263 = vunpack.c.l.b16 %v197
      %v264 = vunpack.c.l.b16 %v198
      %v265 = vunpack.c.l.b16 %v199
      %v266 = vunpack.c.l.b16 %v200
      %v267 = vunpack.c.l.b16 %v201
      %v268 = vunpack.c.l.b16 %v202
      %v269 = vunpack.c.l.b16 %v203
      %v270 = vunpack.c.l.b16 %v204
      %v271 = vunpack.c.l.b16 %v205
      %v272 = vunpack.c.l.b16 %v206
      %v273 = vunpack.c.l.b16 %v207
      %v274 = vunpack.c.l.b16 %v208
      %v275 = vunpack.c.l.b16 %v209
      %v276 = vunpack.c.l.b16 %v210
      %v277 = vunpack.c.l.b16 %v211
      %v278 = vunpack.c.l.b16 %v212
      %v279 = vunpack.c.l.b16 %v213
      %v280 = vunpack.c.l.b16 %v214
      %v281 = vunpack.c.l.b16 %v215
      %v282 = vunpack.c.l.b16 %v216
      %v283 = vunpack.c.l.b16 %v217
      %v284 = vpack.c.b16 %v253, %v252
      %v285 = vpack.c.b16 %v255, %v254
      %v286 = vpack.c.b16 %v257, %v256
      %v287 = vpack.c.b16 %v259, %v258
      %v288 = vpack.c.b16 %v261, %v260
      %v289 = vpack.c.b16 %v263, %v262
      %v290 = vpack.c.b16 %v265, %v264
      %v291 = vpack.c.b16 %v267, %v266
      %v292 = vpack.c.b16 %v269, %v268
      %v293 = vpack.c.b16 %v271, %v270
      %v294 = vpack.c.b16 %v273, %v272
      %v295 = vpack.c.b16 %v275, %v274
      %v296 = vpack.c.b16 %v277, %v276
      %v297 = vpack.c.b16 %v279, %v278
      %v298 = vpack.c.b16 %v281, %v280
      %v299 = vpack.c.b16 %v283, %v282
      %v302 = vunpack.c.l.b16 %v218
      %v303 = vunpack.c.l.b16 %v219
      %v304 = vpack.c.b16 %v303, %v302
      %vm306 = vcmask 130048
      %v308 = vsel %vm306, %v284, 0
      %v311 = vsel %vm306, %v285, 0
      %v314 = vsel %vm306, %v286, 0
      %v317 = vsel %vm306, %v287, 0
      %v320 = vsel %vm306, %v288, 0
      %v323 = vsel %vm306, %v289, 0
      %v326 = vsel %vm306, %v290, 0
      %v329 = vsel %vm306, %v291, 0
      %v332 = vsel %vm306, %v292, 0
      %v335 = vsel %vm306, %v293, 0
      %v338 = vsel %vm306, %v294, 0
      %v341 = vsel %vm306, %v295, 0
      %v344 = vsel %vm306, %v296, 0
      %v347 = vsel %vm306, %v297, 0
      %v350 = vsel %vm306, %v298, 0
      %v353 = vsel %vm306, %v299, 0
      %355 = vmatprep.subr.bf16.mxu0 0
      %356 = vmatpush1.bf16.msra.mxu0 %v304
      %357 = vmatprep.subr.bf16.mxu0 0
      %358 = vmatpush1.bf16.msra.mxu0 0
      %359 = vmatprep.subr.bf16.mxu0 0
      %360 = vmatpush1.bf16.msra.mxu0 0
      %361 = vmatprep.subr.bf16.mxu0 0
      %362 = vmatpush1.bf16.msra.mxu0 0
      %363 = vmatprep.subr.bf16.mxu0 0
      %364 = vmatpush1.bf16.msra.mxu0 0
      %365 = vmatprep.subr.bf16.mxu0 0
      %366 = vmatpush1.bf16.msra.mxu0 0
      %367 = vmatprep.subr.bf16.mxu0 0
      %368 = vmatpush1.bf16.msra.mxu0 0
      %369 = vmatprep.subr.bf16.mxu0 0
      %370 = vmatpush1.bf16.msra.mxu0 0
      %371 = vmatprep.subr.bf16.mxu0 0
      %372 = vmatpush1.bf16.msra.mxu0 0
      %373 = vmatprep.subr.bf16.mxu0 0
      %374 = vmatpush1.bf16.msra.mxu0 0
      %375 = vmatprep.subr.bf16.mxu0 0
      %376 = vmatpush1.bf16.msra.mxu0 0
      %377 = vmatprep.subr.bf16.mxu0 0
      %378 = vmatpush1.bf16.msra.mxu0 0
      %379 = vmatprep.subr.bf16.mxu0 0
      %380 = vmatpush1.bf16.msra.mxu0 0
      %381 = vmatprep.subr.bf16.mxu0 0
      %382 = vmatpush1.bf16.msra.mxu0 0
      %383 = vmatprep.subr.bf16.mxu0 0
      %384 = vmatpush1.bf16.msra.mxu0 0
      %385 = vmatprep.subr.bf16.mxu0 0
      %386 = vmatpush1.bf16.msra.mxu0 0
      %387 = vmatprep.mubr.bf16.mxu0 0
      %388 = vmatmul.mubr.bf16.gmra.mrb[0].mxu0 %v308
      %v389 = vpop.f32.mrb[0].mxu0
      %v390 = vadd.f32 0.0, %v389
      %v391 = vpop.f32.mrb[0].mxu0
      %v392 = vpop.f32.mrb[0].mxu0
      %v393 = vadd.f32 0.0, %v392
      %v394 = vpop.f32.mrb[0].mxu0
      %395 = vmatprep.mubr.bf16.mxu0 0
      %396 = vmatmul.mubr.bf16.gmra.mrb[0].mxu0 %v311
      %v397 = vpop.f32.mrb[0].mxu0
      %v398 = vadd.f32 0.0, %v397
      %v399 = vpop.f32.mrb[0].mxu0
      %v400 = vpop.f32.mrb[0].mxu0
      %v401 = vadd.f32 0.0, %v400
      %v402 = vpop.f32.mrb[0].mxu0
      %403 = vmatprep.mubr.bf16.mxu0 0
      %404 = vmatmul.mubr.bf16.gmra.mrb[0].mxu0 %v314
      %v405 = vpop.f32.mrb[0].mxu0
      %v406 = vadd.f32 0.0, %v405
      %v407 = vpop.f32.mrb[0].mxu0
      %v408 = vpop.f32.mrb[0].mxu0
      %v409 = vadd.f32 0.0, %v408
      %v410 = vpop.f32.mrb[0].mxu0
      %411 = vmatprep.mubr.bf16.mxu0 0
      %412 = vmatmul.mubr.bf16.gmra.mrb[0].mxu0 %v317
      %v413 = vpop.f32.mrb[0].mxu0
      %v414 = vadd.f32 0.0, %v413
      %v415 = vpop.f32.mrb[0].mxu0
      %v416 = vpop.f32.mrb[0].mxu0
      %v417 = vadd.f32 0.0, %v416
      %v418 = vpop.f32.mrb[0].mxu0
      %419 = vmatprep.mubr.bf16.mxu0 0
      %420 = vmatmul.mubr.bf16.gmra.mrb[0].mxu0 %v320
      %v421 = vpop.f32.mrb[0].mxu0
      %v422 = vadd.f32 0.0, %v421
      %v423 = vpop.f32.mrb[0].mxu0
      %v424 = vpop.f32.mrb[0].mxu0
      %v425 = vadd.f32 0.0, %v424
      %v426 = vpop.f32.mrb[0].mxu0
      %427 = vmatprep.mubr.bf16.mxu0 0
      %428 = vmatmul.mubr.bf16.gmra.mrb[0].mxu0 %v323
      %v429 = vpop.f32.mrb[0].mxu0
      %v430 = vadd.f32 0.0, %v429
      %v431 = vpop.f32.mrb[0].mxu0
      %v432 = vpop.f32.mrb[0].mxu0
      %v433 = vadd.f32 0.0, %v432
      %v434 = vpop.f32.mrb[0].mxu0
      %435 = vmatprep.mubr.bf16.mxu0 0
      %436 = vmatmul.mubr.bf16.gmra.mrb[0].mxu0 %v326
      %v437 = vpop.f32.mrb[0].mxu0
      %v438 = vadd.f32 0.0, %v437
      %v439 = vpop.f32.mrb[0].mxu0
      %v440 = vpop.f32.mrb[0].mxu0
      %v441 = vadd.f32 0.0, %v440
      %v442 = vpop.f32.mrb[0].mxu0
      %443 = vmatprep.mubr.bf16.mxu0 0
      %444 = vmatmul.mubr.bf16.gmra.mrb[0].mxu0 %v329
      %v445 = vpop.f32.mrb[0].mxu0
      %v446 = vadd.f32 0.0, %v445
      %v447 = vpop.f32.mrb[0].mxu0
      %v448 = vpop.f32.mrb[0].mxu0
      %v449 = vadd.f32 0.0, %v448
      %v450 = vpop.f32.mrb[0].mxu0
      %451 = vmatprep.mubr.bf16.mxu0 0
      %452 = vmatmul.mubr.bf16.gmra.mrb[0].mxu0 %v332
      %v453 = vpop.f32.mrb[0].mxu0
      %v454 = vadd.f32 0.0, %v453
      %v455 = vpop.f32.mrb[0].mxu0
      %v456 = vpop.f32.mrb[0].mxu0
      %v457 = vadd.f32 0.0, %v456
      %v458 = vpop.f32.mrb[0].mxu0
      %459 = vmatprep.mubr.bf16.mxu0 0
      %460 = vmatmul.mubr.bf16.gmra.mrb[0].mxu0 %v335
      %v461 = vpop.f32.mrb[0].mxu0
      %v462 = vadd.f32 0.0, %v461
      %v463 = vpop.f32.mrb[0].mxu0
      %v464 = vpop.f32.mrb[0].mxu0
      %v465 = vadd.f32 0.0, %v464
      %v466 = vpop.f32.mrb[0].mxu0
      %467 = vmatprep.mubr.bf16.mxu0 0
      %468 = vmatmul.mubr.bf16.gmra.mrb[0].mxu0 %v338
      %v469 = vpop.f32.mrb[0].mxu0
      %v470 = vadd.f32 0.0, %v469
      %v471 = vpop.f32.mrb[0].mxu0
      %v472 = vpop.f32.mrb[0].mxu0
      %v473 = vadd.f32 0.0, %v472
      %v474 = vpop.f32.mrb[0].mxu0
      %475 = vmatprep.mubr.bf16.mxu0 0
      %476 = vmatmul.mubr.bf16.gmra.mrb[0].mxu0 %v341
      %v477 = vpop.f32.mrb[0].mxu0
      %v478 = vadd.f32 0.0, %v477
      %v479 = vpop.f32.mrb[0].mxu0
      %v480 = vpop.f32.mrb[0].mxu0
      %v481 = vadd.f32 0.0, %v480
      %v482 = vpop.f32.mrb[0].mxu0
      %483 = vmatprep.mubr.bf16.mxu0 0
      %484 = vmatmul.mubr.bf16.gmra.mrb[0].mxu0 %v344
      %v485 = vpop.f32.mrb[0].mxu0
      %v486 = vadd.f32 0.0, %v485
      %v487 = vpop.f32.mrb[0].mxu0
      %v488 = vpop.f32.mrb[0].mxu0
      %v489 = vadd.f32 0.0, %v488
      %v490 = vpop.f32.mrb[0].mxu0
      %491 = vmatprep.mubr.bf16.mxu0 0
      %492 = vmatmul.mubr.bf16.gmra.mrb[0].mxu0 %v347
      %v493 = vpop.f32.mrb[0].mxu0
      %v494 = vadd.f32 0.0, %v493
      %v495 = vpop.f32.mrb[0].mxu0
      %v496 = vpop.f32.mrb[0].mxu0
      %v497 = vadd.f32 0.0, %v496
      %v498 = vpop.f32.mrb[0].mxu0
      %499 = vmatprep.mubr.bf16.mxu0 0
      %500 = vmatmul.mubr.bf16.gmra.mrb[0].mxu0 %v350
      %v501 = vpop.f32.mrb[0].mxu0
      %v502 = vadd.f32 0.0, %v501
      %v503 = vpop.f32.mrb[0].mxu0
      %v504 = vpop.f32.mrb[0].mxu0
      %v505 = vadd.f32 0.0, %v504
      %v506 = vpop.f32.mrb[0].mxu0
      %507 = vmatprep.mubr.bf16.mxu0 0
      %508 = vmatmul.mubr.bf16.gmra.mrb[0].mxu0 %v353
      %v509 = vpop.f32.mrb[0].mxu0
      %v510 = vadd.f32 0.0, %v509
      %v511 = vpop.f32.mrb[0].mxu0
      %v512 = vpop.f32.mrb[0].mxu0
      %v513 = vadd.f32 0.0, %v512
      %v514 = vpop.f32.mrb[0].mxu0
      %515 = vdwg.mxu0
      %v516 = vpack.c.bf16 %v393, %v390
      %v517 = vpack.c.bf16 %v401, %v398
      %v518 = vpack.c.bf16 %v409, %v406
      %v519 = vpack.c.bf16 %v417, %v414
      %v520 = vpack.c.bf16 %v425, %v422
      %v521 = vpack.c.bf16 %v433, %v430
      %v522 = vpack.c.bf16 %v441, %v438
      %v523 = vpack.c.bf16 %v449, %v446
      %v524 = vpack.c.bf16 %v457, %v454
      %v525 = vpack.c.bf16 %v465, %v462
      %v526 = vpack.c.bf16 %v473, %v470
      %v527 = vpack.c.bf16 %v481, %v478
      %v528 = vpack.c.bf16 %v489, %v486
      %v529 = vpack.c.bf16 %v497, %v494
      %v530 = vpack.c.bf16 %v505, %v502
      %v531 = vpack.c.bf16 %v513, %v510
      %v548 = vunpack.c.l.b16 %v516
      %v549 = vunpack.c.h.b16 %v516
      %v550 = vunpack.c.l.b16 %v517
      %v551 = vunpack.c.h.b16 %v517
      %v552 = vunpack.c.l.b16 %v518
      %v553 = vunpack.c.h.b16 %v518
      %v554 = vunpack.c.l.b16 %v519
      %v555 = vunpack.c.h.b16 %v519
      %v556 = vunpack.c.l.b16 %v520
      %v557 = vunpack.c.h.b16 %v520
      %v558 = vunpack.c.l.b16 %v521
      %v559 = vunpack.c.h.b16 %v521
      %v560 = vunpack.c.l.b16 %v522
      %v561 = vunpack.c.h.b16 %v522
      %v562 = vunpack.c.l.b16 %v523
      %v563 = vunpack.c.h.b16 %v523
      %v564 = vunpack.c.l.b16 %v524
      %v565 = vunpack.c.h.b16 %v524
      %v566 = vunpack.c.l.b16 %v525
      %v567 = vunpack.c.h.b16 %v525
      %v568 = vunpack.c.l.b16 %v526
      %v569 = vunpack.c.h.b16 %v526
      %v570 = vunpack.c.l.b16 %v527
      %v571 = vunpack.c.h.b16 %v527
      %v572 = vunpack.c.l.b16 %v528
      %v573 = vunpack.c.h.b16 %v528
      %v574 = vunpack.c.l.b16 %v529
      %v575 = vunpack.c.h.b16 %v529
      %v576 = vunpack.c.l.b16 %v530
      %v577 = vunpack.c.h.b16 %v530
      %v578 = vunpack.c.l.b16 %v531
      %v579 = vunpack.c.h.b16 %v531
      %v580 = vpack.c.b16 %v548, %v548
      %v581 = vpack.c.b16 %v549, %v549
      %v582 = vpack.c.b16 %v550, %v550
      %v583 = vpack.c.b16 %v551, %v551
      %v584 = vpack.c.b16 %v552, %v552
      %v585 = vpack.c.b16 %v553, %v553
      %v586 = vpack.c.b16 %v554, %v554
      %v587 = vpack.c.b16 %v555, %v555
      %v588 = vpack.c.b16 %v556, %v556
      %v589 = vpack.c.b16 %v557, %v557
      %v590 = vpack.c.b16 %v558, %v558
      %v591 = vpack.c.b16 %v559, %v559
      %v592 = vpack.c.b16 %v560, %v560
      %v593 = vpack.c.b16 %v561, %v561
      %v594 = vpack.c.b16 %v562, %v562
      %v595 = vpack.c.b16 %v563, %v563
      %v596 = vpack.c.b16 %v564, %v564
      %v597 = vpack.c.b16 %v565, %v565
      %v598 = vpack.c.b16 %v566, %v566
      %v599 = vpack.c.b16 %v567, %v567
      %v600 = vpack.c.b16 %v568, %v568
      %v601 = vpack.c.b16 %v569, %v569
      %v602 = vpack.c.b16 %v570, %v570
      %v603 = vpack.c.b16 %v571, %v571
      %v604 = vpack.c.b16 %v572, %v572
      %v605 = vpack.c.b16 %v573, %v573
      %v606 = vpack.c.b16 %v574, %v574
      %v607 = vpack.c.b16 %v575, %v575
      %v608 = vpack.c.b16 %v576, %v576
      %v609 = vpack.c.b16 %v577, %v577
      %v610 = vpack.c.b16 %v578, %v578
      %v611 = vpack.c.b16 %v579, %v579
      %vm644 = vcmask 27648
      %645 = vst.msk [vmem:[%s179] sm:$0xf] %vm644, %v580
      %646 = vst.msk [vmem:[%s179 + $0x4] sm:$0xf] %vm644, %v581
      %647 = vst.msk [vmem:[%s179 + $0x8] sm:$0xf] %vm644, %v582
      %648 = vst.msk [vmem:[%s179 + $0xc] sm:$0xf] %vm644, %v583
      %649 = vst.msk [vmem:[%s179 + $0x10] sm:$0xf] %vm644, %v584
      %650 = vst.msk [vmem:[%s179 + $0x14] sm:$0xf] %vm644, %v585
      %651 = vst.msk [vmem:[%s179 + $0x18] sm:$0xf] %vm644, %v586
      %652 = vst.msk [vmem:[%s179 + $0x1c] sm:$0xf] %vm644, %v587
      %653 = vst.msk [vmem:[%s179 + $0x20] sm:$0xf] %vm644, %v588
      %654 = vst.msk [vmem:[%s179 + $0x24] sm:$0xf] %vm644, %v589
      %655 = vst.msk [vmem:[%s179 + $0x28] sm:$0xf] %vm644, %v590
      %656 = vst.msk [vmem:[%s179 + $0x2c] sm:$0xf] %vm644, %v591
      %657 = vst.msk [vmem:[%s179 + $0x30] sm:$0xf] %vm644, %v592
      %658 = vst.msk [vmem:[%s179 + $0x34] sm:$0xf] %vm644, %v593
      %659 = vst.msk [vmem:[%s179 + $0x38] sm:$0xf] %vm644, %v594
      %660 = vst.msk [vmem:[%s179 + $0x3c] sm:$0xf] %vm644, %v595
      %661 = vst.msk [vmem:[%s179 + $0x40] sm:$0xf] %vm644, %v596
      %662 = vst.msk [vmem:[%s179 + $0x44] sm:$0xf] %vm644, %v597
      %663 = vst.msk [vmem:[%s179 + $0x48] sm:$0xf] %vm644, %v598
      %664 = vst.msk [vmem:[%s179 + $0x4c] sm:$0xf] %vm644, %v599
      %665 = vst.msk [vmem:[%s179 + $0x50] sm:$0xf] %vm644, %v600
      %666 = vst.msk [vmem:[%s179 + $0x54] sm:$0xf] %vm644, %v601
      %667 = vst.msk [vmem:[%s179 + $0x58] sm:$0xf] %vm644, %v602
      %668 = vst.msk [vmem:[%s179 + $0x5c] sm:$0xf] %vm644, %v603
      %669 = vst.msk [vmem:[%s179 + $0x60] sm:$0xf] %vm644, %v604
      %670 = vst.msk [vmem:[%s179 + $0x64] sm:$0xf] %vm644, %v605
      %671 = vst.msk [vmem:[%s179 + $0x68] sm:$0xf] %vm644, %v606
      %672 = vst.msk [vmem:[%s179 + $0x6c] sm:$0xf] %vm644, %v607
      %673 = vst.msk [vmem:[%s179 + $0x70] sm:$0xf] %vm644, %v608
      %674 = vst.msk [vmem:[%s179 + $0x74] sm:$0xf] %vm644, %v609
      %675 = vst.msk [vmem:[%s179 + $0x78] sm:$0xf] %vm644, %v610
      %676 = vst.msk [vmem:[%s179 + $0x7c] sm:$0xf] %vm644, %v611
      %vm677 = vcmask 31744
      %v678 = vsel %vm677, %v390, 0.0
      %v679 = vsel %vm677, %v393, 0.0
      %v680 = vadd.f32 %v678, %v679
      %v681 = vsel %vm677, %v398, 0.0
      %v682 = vadd.f32 %v680, %v681
      %v683 = vsel %vm677, %v401, 0.0
      %v684 = vadd.f32 %v682, %v683
      %v685 = vsel %vm677, %v406, 0.0
      %v686 = vadd.f32 %v684, %v685
      %v687 = vsel %vm677, %v409, 0.0
      %v688 = vadd.f32 %v686, %v687
      %v689 = vsel %vm677, %v414, 0.0
      %v690 = vadd.f32 %v688, %v689
      %v691 = vsel %vm677, %v417, 0.0
      %v692 = vadd.f32 %v690, %v691
      %v693 = vsel %vm677, %v422, 0.0
      %v694 = vadd.f32 %v692, %v693
      %v695 = vsel %vm677, %v425, 0.0
      %v696 = vadd.f32 %v694, %v695
      %v697 = vsel %vm677, %v430, 0.0
      %v698 = vadd.f32 %v696, %v697
      %v699 = vsel %vm677, %v433, 0.0
      %v700 = vadd.f32 %v698, %v699
      %v701 = vsel %vm677, %v438, 0.0
      %v702 = vadd.f32 %v700, %v701
      %v703 = vsel %vm677, %v441, 0.0
      %v704 = vadd.f32 %v702, %v703
      %v705 = vsel %vm677, %v446, 0.0
      %v706 = vadd.f32 %v704, %v705
      %v707 = vsel %vm677, %v449, 0.0
      %v708 = vadd.f32 %v706, %v707
      %v709 = vsel %vm677, %v454, 0.0
      %v710 = vadd.f32 %v708, %v709
      %v711 = vsel %vm677, %v457, 0.0
      %v712 = vadd.f32 %v710, %v711
      %v713 = vsel %vm677, %v462, 0.0
      %v714 = vadd.f32 %v712, %v713
      %v715 = vsel %vm677, %v465, 0.0
      %v716 = vadd.f32 %v714, %v715
      %v717 = vsel %vm677, %v470, 0.0
      %v718 = vadd.f32 %v716, %v717
      %v719 = vsel %vm677, %v473, 0.0
      %v720 = vadd.f32 %v718, %v719
      %v721 = vsel %vm677, %v478, 0.0
      %v722 = vadd.f32 %v720, %v721
      %v723 = vsel %vm677, %v481, 0.0
      %v724 = vadd.f32 %v722, %v723
      %v725 = vsel %vm677, %v486, 0.0
      %v726 = vadd.f32 %v724, %v725
      %v727 = vsel %vm677, %v489, 0.0
      %v728 = vadd.f32 %v726, %v727
      %v729 = vsel %vm677, %v494, 0.0
      %v730 = vadd.f32 %v728, %v729
      %v731 = vsel %vm677, %v497, 0.0
      %v732 = vadd.f32 %v730, %v731
      %v733 = vsel %vm677, %v502, 0.0
      %v734 = vadd.f32 %v732, %v733
      %v735 = vsel %vm677, %v505, 0.0
      %v736 = vadd.f32 %v734, %v735
      %v737 = vsel %vm677, %v510, 0.0
      %v738 = vadd.f32 %v736, %v737
      %v739 = vsel %vm677, %v513, 0.0
      %v740 = vadd.f32 %v738, %v739
      %v741 = vrot.slane %v740, 4
      %v742 = vadd.f32 %v740, %v741
      %v743 = vrot.slane %v742, 2
      %v744 = vadd.f32 %v742, %v743
      %v745 = vrot.slane %v744, 1
      %v746 = vadd.f32 %v744, %v745
      %v747 = vmul.f32 %v390, %v390
      %v748 = vmul.f32 %v393, %v393
      %v749 = vmul.f32 %v398, %v398
      %v750 = vmul.f32 %v401, %v401
      %v751 = vmul.f32 %v406, %v406
      %v752 = vmul.f32 %v409, %v409
      %v753 = vmul.f32 %v414, %v414
      %v754 = vmul.f32 %v417, %v417
      %v755 = vmul.f32 %v422, %v422
      %v756 = vmul.f32 %v425, %v425
      %v757 = vmul.f32 %v430, %v430
      %v758 = vmul.f32 %v433, %v433
      %v759 = vmul.f32 %v438, %v438
      %v760 = vmul.f32 %v441, %v441
      %v761 = vmul.f32 %v446, %v446
      %v762 = vmul.f32 %v449, %v449
      %v763 = vmul.f32 %v454, %v454
      %v764 = vmul.f32 %v457, %v457
      %v765 = vmul.f32 %v462, %v462
      %v766 = vmul.f32 %v465, %v465
      %v767 = vmul.f32 %v470, %v470
      %v768 = vmul.f32 %v473, %v473
      %v769 = vmul.f32 %v478, %v478
      %v770 = vmul.f32 %v481, %v481
      %v771 = vmul.f32 %v486, %v486
      %v772 = vmul.f32 %v489, %v489
      %v773 = vmul.f32 %v494, %v494
      %v774 = vmul.f32 %v497, %v497
      %v775 = vmul.f32 %v502, %v502
      %v776 = vmul.f32 %v505, %v505
      %v777 = vmul.f32 %v510, %v510
      %v778 = vmul.f32 %v513, %v513
      %v779 = vsel %vm677, %v747, 0.0
      %v780 = vsel %vm677, %v748, 0.0
      %v781 = vadd.f32 %v779, %v780
      %v782 = vsel %vm677, %v749, 0.0
      %v783 = vadd.f32 %v781, %v782
      %v784 = vsel %vm677, %v750, 0.0
      %v785 = vadd.f32 %v783, %v784
      %v786 = vsel %vm677, %v751, 0.0
      %v787 = vadd.f32 %v785, %v786
      %v788 = vsel %vm677, %v752, 0.0
      %v789 = vadd.f32 %v787, %v788
      %v790 = vsel %vm677, %v753, 0.0
      %v791 = vadd.f32 %v789, %v790
      %v792 = vsel %vm677, %v754, 0.0
      %v793 = vadd.f32 %v791, %v792
      %v794 = vsel %vm677, %v755, 0.0
      %v795 = vadd.f32 %v793, %v794
      %v796 = vsel %vm677, %v756, 0.0
      %v797 = vadd.f32 %v795, %v796
      %v798 = vsel %vm677, %v757, 0.0
      %v799 = vadd.f32 %v797, %v798
      %v800 = vsel %vm677, %v758, 0.0
      %v801 = vadd.f32 %v799, %v800
      %v802 = vsel %vm677, %v759, 0.0
      %v803 = vadd.f32 %v801, %v802
      %v804 = vsel %vm677, %v760, 0.0
      %v805 = vadd.f32 %v803, %v804
      %v806 = vsel %vm677, %v761, 0.0
      %v807 = vadd.f32 %v805, %v806
      %v808 = vsel %vm677, %v762, 0.0
      %v809 = vadd.f32 %v807, %v808
      %v810 = vsel %vm677, %v763, 0.0
      %v811 = vadd.f32 %v809, %v810
      %v812 = vsel %vm677, %v764, 0.0
      %v813 = vadd.f32 %v811, %v812
      %v814 = vsel %vm677, %v765, 0.0
      %v815 = vadd.f32 %v813, %v814
      %v816 = vsel %vm677, %v766, 0.0
      %v817 = vadd.f32 %v815, %v816
      %v818 = vsel %vm677, %v767, 0.0
      %v819 = vadd.f32 %v817, %v818
      %v820 = vsel %vm677, %v768, 0.0
      %v821 = vadd.f32 %v819, %v820
      %v822 = vsel %vm677, %v769, 0.0
      %v823 = vadd.f32 %v821, %v822
      %v824 = vsel %vm677, %v770, 0.0
      %v825 = vadd.f32 %v823, %v824
      %v826 = vsel %vm677, %v771, 0.0
      %v827 = vadd.f32 %v825, %v826
      %v828 = vsel %vm677, %v772, 0.0
      %v829 = vadd.f32 %v827, %v828
      %v830 = vsel %vm677, %v773, 0.0
      %v831 = vadd.f32 %v829, %v830
      %v832 = vsel %vm677, %v774, 0.0
      %v833 = vadd.f32 %v831, %v832
      %v834 = vsel %vm677, %v775, 0.0
      %v835 = vadd.f32 %v833, %v834
      %v836 = vsel %vm677, %v776, 0.0
      %v837 = vadd.f32 %v835, %v836
      %v838 = vsel %vm677, %v777, 0.0
      %v839 = vadd.f32 %v837, %v838
      %v840 = vsel %vm677, %v778, 0.0
      %v841 = vadd.f32 %v839, %v840
      %v842 = vrot.slane %v841, 4
      %v843 = vadd.f32 %v841, %v842
      %v844 = vrot.slane %v843, 2
      %v845 = vadd.f32 %v843, %v844
      %v846 = vrot.slane %v845, 1
      %v847 = vadd.f32 %v845, %v846
      %vm848 = vcmask 1040384
      %v849 = vsel %vm848, %v746, %v847
      %vm850 = vcmask 25600
      %851 = vst.msk [vmem:[%s184] sm:$0x3] %vm850, %v849
      %s852 = smul.u32 32, %s15
      %p853 = scmp.lt.s32.totalorder %s852, 63
      %s854 = scalar_select %p853, %s852, 63
      %s855 = smul.addr %s854, 4
      %s856 = scalar_lea.vmem %s2, %s855
      %p857 = scmp.lt.s32.totalorder %s15, 1
      %s858 = scalar_select %p857, %s15, 1
      %s859 = smul.addr %s858, 2
      %s860 = scalar_lea.vmem %s3, %s859
      // Predicated region
      $region29: #{bottleneck_pallas.4} parent=27 // pred_check
        %p861 = pneg %p80
      $region30: #{bottleneck_pallas.4} parent=27 // pred_check_branch
        %863 = sbr.rel (%p861) target = $region32
      $region31: #{bottleneck_pallas.4} parent=27 // pred_region
        %s864 = smul.u32 32, %s15
      $region32: #{bottleneck_pallas.4} parent=27 // pred_fallthru
        _
      // Predicated region
      $region33: #{bottleneck_pallas.4} parent=27 // pred_check
        %p865 = pneg %p106
      $region34: #{bottleneck_pallas.4} parent=27 // pred_check_branch
        %867 = sbr.rel (%p865) target = $region36
      $region35: #{bottleneck_pallas.4} parent=27 // pred_region
        _
      $region36: #{bottleneck_pallas.4} parent=27 // pred_fallthru
        _
    $region28: #{bottleneck_pallas.4} parent=5 // pred_fallthru
      _
    %p868 = scmp.le.s32.totalorder 2, %s10
    // Predicated region
    $region37: #{bottleneck_pallas.4} parent=5 // pred_check
      %p869 = pneg %p868
    $region38: #{bottleneck_pallas.4} parent=5 // pred_check_branch
      %871 = sbr.rel (%p869) target = $region40
    $region39: #{bottleneck_pallas.4} parent=5 // pred_region
      %s872 = ssub.s32 %s10, 2
      // Predicated region
      $region41: #{bottleneck_pallas.4} parent=39 // pred_check
        %p873 = pneg %p86
      $region42: #{bottleneck_pallas.4} parent=39 // pred_check_branch
        %875 = sbr.rel (%p873) target = $region44
      $region43: #{bottleneck_pallas.4} parent=39 // pred_region
        %s876 = smul.u32 32, %s16
        %p877 = scmp.lt.s32.totalorder %s876, 63
        %s878 = scalar_select %p877, %s876, 63
        %s879 = smul.addr %s878, 4
        %s880 = scalar_lea.vmem %s2, %s879
      $region44: #{bottleneck_pallas.4} parent=39 // pred_fallthru
        _
      // Predicated region
      $region45: #{bottleneck_pallas.4} parent=39 // pred_check
        %p881 = pneg %p112
      $region46: #{bottleneck_pallas.4} parent=39 // pred_check_branch
        %883 = sbr.rel (%p881) target = $region48
      $region47: #{bottleneck_pallas.4} parent=39 // pred_region
        %p884 = scmp.lt.s32.totalorder %s16, 1
        %s885 = scalar_select %p884, %s16, 1
        %s886 = smul.addr %s885, 2
        %s887 = scalar_lea.vmem %s3, %s886
      $region48: #{bottleneck_pallas.4} parent=39 // pred_fallthru
        _
    $region40: #{bottleneck_pallas.4} parent=5 // pred_fallthru
      _
  $region6: #{bottleneck_pallas.4} parent=0 // loop_footer
    %s14 = sadd.s32 1, %s10
  $region7: #{bottleneck_pallas.4} parent=0 // loop_footer_branch
    %9 = sbr.rel target = $region3
  $region8: #{bottleneck_pallas.4} parent=0 // loop_exit
    _

// kernel: bottleneck_pallas.6
$region0: #{bottleneck_pallas.6}
  #allocation0 [shape = 'u32[]', space=smem, size = 0x4, offset = 0x4, fixed_abs, tag = 'smem constant byte address 0x4 - core index']
  #allocation1 [shape = 'u32[144,128]{1,0:T(1,128)}', space=vmem, size = 0x12000, scoped, tag = 'internal scratch']
  %s0 = inlined_call_operand.vmem [shape: bf16[512,4], index: 0, kind: input, shape index: {}]
  %s1 = inlined_call_operand.vmem [shape: bf16[4,16], index: 1, kind: input, shape index: {}]
  %s2 = inlined_call_operand.vmem [shape: f32[1,4], index: 2, kind: input, shape index: {}]
  %s3 = inlined_call_operand.vmem [shape: f32[1,4], index: 3, kind: input, shape index: {}]
  %s4 = inlined_call_operand.vmem [shape: bf16[512,16], index: 4, kind: output, shape index: {0}]
  %s5 = inlined_call_operand.vmem [shape: f32[2,2,16], index: 5, kind: output, shape index: {1}]
  %6 = xla_tuple %s4, %s5
  %s7 = sld [smem:[#allocation0]]
  $region57: #{bottleneck_pallas.6} parent=0
    _
  %s9 = ssub.s32 1, %s7
  %s10 = scalar_select 0, %s9, %s7
  loop: start=0, step=1, limit=4
  $region2: #{bottleneck_pallas.6} parent=0 // loop_pre_header
    _
  $region3: #{bottleneck_pallas.6} parent=0 // loop_header
    %s12 = sphi 0, %s16
    %p13 = scmp.ge.s32.totalorder %s12, 4
    %s22 = sphi 0, %s24
    %s25 = sphi 0, %s22
    %s26 = sphi 0, %s25
    %s42 = sphi 0, %s26
    %s46 = sphi 0, %s46
    %s48 = sphi 0, %s46
    %s49 = sphi 0, %s48
    %s63 = sphi 0, %s49
    %s67 = sphi 0, %s67
    %s69 = sphi 0, %s67
    %s70 = sphi 0, %s69
    %s84 = sphi 0, %s70
    %s88 = sphi 0, %s88
    %s90 = sphi 0, %s88
    %s91 = sphi 0, %s90
    %s105 = sphi 0, %s91
    %s111 = sphi 0, %s113
    %s114 = sphi 0, %s111
    %s115 = sphi 0, %s114
    %s131 = sphi 0, %s115
    %s137 = sphi 0, %s139
    %s140 = sphi 0, %s137
    %s141 = sphi 0, %s140
    %s157 = sphi 0, %s141
  $region4: #{bottleneck_pallas.6} parent=0 // loop_header_branch
    %15 = sbr.rel (%p13) target = $region8
  $region5: #{bottleneck_pallas.6} parent=0 // loop_body
    %s17 = ssub.s32 %s12, 1
    %s18 = ssub.s32 %s12, 2
    %s19 = sadd.s32 %s12, 1
    %s20 = ssub.s32 %s12, %s19
    %p21 = scmp.eq.s32.totalorder %s20, 0
    %s23 = sadd.s32 %s22, 1
    %s24 = scalar_select %p21, %s22, %s23
    %p27 = pneg %p21
    %p28 = scmp.eq.s32.totalorder %s12, 1
    %p29 = por %p27, %p28
    %p30 = scmp.ne.s32.totalorder %s22, %s25
    %p31 = scmp.eq.s32.totalorder %s12, 0
    %p32 = por %p30, %p31
    %p33 = scmp.ne.s32.totalorder %s22, %s25
    %p34 = scmp.eq.s32.totalorder %s17, 1
    %p35 = por %p33, %p34
    %p36 = scmp.ne.s32.totalorder %s25, %s26
    %p37 = scmp.eq.s32.totalorder %s17, 0
    %p38 = por %p36, %p37
    %p39 = scmp.ne.s32.totalorder %s25, %s26
    %p40 = scmp.eq.s32.totalorder %s18, 1
    %p41 = por %p39, %p40
    %p43 = scmp.ne.s32.totalorder %s26, %s42
    %p44 = scmp.eq.s32.totalorder %s18, 0
    %p45 = por %p43, %p44
    %s47 = sadd.s32 %s46, 1
    %p50 = scmp.eq.s32.totalorder %s12, 1
    %p51 = scmp.ne.s32.totalorder %s46, %s48
    %p52 = scmp.eq.s32.totalorder %s12, 0
    %p53 = por %p51, %p52
    %p54 = scmp.ne.s32.totalorder %s46, %s48
    %p55 = scmp.eq.s32.totalorder %s17, 1
    %p56 = por %p54, %p55
    %p57 = scmp.ne.s32.totalorder %s48, %s49
    %p58 = scmp.eq.s32.totalorder %s17, 0
    %p59 = por %p57, %p58
    %p60 = scmp.ne.s32.totalorder %s48, %s49
    %p61 = scmp.eq.s32.totalorder %s18, 1
    %p62 = por %p60, %p61
    %p64 = scmp.ne.s32.totalorder %s49, %s63
    %p65 = scmp.eq.s32.totalorder %s18, 0
    %p66 = por %p64, %p65
    %s68 = sadd.s32 %s67, 1
    %p71 = scmp.eq.s32.totalorder %s12, 1
    %p72 = scmp.ne.s32.totalorder %s67, %s69
    %p73 = scmp.eq.s32.totalorder %s12, 0
    %p74 = por %p72, %p73
    %p75 = scmp.ne.s32.totalorder %s67, %s69
    %p76 = scmp.eq.s32.totalorder %s17, 1
    %p77 = por %p75, %p76
    %p78 = scmp.ne.s32.totalorder %s69, %s70
    %p79 = scmp.eq.s32.totalorder %s17, 0
    %p80 = por %p78, %p79
    %p81 = scmp.ne.s32.totalorder %s69, %s70
    %p82 = scmp.eq.s32.totalorder %s18, 1
    %p83 = por %p81, %p82
    %p85 = scmp.ne.s32.totalorder %s70, %s84
    %p86 = scmp.eq.s32.totalorder %s18, 0
    %p87 = por %p85, %p86
    %s89 = sadd.s32 %s88, 1
    %p92 = scmp.eq.s32.totalorder %s12, 1
    %p93 = scmp.ne.s32.totalorder %s88, %s90
    %p94 = scmp.eq.s32.totalorder %s12, 0
    %p95 = por %p93, %p94
    %p96 = scmp.ne.s32.totalorder %s88, %s90
    %p97 = scmp.eq.s32.totalorder %s17, 1
    %p98 = por %p96, %p97
    %p99 = scmp.ne.s32.totalorder %s90, %s91
    %p100 = scmp.eq.s32.totalorder %s17, 0
    %p101 = por %p99, %p100
    %p102 = scmp.ne.s32.totalorder %s90, %s91
    %p103 = scmp.eq.s32.totalorder %s18, 1
    %p104 = por %p102, %p103
    %p106 = scmp.ne.s32.totalorder %s91, %s105
    %p107 = scmp.eq.s32.totalorder %s18, 0
    %p108 = por %p106, %p107
    %s109 = ssub.s32 %s12, %s19
    %p110 = scmp.eq.s32.totalorder %s109, 0
    %s112 = sadd.s32 %s111, 1
    %s113 = scalar_select %p110, %s111, %s112
    %p116 = pneg %p110
    %p117 = scmp.eq.s32.totalorder %s12, 1
    %p118 = por %p116, %p117
    %p119 = scmp.ne.s32.totalorder %s111, %s114
    %p120 = scmp.eq.s32.totalorder %s12, 0
    %p121 = por %p119, %p120
    %p122 = scmp.ne.s32.totalorder %s111, %s114
    %p123 = scmp.eq.s32.totalorder %s17, 1
    %p124 = por %p122, %p123
    %p125 = scmp.ne.s32.totalorder %s114, %s115
    %p126 = scmp.eq.s32.totalorder %s17, 0
    %p127 = por %p125, %p126
    %p128 = scmp.ne.s32.totalorder %s114, %s115
    %p129 = scmp.eq.s32.totalorder %s18, 1
    %p130 = por %p128, %p129
    %p132 = scmp.ne.s32.totalorder %s115, %s131
    %p133 = scmp.eq.s32.totalorder %s18, 0
    %p134 = por %p132, %p133
    %s135 = ssub.s32 %s12, %s19
    %p136 = scmp.eq.s32.totalorder %s135, 0
    %s138 = sadd.s32 %s137, 1
    %s139 = scalar_select %p136, %s137, %s138
    %p142 = pneg %p136
    %p143 = scmp.eq.s32.totalorder %s12, 1
    %p144 = por %p142, %p143
    %p145 = scmp.ne.s32.totalorder %s137, %s140
    %p146 = scmp.eq.s32.totalorder %s12, 0
    %p147 = por %p145, %p146
    %p148 = scmp.ne.s32.totalorder %s137, %s140
    %p149 = scmp.eq.s32.totalorder %s17, 1
    %p150 = por %p148, %p149
    %p151 = scmp.ne.s32.totalorder %s140, %s141
    %p152 = scmp.eq.s32.totalorder %s17, 0
    %p153 = por %p151, %p152
    %p154 = scmp.ne.s32.totalorder %s140, %s141
    %p155 = scmp.eq.s32.totalorder %s18, 1
    %p156 = por %p154, %p155
    %p158 = scmp.ne.s32.totalorder %s141, %s157
    %p159 = scmp.eq.s32.totalorder %s18, 0
    %p160 = por %p158, %p159
    %p161 = scmp.le.s32.totalorder 1, %s12
    %p162 = scmp.lt.s32.totalorder %s12, 3
    %p163 = pnand %p161, %p162
    %p164 = pneg %p163
    // Predicated region
    $region9: #{bottleneck_pallas.6} parent=5 // pred_check
      _
    $region10: #{bottleneck_pallas.6} parent=5 // pred_check_branch
      %166 = sbr.rel (%p163) target = $region12
    $region11: #{bottleneck_pallas.6} parent=5 // pred_region
      %s167 = ssub.s32 %s12, 1
      // Predicated region
      $region13: #{bottleneck_pallas.6} parent=11 // pred_check
        %p168 = pneg %p59
      $region14: #{bottleneck_pallas.6} parent=11 // pred_check_branch
        %170 = sbr.rel (%p168) target = $region16
      $region15: #{bottleneck_pallas.6} parent=11 // pred_region
        _
      $region16: #{bottleneck_pallas.6} parent=11 // pred_fallthru
        _
      // Predicated region
      $region17: #{bottleneck_pallas.6} parent=11 // pred_check
        %p171 = pneg %p80
      $region18: #{bottleneck_pallas.6} parent=11 // pred_check_branch
        %173 = sbr.rel (%p171) target = $region20
      $region19: #{bottleneck_pallas.6} parent=11 // pred_region
        _
      $region20: #{bottleneck_pallas.6} parent=11 // pred_fallthru
        _
      // Predicated region
      $region21: #{bottleneck_pallas.6} parent=11 // pred_check
        %p174 = pneg %p101
      $region22: #{bottleneck_pallas.6} parent=11 // pred_check_branch
        %176 = sbr.rel (%p174) target = $region24
      $region23: #{bottleneck_pallas.6} parent=11 // pred_region
        _
      $region24: #{bottleneck_pallas.6} parent=11 // pred_fallthru
        _
    $region12: #{bottleneck_pallas.6} parent=5 // pred_fallthru
      _
    %p177 = scmp.lt.s32.totalorder %s12, 2
    // Predicated region
    $region25: #{bottleneck_pallas.6} parent=5 // pred_check
      %p178 = pneg %p177
    $region26: #{bottleneck_pallas.6} parent=5 // pred_check_branch
      %180 = sbr.rel (%p178) target = $region28
    $region27: #{bottleneck_pallas.6} parent=5 // pred_region
      // Predicated region
      $region29: #{bottleneck_pallas.6} parent=27 // pred_check
        %p181 = pneg %p32
      $region30: #{bottleneck_pallas.6} parent=27 // pred_check_branch
        %183 = sbr.rel (%p181) target = $region32
      $region31: #{bottleneck_pallas.6} parent=27 // pred_region
        %s184 = smul.u32 32, %s12
        %p185 = scmp.lt.s32.totalorder %s184, 63
        %s186 = scalar_select %p185, %s184, 63
        %s187 = smul.addr %s186, 4
        %s188 = scalar_lea.vmem %s0, %s187
        %s189 = smul.u32 32, %s12
      $region32: #{bottleneck_pallas.6} parent=27 // pred_fallthru
        _
    $region28: #{bottleneck_pallas.6} parent=5 // pred_fallthru
      _
    %p190 = scmp.le.s32.totalorder 1, %s12
    %p191 = scmp.lt.s32.totalorder %s12, 3
    %p192 = pnand %p190, %p191
    %p193 = pneg %p192
    // Predicated region
    $region33: #{bottleneck_pallas.6} parent=5 // pred_check
      _
    $region34: #{bottleneck_pallas.6} parent=5 // pred_check_branch
      %195 = sbr.rel (%p192) target = $region36
    $region35: #{bottleneck_pallas.6} parent=5 // pred_region
      %s196 = ssub.s32 %s12, 1
      %s197 = smul.u32 32, %s17
      %p198 = scmp.lt.s32.totalorder %s197, 63
      %s199 = scalar_select %p198, %s197, 63
      %s200 = smul.addr %s199, 4
      %s201 = scalar_lea.vmem %s0, %s200
      %p202 = pneg %p38
      %p203 = pneg %p35
      %p204 = pneg %p59
      %p205 = pneg %p56
      %p206 = pneg %p80
      %p207 = pneg %p77
      %p208 = pneg %p101
      %p209 = pneg %p98
      %p210 = pneg %p127
      %p211 = pneg %p124
      %s212 = smul.u32 32, %s17
      %p213 = scmp.lt.s32.totalorder %s212, 63
      %s214 = scalar_select %p213, %s212, 63
      %s215 = smul.addr %s214, 4
      %s216 = scalar_lea.vmem %s4, %s215
      %p217 = pneg %p153
      %p218 = pneg %p150
      %p219 = scmp.lt.s32.totalorder %s17, 1
      %s220 = scalar_select %p219, %s17, 1
      %s221 = smul.addr %s220, 2
      %s222 = scalar_lea.vmem %s5, %s221
      %s223 = smul.u32 32, %s17
      %p224 = scmp.lt.s32.totalorder %s223, 63
      %s225 = scalar_select %p224, %s223, 63
      %s226 = smul.addr %s225, 4
      %s227 = scalar_lea.vmem %s0, %s226
      %s228 = smul.u32 32, %s17
      %s229 = smul.u32 32, %s17
      %p230 = scmp.lt.s32.totalorder %s229, 63
      %s231 = scalar_select %p230, %s229, 63
      %s232 = smul.addr %s231, 4
      %s233 = scalar_lea.vmem %s4, %s232
      %s234 = smul.u32 32, %s17
      %p235 = scmp.lt.s32.totalorder %s17, 1
      %s236 = scalar_select %p235, %s17, 1
      %s237 = smul.addr %s236, 2
      %s238 = scalar_lea.vmem %s5, %s237
      %v240 = vld [vmem:[%s227] sm:$0xf]
      %v241 = vld [vmem:[%s227 + $0x4] sm:$0xf]
      %v242 = vld [vmem:[%s227 + $0x8] sm:$0xf]
      %v243 = vld [vmem:[%s227 + $0xc] sm:$0xf]
      %v244 = vld [vmem:[%s227 + $0x10] sm:$0xf]
      %v245 = vld [vmem:[%s227 + $0x14] sm:$0xf]
      %v246 = vld [vmem:[%s227 + $0x18] sm:$0xf]
      %v247 = vld [vmem:[%s227 + $0x1c] sm:$0xf]
      %v248 = vld [vmem:[%s227 + $0x20] sm:$0xf]
      %v249 = vld [vmem:[%s227 + $0x24] sm:$0xf]
      %v250 = vld [vmem:[%s227 + $0x28] sm:$0xf]
      %v251 = vld [vmem:[%s227 + $0x2c] sm:$0xf]
      %v252 = vld [vmem:[%s227 + $0x30] sm:$0xf]
      %v253 = vld [vmem:[%s227 + $0x34] sm:$0xf]
      %v254 = vld [vmem:[%s227 + $0x38] sm:$0xf]
      %v255 = vld [vmem:[%s227 + $0x3c] sm:$0xf]
      %v256 = vld [vmem:[%s227 + $0x40] sm:$0xf]
      %v257 = vld [vmem:[%s227 + $0x44] sm:$0xf]
      %v258 = vld [vmem:[%s227 + $0x48] sm:$0xf]
      %v259 = vld [vmem:[%s227 + $0x4c] sm:$0xf]
      %v260 = vld [vmem:[%s227 + $0x50] sm:$0xf]
      %v261 = vld [vmem:[%s227 + $0x54] sm:$0xf]
      %v262 = vld [vmem:[%s227 + $0x58] sm:$0xf]
      %v263 = vld [vmem:[%s227 + $0x5c] sm:$0xf]
      %v264 = vld [vmem:[%s227 + $0x60] sm:$0xf]
      %v265 = vld [vmem:[%s227 + $0x64] sm:$0xf]
      %v266 = vld [vmem:[%s227 + $0x68] sm:$0xf]
      %v267 = vld [vmem:[%s227 + $0x6c] sm:$0xf]
      %v268 = vld [vmem:[%s227 + $0x70] sm:$0xf]
      %v269 = vld [vmem:[%s227 + $0x74] sm:$0xf]
      %v270 = vld [vmem:[%s227 + $0x78] sm:$0xf]
      %v271 = vld [vmem:[%s227 + $0x7c] sm:$0xf]
      %v272 = vunpack.c.l.bf16 %v240
      %v273 = vunpack.c.l.bf16 %v241
      %v274 = vunpack.c.l.bf16 %v242
      %v275 = vunpack.c.l.bf16 %v243
      %v276 = vunpack.c.l.bf16 %v244
      %v277 = vunpack.c.l.bf16 %v245
      %v278 = vunpack.c.l.bf16 %v246
      %v279 = vunpack.c.l.bf16 %v247
      %v280 = vunpack.c.l.bf16 %v248
      %v281 = vunpack.c.l.bf16 %v249
      %v282 = vunpack.c.l.bf16 %v250
      %v283 = vunpack.c.l.bf16 %v251
      %v284 = vunpack.c.l.bf16 %v252
      %v285 = vunpack.c.l.bf16 %v253
      %v286 = vunpack.c.l.bf16 %v254
      %v287 = vunpack.c.l.bf16 %v255
      %v288 = vunpack.c.l.bf16 %v256
      %v289 = vunpack.c.l.bf16 %v257
      %v290 = vunpack.c.l.bf16 %v258
      %v291 = vunpack.c.l.bf16 %v259
      %v292 = vunpack.c.l.bf16 %v260
      %v293 = vunpack.c.l.bf16 %v261
      %v294 = vunpack.c.l.bf16 %v262
      %v295 = vunpack.c.l.bf16 %v263
      %v296 = vunpack.c.l.bf16 %v264
      %v297 = vunpack.c.l.bf16 %v265
      %v298 = vunpack.c.l.bf16 %v266
      %v299 = vunpack.c.l.bf16 %v267
      %v300 = vunpack.c.l.bf16 %v268
      %v301 = vunpack.c.l.bf16 %v269
      %v302 = vunpack.c.l.bf16 %v270
      %v303 = vunpack.c.l.bf16 %v271
      %v304 = vld [vmem:[%s2] sm:$0x1]
      %v306 = vlaneseq
      %v307 = vshrl.u32 %v306, 7
      %v308 = vsub.s32 0, %v307
      %v309 = vrot.slane %v304, %v308
      %v311 = vmul.f32 %v272, %v309
      %v312 = vmul.f32 %v273, %v309
      %v313 = vmul.f32 %v274, %v309
      %v314 = vmul.f32 %v275, %v309
      %v315 = vmul.f32 %v276, %v309
      %v316 = vmul.f32 %v277, %v309
      %v317 = vmul.f32 %v278, %v309
      %v318 = vmul.f32 %v279, %v309
      %v319 = vmul.f32 %v280, %v309
      %v320 = vmul.f32 %v281, %v309
      %v321 = vmul.f32 %v282, %v309
      %v322 = vmul.f32 %v283, %v309
      %v323 = vmul.f32 %v284, %v309
      %v324 = vmul.f32 %v285, %v309
      %v325 = vmul.f32 %v286, %v309
      %v326 = vmul.f32 %v287, %v309
      %v327 = vmul.f32 %v288, %v309
      %v328 = vmul.f32 %v289, %v309
      %v329 = vmul.f32 %v290, %v309
      %v330 = vmul.f32 %v291, %v309
      %v331 = vmul.f32 %v292, %v309
      %v332 = vmul.f32 %v293, %v309
      %v333 = vmul.f32 %v294, %v309
      %v334 = vmul.f32 %v295, %v309
      %v335 = vmul.f32 %v296, %v309
      %v336 = vmul.f32 %v297, %v309
      %v337 = vmul.f32 %v298, %v309
      %v338 = vmul.f32 %v299, %v309
      %v339 = vmul.f32 %v300, %v309
      %v340 = vmul.f32 %v301, %v309
      %v341 = vmul.f32 %v302, %v309
      %v342 = vmul.f32 %v303, %v309
      %v343 = vld [vmem:[%s3] sm:$0x1]
      %v345 = vlaneseq
      %v346 = vshrl.u32 %v345, 7
      %v347 = vsub.s32 0, %v346
      %v348 = vrot.slane %v343, %v347
      %v350 = vadd.f32 %v311, %v348
      %v351 = vadd.f32 %v312, %v348
      %v352 = vadd.f32 %v313, %v348
      %v353 = vadd.f32 %v314, %v348
      %v354 = vadd.f32 %v315, %v348
      %v355 = vadd.f32 %v316, %v348
      %v356 = vadd.f32 %v317, %v348
      %v357 = vadd.f32 %v318, %v348
      %v358 = vadd.f32 %v319, %v348
      %v359 = vadd.f32 %v320, %v348
      %v360 = vadd.f32 %v321, %v348
      %v361 = vadd.f32 %v322, %v348
      %v362 = vadd.f32 %v323, %v348
      %v363 = vadd.f32 %v324, %v348
      %v364 = vadd.f32 %v325, %v348
      %v365 = vadd.f32 %v326, %v348
      %v366 = vadd.f32 %v327, %v348
      %v367 = vadd.f32 %v328, %v348
      %v368 = vadd.f32 %v329, %v348
      %v369 = vadd.f32 %v330, %v348
      %v370 = vadd.f32 %v331, %v348
      %v371 = vadd.f32 %v332, %v348
      %v372 = vadd.f32 %v333, %v348
      %v373 = vadd.f32 %v334, %v348
      %v374 = vadd.f32 %v335, %v348
      %v375 = vadd.f32 %v336, %v348
      %v376 = vadd.f32 %v337, %v348
      %v377 = vadd.f32 %v338, %v348
      %v378 = vadd.f32 %v339, %v348
      %v379 = vadd.f32 %v340, %v348
      %v380 = vadd.f32 %v341, %v348
      %v381 = vadd.f32 %v342, %v348
      %v382 = vmax.f32 %v350, 0.0
      %v383 = vmax.f32 %v351, 0.0
      %v384 = vmax.f32 %v352, 0.0
      %v385 = vmax.f32 %v353, 0.0
      %v386 = vmax.f32 %v354, 0.0
      %v387 = vmax.f32 %v355, 0.0
      %v388 = vmax.f32 %v356, 0.0
      %v389 = vmax.f32 %v357, 0.0
      %v390 = vmax.f32 %v358, 0.0
      %v391 = vmax.f32 %v359, 0.0
      %v392 = vmax.f32 %v360, 0.0
      %v393 = vmax.f32 %v361, 0.0
      %v394 = vmax.f32 %v362, 0.0
      %v395 = vmax.f32 %v363, 0.0
      %v396 = vmax.f32 %v364, 0.0
      %v397 = vmax.f32 %v365, 0.0
      %v398 = vmax.f32 %v366, 0.0
      %v399 = vmax.f32 %v367, 0.0
      %v400 = vmax.f32 %v368, 0.0
      %v401 = vmax.f32 %v369, 0.0
      %v402 = vmax.f32 %v370, 0.0
      %v403 = vmax.f32 %v371, 0.0
      %v404 = vmax.f32 %v372, 0.0
      %v405 = vmax.f32 %v373, 0.0
      %v406 = vmax.f32 %v374, 0.0
      %v407 = vmax.f32 %v375, 0.0
      %v408 = vmax.f32 %v376, 0.0
      %v409 = vmax.f32 %v377, 0.0
      %v410 = vmax.f32 %v378, 0.0
      %v411 = vmax.f32 %v379, 0.0
      %v412 = vmax.f32 %v380, 0.0
      %v413 = vmax.f32 %v381, 0.0
      %v414 = vpack.c.bf16 %v383, %v382
      %v415 = vpack.c.bf16 %v385, %v384
      %v416 = vpack.c.bf16 %v387, %v386
      %v417 = vpack.c.bf16 %v389, %v388
      %v418 = vpack.c.bf16 %v391, %v390
      %v419 = vpack.c.bf16 %v393, %v392
      %v420 = vpack.c.bf16 %v395, %v394
      %v421 = vpack.c.bf16 %v397, %v396
      %v422 = vpack.c.bf16 %v399, %v398
      %v423 = vpack.c.bf16 %v401, %v400
      %v424 = vpack.c.bf16 %v403, %v402
      %v425 = vpack.c.bf16 %v405, %v404
      %v426 = vpack.c.bf16 %v407, %v406
      %v427 = vpack.c.bf16 %v409, %v408
      %v428 = vpack.c.bf16 %v411, %v410
      %v429 = vpack.c.bf16 %v413, %v412
      %v430 = vld [vmem:[%s1] sm:$0x3]
      %vm431 = vcmask 31744
      %v433 = vsel %vm431, %v414, 0
      %v436 = vsel %vm431, %v415, 0
      %v439 = vsel %vm431, %v416, 0
      %v442 = vsel %vm431, %v417, 0
      %v445 = vsel %vm431, %v418, 0
      %v448 = vsel %vm431, %v419, 0
      %v451 = vsel %vm431, %v420, 0
      %v454 = vsel %vm431, %v421, 0
      %v457 = vsel %vm431, %v422, 0
      %v460 = vsel %vm431, %v423, 0
      %v463 = vsel %vm431, %v424, 0
      %v466 = vsel %vm431, %v425, 0
      %v469 = vsel %vm431, %v426, 0
      %v472 = vsel %vm431, %v427, 0
      %v475 = vsel %vm431, %v428, 0
      %v478 = vsel %vm431, %v429, 0
      %vm480 = vcmask 1041408
      %v482 = vsel %vm480, %v430, 0
      %484 = vmatprep.subr.bf16.mxu0 0
      %485 = vmatpush1.bf16.msra.mxu0 %v482
      %486 = vmatprep.subr.bf16.mxu0 0
      %487 = vmatpush1.bf16.msra.mxu0 0
      %488 = vmatprep.subr.bf16.mxu0 0
      %489 = vmatpush1.bf16.msra.mxu0 0
      %490 = vmatprep.subr.bf16.mxu0 0
      %491 = vmatpush1.bf16.msra.mxu0 0
      %492 = vmatprep.subr.bf16.mxu0 0
      %493 = vmatpush1.bf16.msra.mxu0 0
      %494 = vmatprep.subr.bf16.mxu0 0
      %495 = vmatpush1.bf16.msra.mxu0 0
      %496 = vmatprep.subr.bf16.mxu0 0
      %497 = vmatpush1.bf16.msra.mxu0 0
      %498 = vmatprep.subr.bf16.mxu0 0
      %499 = vmatpush1.bf16.msra.mxu0 0
      %500 = vmatprep.subr.bf16.mxu0 0
      %501 = vmatpush1.bf16.msra.mxu0 0
      %502 = vmatprep.subr.bf16.mxu0 0
      %503 = vmatpush1.bf16.msra.mxu0 0
      %504 = vmatprep.subr.bf16.mxu0 0
      %505 = vmatpush1.bf16.msra.mxu0 0
      %506 = vmatprep.subr.bf16.mxu0 0
      %507 = vmatpush1.bf16.msra.mxu0 0
      %508 = vmatprep.subr.bf16.mxu0 0
      %509 = vmatpush1.bf16.msra.mxu0 0
      %510 = vmatprep.subr.bf16.mxu0 0
      %511 = vmatpush1.bf16.msra.mxu0 0
      %512 = vmatprep.subr.bf16.mxu0 0
      %513 = vmatpush1.bf16.msra.mxu0 0
      %514 = vmatprep.subr.bf16.mxu0 0
      %515 = vmatpush1.bf16.msra.mxu0 0
      %516 = vmatprep.mubr.bf16.mxu0 0
      %517 = vmatmul.mubr.bf16.gmra.mrb[0].mxu0 %v433
      %v518 = vpop.f32.mrb[0].mxu0
      %v519 = vadd.f32 0.0, %v518
      %v520 = vpop.f32.mrb[0].mxu0
      %v521 = vpop.f32.mrb[0].mxu0
      %v522 = vadd.f32 0.0, %v521
      %v523 = vpop.f32.mrb[0].mxu0
      %524 = vmatprep.mubr.bf16.mxu0 0
      %525 = vmatmul.mubr.bf16.gmra.mrb[0].mxu0 %v436
      %v526 = vpop.f32.mrb[0].mxu0
      %v527 = vadd.f32 0.0, %v526
      %v528 = vpop.f32.mrb[0].mxu0
      %v529 = vpop.f32.mrb[0].mxu0
      %v530 = vadd.f32 0.0, %v529
      %v531 = vpop.f32.mrb[0].mxu0
      %532 = vmatprep.mubr.bf16.mxu0 0
      %533 = vmatmul.mubr.bf16.gmra.mrb[0].mxu0 %v439
      %v534 = vpop.f32.mrb[0].mxu0
      %v535 = vadd.f32 0.0, %v534
      %v536 = vpop.f32.mrb[0].mxu0
      %v537 = vpop.f32.mrb[0].mxu0
      %v538 = vadd.f32 0.0, %v537
      %v539 = vpop.f32.mrb[0].mxu0
      %540 = vmatprep.mubr.bf16.mxu0 0
      %541 = vmatmul.mubr.bf16.gmra.mrb[0].mxu0 %v442
      %v542 = vpop.f32.mrb[0].mxu0
      %v543 = vadd.f32 0.0, %v542
      %v544 = vpop.f32.mrb[0].mxu0
      %v545 = vpop.f32.mrb[0].mxu0
      %v546 = vadd.f32 0.0, %v545
      %v547 = vpop.f32.mrb[0].mxu0
      %548 = vmatprep.mubr.bf16.mxu0 0
      %549 = vmatmul.mubr.bf16.gmra.mrb[0].mxu0 %v445
      %v550 = vpop.f32.mrb[0].mxu0
      %v551 = vadd.f32 0.0, %v550
      %v552 = vpop.f32.mrb[0].mxu0
      %v553 = vpop.f32.mrb[0].mxu0
      %v554 = vadd.f32 0.0, %v553
      %v555 = vpop.f32.mrb[0].mxu0
      %556 = vmatprep.mubr.bf16.mxu0 0
      %557 = vmatmul.mubr.bf16.gmra.mrb[0].mxu0 %v448
      %v558 = vpop.f32.mrb[0].mxu0
      %v559 = vadd.f32 0.0, %v558
      %v560 = vpop.f32.mrb[0].mxu0
      %v561 = vpop.f32.mrb[0].mxu0
      %v562 = vadd.f32 0.0, %v561
      %v563 = vpop.f32.mrb[0].mxu0
      %564 = vmatprep.mubr.bf16.mxu0 0
      %565 = vmatmul.mubr.bf16.gmra.mrb[0].mxu0 %v451
      %v566 = vpop.f32.mrb[0].mxu0
      %v567 = vadd.f32 0.0, %v566
      %v568 = vpop.f32.mrb[0].mxu0
      %v569 = vpop.f32.mrb[0].mxu0
      %v570 = vadd.f32 0.0, %v569
      %v571 = vpop.f32.mrb[0].mxu0
      %572 = vmatprep.mubr.bf16.mxu0 0
      %573 = vmatmul.mubr.bf16.gmra.mrb[0].mxu0 %v454
      %v574 = vpop.f32.mrb[0].mxu0
      %v575 = vadd.f32 0.0, %v574
      %v576 = vpop.f32.mrb[0].mxu0
      %v577 = vpop.f32.mrb[0].mxu0
      %v578 = vadd.f32 0.0, %v577
      %v579 = vpop.f32.mrb[0].mxu0
      %580 = vmatprep.mubr.bf16.mxu0 0
      %581 = vmatmul.mubr.bf16.gmra.mrb[0].mxu0 %v457
      %v582 = vpop.f32.mrb[0].mxu0
      %v583 = vadd.f32 0.0, %v582
      %v584 = vpop.f32.mrb[0].mxu0
      %v585 = vpop.f32.mrb[0].mxu0
      %v586 = vadd.f32 0.0, %v585
      %v587 = vpop.f32.mrb[0].mxu0
      %588 = vmatprep.mubr.bf16.mxu0 0
      %589 = vmatmul.mubr.bf16.gmra.mrb[0].mxu0 %v460
      %v590 = vpop.f32.mrb[0].mxu0
      %v591 = vadd.f32 0.0, %v590
      %v592 = vpop.f32.mrb[0].mxu0
      %v593 = vpop.f32.mrb[0].mxu0
      %v594 = vadd.f32 0.0, %v593
      %v595 = vpop.f32.mrb[0].mxu0
      %596 = vmatprep.mubr.bf16.mxu0 0
      %597 = vmatmul.mubr.bf16.gmra.mrb[0].mxu0 %v463
      %v598 = vpop.f32.mrb[0].mxu0
      %v599 = vadd.f32 0.0, %v598
      %v600 = vpop.f32.mrb[0].mxu0
      %v601 = vpop.f32.mrb[0].mxu0
      %v602 = vadd.f32 0.0, %v601
      %v603 = vpop.f32.mrb[0].mxu0
      %604 = vmatprep.mubr.bf16.mxu0 0
      %605 = vmatmul.mubr.bf16.gmra.mrb[0].mxu0 %v466
      %v606 = vpop.f32.mrb[0].mxu0
      %v607 = vadd.f32 0.0, %v606
      %v608 = vpop.f32.mrb[0].mxu0
      %v609 = vpop.f32.mrb[0].mxu0
      %v610 = vadd.f32 0.0, %v609
      %v611 = vpop.f32.mrb[0].mxu0
      %612 = vmatprep.mubr.bf16.mxu0 0
      %613 = vmatmul.mubr.bf16.gmra.mrb[0].mxu0 %v469
      %v614 = vpop.f32.mrb[0].mxu0
      %v615 = vadd.f32 0.0, %v614
      %v616 = vpop.f32.mrb[0].mxu0
      %v617 = vpop.f32.mrb[0].mxu0
      %v618 = vadd.f32 0.0, %v617
      %v619 = vpop.f32.mrb[0].mxu0
      %620 = vmatprep.mubr.bf16.mxu0 0
      %621 = vmatmul.mubr.bf16.gmra.mrb[0].mxu0 %v472
      %v622 = vpop.f32.mrb[0].mxu0
      %v623 = vadd.f32 0.0, %v622
      %v624 = vpop.f32.mrb[0].mxu0
      %v625 = vpop.f32.mrb[0].mxu0
      %v626 = vadd.f32 0.0, %v625
      %v627 = vpop.f32.mrb[0].mxu0
      %628 = vmatprep.mubr.bf16.mxu0 0
      %629 = vmatmul.mubr.bf16.gmra.mrb[0].mxu0 %v475
      %v630 = vpop.f32.mrb[0].mxu0
      %v631 = vadd.f32 0.0, %v630
      %v632 = vpop.f32.mrb[0].mxu0
      %v633 = vpop.f32.mrb[0].mxu0
      %v634 = vadd.f32 0.0, %v633
      %v635 = vpop.f32.mrb[0].mxu0
      %636 = vmatprep.mubr.bf16.mxu0 0
      %637 = vmatmul.mubr.bf16.gmra.mrb[0].mxu0 %v478
      %v638 = vpop.f32.mrb[0].mxu0
      %v639 = vadd.f32 0.0, %v638
      %v640 = vpop.f32.mrb[0].mxu0
      %v641 = vpop.f32.mrb[0].mxu0
      %v642 = vadd.f32 0.0, %v641
      %v643 = vpop.f32.mrb[0].mxu0
      %644 = vdwg.mxu0
      %v645 = vpack.c.bf16 %v522, %v519
      %v646 = vpack.c.bf16 %v530, %v527
      %v647 = vpack.c.bf16 %v538, %v535
      %v648 = vpack.c.bf16 %v546, %v543
      %v649 = vpack.c.bf16 %v554, %v551
      %v650 = vpack.c.bf16 %v562, %v559
      %v651 = vpack.c.bf16 %v570, %v567
      %v652 = vpack.c.bf16 %v578, %v575
      %v653 = vpack.c.bf16 %v586, %v583
      %v654 = vpack.c.bf16 %v594, %v591
      %v655 = vpack.c.bf16 %v602, %v599
      %v656 = vpack.c.bf16 %v610, %v607
      %v657 = vpack.c.bf16 %v618, %v615
      %v658 = vpack.c.bf16 %v626, %v623
      %v659 = vpack.c.bf16 %v634, %v631
      %v660 = vpack.c.bf16 %v642, %v639
      %v677 = vunpack.c.l.b16 %v645
      %v678 = vunpack.c.h.b16 %v645
      %v679 = vunpack.c.l.b16 %v646
      %v680 = vunpack.c.h.b16 %v646
      %v681 = vunpack.c.l.b16 %v647
      %v682 = vunpack.c.h.b16 %v647
      %v683 = vunpack.c.l.b16 %v648
      %v684 = vunpack.c.h.b16 %v648
      %v685 = vunpack.c.l.b16 %v649
      %v686 = vunpack.c.h.b16 %v649
      %v687 = vunpack.c.l.b16 %v650
      %v688 = vunpack.c.h.b16 %v650
      %v689 = vunpack.c.l.b16 %v651
      %v690 = vunpack.c.h.b16 %v651
      %v691 = vunpack.c.l.b16 %v652
      %v692 = vunpack.c.h.b16 %v652
      %v693 = vunpack.c.l.b16 %v653
      %v694 = vunpack.c.h.b16 %v653
      %v695 = vunpack.c.l.b16 %v654
      %v696 = vunpack.c.h.b16 %v654
      %v697 = vunpack.c.l.b16 %v655
      %v698 = vunpack.c.h.b16 %v655
      %v699 = vunpack.c.l.b16 %v656
      %v700 = vunpack.c.h.b16 %v656
      %v701 = vunpack.c.l.b16 %v657
      %v702 = vunpack.c.h.b16 %v657
      %v703 = vunpack.c.l.b16 %v658
      %v704 = vunpack.c.h.b16 %v658
      %v705 = vunpack.c.l.b16 %v659
      %v706 = vunpack.c.h.b16 %v659
      %v707 = vunpack.c.l.b16 %v660
      %v708 = vunpack.c.h.b16 %v660
      %v709 = vpack.c.b16 %v677, %v677
      %v710 = vpack.c.b16 %v678, %v678
      %v711 = vpack.c.b16 %v679, %v679
      %v712 = vpack.c.b16 %v680, %v680
      %v713 = vpack.c.b16 %v681, %v681
      %v714 = vpack.c.b16 %v682, %v682
      %v715 = vpack.c.b16 %v683, %v683
      %v716 = vpack.c.b16 %v684, %v684
      %v717 = vpack.c.b16 %v685, %v685
      %v718 = vpack.c.b16 %v686, %v686
      %v719 = vpack.c.b16 %v687, %v687
      %v720 = vpack.c.b16 %v688, %v688
      %v721 = vpack.c.b16 %v689, %v689
      %v722 = vpack.c.b16 %v690, %v690
      %v723 = vpack.c.b16 %v691, %v691
      %v724 = vpack.c.b16 %v692, %v692
      %v725 = vpack.c.b16 %v693, %v693
      %v726 = vpack.c.b16 %v694, %v694
      %v727 = vpack.c.b16 %v695, %v695
      %v728 = vpack.c.b16 %v696, %v696
      %v729 = vpack.c.b16 %v697, %v697
      %v730 = vpack.c.b16 %v698, %v698
      %v731 = vpack.c.b16 %v699, %v699
      %v732 = vpack.c.b16 %v700, %v700
      %v733 = vpack.c.b16 %v701, %v701
      %v734 = vpack.c.b16 %v702, %v702
      %v735 = vpack.c.b16 %v703, %v703
      %v736 = vpack.c.b16 %v704, %v704
      %v737 = vpack.c.b16 %v705, %v705
      %v738 = vpack.c.b16 %v706, %v706
      %v739 = vpack.c.b16 %v707, %v707
      %v740 = vpack.c.b16 %v708, %v708
      %vm773 = vcmask 125952
      %774 = vst.msk [vmem:[%s233] sm:$0xf] %vm773, %v709
      %775 = vst.msk [vmem:[%s233 + $0x4] sm:$0xf] %vm773, %v710
      %776 = vst.msk [vmem:[%s233 + $0x8] sm:$0xf] %vm773, %v711
      %777 = vst.msk [vmem:[%s233 + $0xc] sm:$0xf] %vm773, %v712
      %778 = vst.msk [vmem:[%s233 + $0x10] sm:$0xf] %vm773, %v713
      %779 = vst.msk [vmem:[%s233 + $0x14] sm:$0xf] %vm773, %v714
      %780 = vst.msk [vmem:[%s233 + $0x18] sm:$0xf] %vm773, %v715
      %781 = vst.msk [vmem:[%s233 + $0x1c] sm:$0xf] %vm773, %v716
      %782 = vst.msk [vmem:[%s233 + $0x20] sm:$0xf] %vm773, %v717
      %783 = vst.msk [vmem:[%s233 + $0x24] sm:$0xf] %vm773, %v718
      %784 = vst.msk [vmem:[%s233 + $0x28] sm:$0xf] %vm773, %v719
      %785 = vst.msk [vmem:[%s233 + $0x2c] sm:$0xf] %vm773, %v720
      %786 = vst.msk [vmem:[%s233 + $0x30] sm:$0xf] %vm773, %v721
      %787 = vst.msk [vmem:[%s233 + $0x34] sm:$0xf] %vm773, %v722
      %788 = vst.msk [vmem:[%s233 + $0x38] sm:$0xf] %vm773, %v723
      %789 = vst.msk [vmem:[%s233 + $0x3c] sm:$0xf] %vm773, %v724
      %790 = vst.msk [vmem:[%s233 + $0x40] sm:$0xf] %vm773, %v725
      %791 = vst.msk [vmem:[%s233 + $0x44] sm:$0xf] %vm773, %v726
      %792 = vst.msk [vmem:[%s233 + $0x48] sm:$0xf] %vm773, %v727
      %793 = vst.msk [vmem:[%s233 + $0x4c] sm:$0xf] %vm773, %v728
      %794 = vst.msk [vmem:[%s233 + $0x50] sm:$0xf] %vm773, %v729
      %795 = vst.msk [vmem:[%s233 + $0x54] sm:$0xf] %vm773, %v730
      %796 = vst.msk [vmem:[%s233 + $0x58] sm:$0xf] %vm773, %v731
      %797 = vst.msk [vmem:[%s233 + $0x5c] sm:$0xf] %vm773, %v732
      %798 = vst.msk [vmem:[%s233 + $0x60] sm:$0xf] %vm773, %v733
      %799 = vst.msk [vmem:[%s233 + $0x64] sm:$0xf] %vm773, %v734
      %800 = vst.msk [vmem:[%s233 + $0x68] sm:$0xf] %vm773, %v735
      %801 = vst.msk [vmem:[%s233 + $0x6c] sm:$0xf] %vm773, %v736
      %802 = vst.msk [vmem:[%s233 + $0x70] sm:$0xf] %vm773, %v737
      %803 = vst.msk [vmem:[%s233 + $0x74] sm:$0xf] %vm773, %v738
      %804 = vst.msk [vmem:[%s233 + $0x78] sm:$0xf] %vm773, %v739
      %805 = vst.msk [vmem:[%s233 + $0x7c] sm:$0xf] %vm773, %v740
      %vm806 = vcmask 130048
      %v807 = vsel %vm806, %v519, 0.0
      %v808 = vsel %vm806, %v522, 0.0
      %v809 = vadd.f32 %v807, %v808
      %v810 = vsel %vm806, %v527, 0.0
      %v811 = vadd.f32 %v809, %v810
      %v812 = vsel %vm806, %v530, 0.0
      %v813 = vadd.f32 %v811, %v812
      %v814 = vsel %vm806, %v535, 0.0
      %v815 = vadd.f32 %v813, %v814
      %v816 = vsel %vm806, %v538, 0.0
      %v817 = vadd.f32 %v815, %v816
      %v818 = vsel %vm806, %v543, 0.0
      %v819 = vadd.f32 %v817, %v818
      %v820 = vsel %vm806, %v546, 0.0
      %v821 = vadd.f32 %v819, %v820
      %v822 = vsel %vm806, %v551, 0.0
      %v823 = vadd.f32 %v821, %v822
      %v824 = vsel %vm806, %v554, 0.0
      %v825 = vadd.f32 %v823, %v824
      %v826 = vsel %vm806, %v559, 0.0
      %v827 = vadd.f32 %v825, %v826
      %v828 = vsel %vm806, %v562, 0.0
      %v829 = vadd.f32 %v827, %v828
      %v830 = vsel %vm806, %v567, 0.0
      %v831 = vadd.f32 %v829, %v830
      %v832 = vsel %vm806, %v570, 0.0
      %v833 = vadd.f32 %v831, %v832
      %v834 = vsel %vm806, %v575, 0.0
      %v835 = vadd.f32 %v833, %v834
      %v836 = vsel %vm806, %v578, 0.0
      %v837 = vadd.f32 %v835, %v836
      %v838 = vsel %vm806, %v583, 0.0
      %v839 = vadd.f32 %v837, %v838
      %v840 = vsel %vm806, %v586, 0.0
      %v841 = vadd.f32 %v839, %v840
      %v842 = vsel %vm806, %v591, 0.0
      %v843 = vadd.f32 %v841, %v842
      %v844 = vsel %vm806, %v594, 0.0
      %v845 = vadd.f32 %v843, %v844
      %v846 = vsel %vm806, %v599, 0.0
      %v847 = vadd.f32 %v845, %v846
      %v848 = vsel %vm806, %v602, 0.0
      %v849 = vadd.f32 %v847, %v848
      %v850 = vsel %vm806, %v607, 0.0
      %v851 = vadd.f32 %v849, %v850
      %v852 = vsel %vm806, %v610, 0.0
      %v853 = vadd.f32 %v851, %v852
      %v854 = vsel %vm806, %v615, 0.0
      %v855 = vadd.f32 %v853, %v854
      %v856 = vsel %vm806, %v618, 0.0
      %v857 = vadd.f32 %v855, %v856
      %v858 = vsel %vm806, %v623, 0.0
      %v859 = vadd.f32 %v857, %v858
      %v860 = vsel %vm806, %v626, 0.0
      %v861 = vadd.f32 %v859, %v860
      %v862 = vsel %vm806, %v631, 0.0
      %v863 = vadd.f32 %v861, %v862
      %v864 = vsel %vm806, %v634, 0.0
      %v865 = vadd.f32 %v863, %v864
      %v866 = vsel %vm806, %v639, 0.0
      %v867 = vadd.f32 %v865, %v866
      %v868 = vsel %vm806, %v642, 0.0
      %v869 = vadd.f32 %v867, %v868
      %v870 = vrot.slane %v869, 4
      %v871 = vadd.f32 %v869, %v870
      %v872 = vrot.slane %v871, 2
      %v873 = vadd.f32 %v871, %v872
      %v874 = vrot.slane %v873, 1
      %v875 = vadd.f32 %v873, %v874
      %v876 = vmul.f32 %v519, %v519
      %v877 = vmul.f32 %v522, %v522
      %v878 = vmul.f32 %v527, %v527
      %v879 = vmul.f32 %v530, %v530
      %v880 = vmul.f32 %v535, %v535
      %v881 = vmul.f32 %v538, %v538
      %v882 = vmul.f32 %v543, %v543
      %v883 = vmul.f32 %v546, %v546
      %v884 = vmul.f32 %v551, %v551
      %v885 = vmul.f32 %v554, %v554
      %v886 = vmul.f32 %v559, %v559
      %v887 = vmul.f32 %v562, %v562
      %v888 = vmul.f32 %v567, %v567
      %v889 = vmul.f32 %v570, %v570
      %v890 = vmul.f32 %v575, %v575
      %v891 = vmul.f32 %v578, %v578
      %v892 = vmul.f32 %v583, %v583
      %v893 = vmul.f32 %v586, %v586
      %v894 = vmul.f32 %v591, %v591
      %v895 = vmul.f32 %v594, %v594
      %v896 = vmul.f32 %v599, %v599
      %v897 = vmul.f32 %v602, %v602
      %v898 = vmul.f32 %v607, %v607
      %v899 = vmul.f32 %v610, %v610
      %v900 = vmul.f32 %v615, %v615
      %v901 = vmul.f32 %v618, %v618
      %v902 = vmul.f32 %v623, %v623
      %v903 = vmul.f32 %v626, %v626
      %v904 = vmul.f32 %v631, %v631
      %v905 = vmul.f32 %v634, %v634
      %v906 = vmul.f32 %v639, %v639
      %v907 = vmul.f32 %v642, %v642
      %v908 = vsel %vm806, %v876, 0.0
      %v909 = vsel %vm806, %v877, 0.0
      %v910 = vadd.f32 %v908, %v909
      %v911 = vsel %vm806, %v878, 0.0
      %v912 = vadd.f32 %v910, %v911
      %v913 = vsel %vm806, %v879, 0.0
      %v914 = vadd.f32 %v912, %v913
      %v915 = vsel %vm806, %v880, 0.0
      %v916 = vadd.f32 %v914, %v915
      %v917 = vsel %vm806, %v881, 0.0
      %v918 = vadd.f32 %v916, %v917
      %v919 = vsel %vm806, %v882, 0.0
      %v920 = vadd.f32 %v918, %v919
      %v921 = vsel %vm806, %v883, 0.0
      %v922 = vadd.f32 %v920, %v921
      %v923 = vsel %vm806, %v884, 0.0
      %v924 = vadd.f32 %v922, %v923
      %v925 = vsel %vm806, %v885, 0.0
      %v926 = vadd.f32 %v924, %v925
      %v927 = vsel %vm806, %v886, 0.0
      %v928 = vadd.f32 %v926, %v927
      %v929 = vsel %vm806, %v887, 0.0
      %v930 = vadd.f32 %v928, %v929
      %v931 = vsel %vm806, %v888, 0.0
      %v932 = vadd.f32 %v930, %v931
      %v933 = vsel %vm806, %v889, 0.0
      %v934 = vadd.f32 %v932, %v933
      %v935 = vsel %vm806, %v890, 0.0
      %v936 = vadd.f32 %v934, %v935
      %v937 = vsel %vm806, %v891, 0.0
      %v938 = vadd.f32 %v936, %v937
      %v939 = vsel %vm806, %v892, 0.0
      %v940 = vadd.f32 %v938, %v939
      %v941 = vsel %vm806, %v893, 0.0
      %v942 = vadd.f32 %v940, %v941
      %v943 = vsel %vm806, %v894, 0.0
      %v944 = vadd.f32 %v942, %v943
      %v945 = vsel %vm806, %v895, 0.0
      %v946 = vadd.f32 %v944, %v945
      %v947 = vsel %vm806, %v896, 0.0
      %v948 = vadd.f32 %v946, %v947
      %v949 = vsel %vm806, %v897, 0.0
      %v950 = vadd.f32 %v948, %v949
      %v951 = vsel %vm806, %v898, 0.0
      %v952 = vadd.f32 %v950, %v951
      %v953 = vsel %vm806, %v899, 0.0
      %v954 = vadd.f32 %v952, %v953
      %v955 = vsel %vm806, %v900, 0.0
      %v956 = vadd.f32 %v954, %v955
      %v957 = vsel %vm806, %v901, 0.0
      %v958 = vadd.f32 %v956, %v957
      %v959 = vsel %vm806, %v902, 0.0
      %v960 = vadd.f32 %v958, %v959
      %v961 = vsel %vm806, %v903, 0.0
      %v962 = vadd.f32 %v960, %v961
      %v963 = vsel %vm806, %v904, 0.0
      %v964 = vadd.f32 %v962, %v963
      %v965 = vsel %vm806, %v905, 0.0
      %v966 = vadd.f32 %v964, %v965
      %v967 = vsel %vm806, %v906, 0.0
      %v968 = vadd.f32 %v966, %v967
      %v969 = vsel %vm806, %v907, 0.0
      %v970 = vadd.f32 %v968, %v969
      %v971 = vrot.slane %v970, 4
      %v972 = vadd.f32 %v970, %v971
      %v973 = vrot.slane %v972, 2
      %v974 = vadd.f32 %v972, %v973
      %v975 = vrot.slane %v974, 1
      %v976 = vadd.f32 %v974, %v975
      %vm977 = vcmask 1040384
      %v978 = vsel %vm977, %v875, %v976
      %vm979 = vcmask 123904
      %980 = vst.msk [vmem:[%s238] sm:$0x3] %vm979, %v978
      %s981 = smul.u32 32, %s17
      %p982 = scmp.lt.s32.totalorder %s981, 63
      %s983 = scalar_select %p982, %s981, 63
      %s984 = smul.addr %s983, 4
      %s985 = scalar_lea.vmem %s4, %s984
      %p986 = scmp.lt.s32.totalorder %s17, 1
      %s987 = scalar_select %p986, %s17, 1
      %s988 = smul.addr %s987, 2
      %s989 = scalar_lea.vmem %s5, %s988
      // Predicated region
      $region37: #{bottleneck_pallas.6} parent=35 // pred_check
        %p990 = pneg %p124
      $region38: #{bottleneck_pallas.6} parent=35 // pred_check_branch
        %992 = sbr.rel (%p990) target = $region40
      $region39: #{bottleneck_pallas.6} parent=35 // pred_region
        %s993 = smul.u32 32, %s17
      $region40: #{bottleneck_pallas.6} parent=35 // pred_fallthru
        _
      // Predicated region
      $region41: #{bottleneck_pallas.6} parent=35 // pred_check
        %p994 = pneg %p150
      $region42: #{bottleneck_pallas.6} parent=35 // pred_check_branch
        %996 = sbr.rel (%p994) target = $region44
      $region43: #{bottleneck_pallas.6} parent=35 // pred_region
        _
      $region44: #{bottleneck_pallas.6} parent=35 // pred_fallthru
        _
    $region36: #{bottleneck_pallas.6} parent=5 // pred_fallthru
      _
    %p997 = scmp.le.s32.totalorder 2, %s12
    // Predicated region
    $region45: #{bottleneck_pallas.6} parent=5 // pred_check
      %p998 = pneg %p997
    $region46: #{bottleneck_pallas.6} parent=5 // pred_check_branch
      %1000 = sbr.rel (%p998) target = $region48
    $region47: #{bottleneck_pallas.6} parent=5 // pred_region
      %s1001 = ssub.s32 %s12, 2
      // Predicated region
      $region49: #{bottleneck_pallas.6} parent=47 // pred_check
        %p1002 = pneg %p130
      $region50: #{bottleneck_pallas.6} parent=47 // pred_check_branch
        %1004 = sbr.rel (%p1002) target = $region52
      $region51: #{bottleneck_pallas.6} parent=47 // pred_region
        %s1005 = smul.u32 32, %s18
        %p1006 = scmp.lt.s32.totalorder %s1005, 63
        %s1007 = scalar_select %p1006, %s1005, 63
        %s1008 = smul.addr %s1007, 4
        %s1009 = scalar_lea.vmem %s4, %s1008
      $region52: #{bottleneck_pallas.6} parent=47 // pred_fallthru
        _
      // Predicated region
      $region53: #{bottleneck_pallas.6} parent=47 // pred_check
        %p1010 = pneg %p156
      $region54: #{bottleneck_pallas.6} parent=47 // pred_check_branch
        %1012 = sbr.rel (%p1010) target = $region56
      $region55: #{bottleneck_pallas.6} parent=47 // pred_region
        %p1013 = scmp.lt.s32.totalorder %s18, 1
        %s1014 = scalar_select %p1013, %s18, 1
        %s1015 = smul.addr %s1014, 2
        %s1016 = scalar_lea.vmem %s5, %s1015
      $region56: #{bottleneck_pallas.6} parent=47 // pred_fallthru
        _
    $region48: #{bottleneck_pallas.6} parent=5 // pred_fallthru
      _
  $region6: #{bottleneck_pallas.6} parent=0 // loop_footer
    %s16 = sadd.s32 1, %s12
  $region7: #{bottleneck_pallas.6} parent=0 // loop_footer_branch
    %11 = sbr.rel target = $region3
  $region8: #{bottleneck_pallas.6} parent=0 // loop_exit
    _

// kernel: bottleneck_pallas.7
$region0: #{bottleneck_pallas.7}
  #allocation0 [shape = 'u32[]', space=smem, size = 0x4, offset = 0x4, fixed_abs, tag = 'smem constant byte address 0x4 - core index']
  #allocation1 [shape = 'u32[144,128]{1,0:T(1,128)}', space=vmem, size = 0x12000, scoped, tag = 'internal scratch']
  %s0 = inlined_call_operand.vmem [shape: bf16[512,16], index: 0, kind: input, shape index: {}]
  %s1 = inlined_call_operand.vmem [shape: bf16[512,16], index: 1, kind: input, shape index: {}]
  %s2 = inlined_call_operand.vmem [shape: f32[1,16], index: 2, kind: input, shape index: {}]
  %s3 = inlined_call_operand.vmem [shape: f32[1,16], index: 3, kind: input, shape index: {}]
  %s4 = inlined_call_operand.vmem [shape: f32[512,16], index: 4, kind: output, shape index: {}]
  %s5 = sld [smem:[#allocation0]]
  $region49: #{bottleneck_pallas.7} parent=0
    _
  %s7 = ssub.s32 1, %s5
  %s8 = scalar_select 0, %s7, %s5
  loop: start=0, step=1, limit=4
  $region2: #{bottleneck_pallas.7} parent=0 // loop_pre_header
    _
  $region3: #{bottleneck_pallas.7} parent=0 // loop_header
    %s10 = sphi 0, %s14
    %p11 = scmp.ge.s32.totalorder %s10, 4
    %s20 = sphi 0, %s22
    %s23 = sphi 0, %s20
    %s24 = sphi 0, %s23
    %s40 = sphi 0, %s24
    %s46 = sphi 0, %s48
    %s49 = sphi 0, %s46
    %s50 = sphi 0, %s49
    %s66 = sphi 0, %s50
    %s70 = sphi 0, %s70
    %s72 = sphi 0, %s70
    %s73 = sphi 0, %s72
    %s87 = sphi 0, %s73
    %s91 = sphi 0, %s91
    %s93 = sphi 0, %s91
    %s94 = sphi 0, %s93
    %s108 = sphi 0, %s94
    %s114 = sphi 0, %s116
    %s117 = sphi 0, %s114
    %s118 = sphi 0, %s117
    %s134 = sphi 0, %s118
  $region4: #{bottleneck_pallas.7} parent=0 // loop_header_branch
    %13 = sbr.rel (%p11) target = $region8
  $region5: #{bottleneck_pallas.7} parent=0 // loop_body
    %s15 = ssub.s32 %s10, 1
    %s16 = ssub.s32 %s10, 2
    %s17 = sadd.s32 %s10, 1
    %s18 = ssub.s32 %s10, %s17
    %p19 = scmp.eq.s32.totalorder %s18, 0
    %s21 = sadd.s32 %s20, 1
    %s22 = scalar_select %p19, %s20, %s21
    %p25 = pneg %p19
    %p26 = scmp.eq.s32.totalorder %s10, 1
    %p27 = por %p25, %p26
    %p28 = scmp.ne.s32.totalorder %s20, %s23
    %p29 = scmp.eq.s32.totalorder %s10, 0
    %p30 = por %p28, %p29
    %p31 = scmp.ne.s32.totalorder %s20, %s23
    %p32 = scmp.eq.s32.totalorder %s15, 1
    %p33 = por %p31, %p32
    %p34 = scmp.ne.s32.totalorder %s23, %s24
    %p35 = scmp.eq.s32.totalorder %s15, 0
    %p36 = por %p34, %p35
    %p37 = scmp.ne.s32.totalorder %s23, %s24
    %p38 = scmp.eq.s32.totalorder %s16, 1
    %p39 = por %p37, %p38
    %p41 = scmp.ne.s32.totalorder %s24, %s40
    %p42 = scmp.eq.s32.totalorder %s16, 0
    %p43 = por %p41, %p42
    %s44 = ssub.s32 %s10, %s17
    %p45 = scmp.eq.s32.totalorder %s44, 0
    %s47 = sadd.s32 %s46, 1
    %s48 = scalar_select %p45, %s46, %s47
    %p51 = pneg %p45
    %p52 = scmp.eq.s32.totalorder %s10, 1
    %p53 = por %p51, %p52
    %p54 = scmp.ne.s32.totalorder %s46, %s49
    %p55 = scmp.eq.s32.totalorder %s10, 0
    %p56 = por %p54, %p55
    %p57 = scmp.ne.s32.totalorder %s46, %s49
    %p58 = scmp.eq.s32.totalorder %s15, 1
    %p59 = por %p57, %p58
    %p60 = scmp.ne.s32.totalorder %s49, %s50
    %p61 = scmp.eq.s32.totalorder %s15, 0
    %p62 = por %p60, %p61
    %p63 = scmp.ne.s32.totalorder %s49, %s50
    %p64 = scmp.eq.s32.totalorder %s16, 1
    %p65 = por %p63, %p64
    %p67 = scmp.ne.s32.totalorder %s50, %s66
    %p68 = scmp.eq.s32.totalorder %s16, 0
    %p69 = por %p67, %p68
    %s71 = sadd.s32 %s70, 1
    %p74 = scmp.eq.s32.totalorder %s10, 1
    %p75 = scmp.ne.s32.totalorder %s70, %s72
    %p76 = scmp.eq.s32.totalorder %s10, 0
    %p77 = por %p75, %p76
    %p78 = scmp.ne.s32.totalorder %s70, %s72
    %p79 = scmp.eq.s32.totalorder %s15, 1
    %p80 = por %p78, %p79
    %p81 = scmp.ne.s32.totalorder %s72, %s73
    %p82 = scmp.eq.s32.totalorder %s15, 0
    %p83 = por %p81, %p82
    %p84 = scmp.ne.s32.totalorder %s72, %s73
    %p85 = scmp.eq.s32.totalorder %s16, 1
    %p86 = por %p84, %p85
    %p88 = scmp.ne.s32.totalorder %s73, %s87
    %p89 = scmp.eq.s32.totalorder %s16, 0
    %p90 = por %p88, %p89
    %s92 = sadd.s32 %s91, 1
    %p95 = scmp.eq.s32.totalorder %s10, 1
    %p96 = scmp.ne.s32.totalorder %s91, %s93
    %p97 = scmp.eq.s32.totalorder %s10, 0
    %p98 = por %p96, %p97
    %p99 = scmp.ne.s32.totalorder %s91, %s93
    %p100 = scmp.eq.s32.totalorder %s15, 1
    %p101 = por %p99, %p100
    %p102 = scmp.ne.s32.totalorder %s93, %s94
    %p103 = scmp.eq.s32.totalorder %s15, 0
    %p104 = por %p102, %p103
    %p105 = scmp.ne.s32.totalorder %s93, %s94
    %p106 = scmp.eq.s32.totalorder %s16, 1
    %p107 = por %p105, %p106
    %p109 = scmp.ne.s32.totalorder %s94, %s108
    %p110 = scmp.eq.s32.totalorder %s16, 0
    %p111 = por %p109, %p110
    %s112 = ssub.s32 %s10, %s17
    %p113 = scmp.eq.s32.totalorder %s112, 0
    %s115 = sadd.s32 %s114, 1
    %s116 = scalar_select %p113, %s114, %s115
    %p119 = pneg %p113
    %p120 = scmp.eq.s32.totalorder %s10, 1
    %p121 = por %p119, %p120
    %p122 = scmp.ne.s32.totalorder %s114, %s117
    %p123 = scmp.eq.s32.totalorder %s10, 0
    %p124 = por %p122, %p123
    %p125 = scmp.ne.s32.totalorder %s114, %s117
    %p126 = scmp.eq.s32.totalorder %s15, 1
    %p127 = por %p125, %p126
    %p128 = scmp.ne.s32.totalorder %s117, %s118
    %p129 = scmp.eq.s32.totalorder %s15, 0
    %p130 = por %p128, %p129
    %p131 = scmp.ne.s32.totalorder %s117, %s118
    %p132 = scmp.eq.s32.totalorder %s16, 1
    %p133 = por %p131, %p132
    %p135 = scmp.ne.s32.totalorder %s118, %s134
    %p136 = scmp.eq.s32.totalorder %s16, 0
    %p137 = por %p135, %p136
    %p138 = scmp.le.s32.totalorder 1, %s10
    %p139 = scmp.lt.s32.totalorder %s10, 3
    %p140 = pnand %p138, %p139
    %p141 = pneg %p140
    // Predicated region
    $region9: #{bottleneck_pallas.7} parent=5 // pred_check
      _
    $region10: #{bottleneck_pallas.7} parent=5 // pred_check_branch
      %143 = sbr.rel (%p140) target = $region12
    $region11: #{bottleneck_pallas.7} parent=5 // pred_region
      %s144 = ssub.s32 %s10, 1
      // Predicated region
      $region13: #{bottleneck_pallas.7} parent=11 // pred_check
        %p145 = pneg %p83
      $region14: #{bottleneck_pallas.7} parent=11 // pred_check_branch
        %147 = sbr.rel (%p145) target = $region16
      $region15: #{bottleneck_pallas.7} parent=11 // pred_region
        _
      $region16: #{bottleneck_pallas.7} parent=11 // pred_fallthru
        _
      // Predicated region
      $region17: #{bottleneck_pallas.7} parent=11 // pred_check
        %p148 = pneg %p104
      $region18: #{bottleneck_pallas.7} parent=11 // pred_check_branch
        %150 = sbr.rel (%p148) target = $region20
      $region19: #{bottleneck_pallas.7} parent=11 // pred_region
        _
      $region20: #{bottleneck_pallas.7} parent=11 // pred_fallthru
        _
    $region12: #{bottleneck_pallas.7} parent=5 // pred_fallthru
      _
    %p151 = scmp.lt.s32.totalorder %s10, 2
    // Predicated region
    $region21: #{bottleneck_pallas.7} parent=5 // pred_check
      %p152 = pneg %p151
    $region22: #{bottleneck_pallas.7} parent=5 // pred_check_branch
      %154 = sbr.rel (%p152) target = $region24
    $region23: #{bottleneck_pallas.7} parent=5 // pred_region
      // Predicated region
      $region25: #{bottleneck_pallas.7} parent=23 // pred_check
        %p155 = pneg %p30
      $region26: #{bottleneck_pallas.7} parent=23 // pred_check_branch
        %157 = sbr.rel (%p155) target = $region28
      $region27: #{bottleneck_pallas.7} parent=23 // pred_region
        %s158 = smul.u32 32, %s10
        %p159 = scmp.lt.s32.totalorder %s158, 63
        %s160 = scalar_select %p159, %s158, 63
        %s161 = smul.addr %s160, 4
        %s162 = scalar_lea.vmem %s0, %s161
        %s163 = smul.u32 32, %s10
      $region28: #{bottleneck_pallas.7} parent=23 // pred_fallthru
        _
      // Predicated region
      $region29: #{bottleneck_pallas.7} parent=23 // pred_check
        %p164 = pneg %p56
      $region30: #{bottleneck_pallas.7} parent=23 // pred_check_branch
        %166 = sbr.rel (%p164) target = $region32
      $region31: #{bottleneck_pallas.7} parent=23 // pred_region
        %s167 = smul.u32 32, %s10
        %p168 = scmp.lt.s32.totalorder %s167, 63
        %s169 = scalar_select %p168, %s167, 63
        %s170 = smul.addr %s169, 4
        %s171 = scalar_lea.vmem %s1, %s170
        %s172 = smul.u32 32, %s10
      $region32: #{bottleneck_pallas.7} parent=23 // pred_fallthru
        _
    $region24: #{bottleneck_pallas.7} parent=5 // pred_fallthru
      _
    %p173 = scmp.le.s32.totalorder 1, %s10
    %p174 = scmp.lt.s32.totalorder %s10, 3
    %p175 = pnand %p173, %p174
    %p176 = pneg %p175
    // Predicated region
    $region33: #{bottleneck_pallas.7} parent=5 // pred_check
      _
    $region34: #{bottleneck_pallas.7} parent=5 // pred_check_branch
      %178 = sbr.rel (%p175) target = $region36
    $region35: #{bottleneck_pallas.7} parent=5 // pred_region
      %s179 = ssub.s32 %s10, 1
      %s180 = smul.u32 32, %s15
      %p181 = scmp.lt.s32.totalorder %s180, 63
      %s182 = scalar_select %p181, %s180, 63
      %s183 = smul.addr %s182, 4
      %s184 = scalar_lea.vmem %s0, %s183
      %p185 = pneg %p36
      %p186 = pneg %p33
      %s187 = smul.u32 32, %s15
      %p188 = scmp.lt.s32.totalorder %s187, 63
      %s189 = scalar_select %p188, %s187, 63
      %s190 = smul.addr %s189, 4
      %s191 = scalar_lea.vmem %s1, %s190
      %p192 = pneg %p62
      %p193 = pneg %p59
      %p194 = pneg %p83
      %p195 = pneg %p80
      %p196 = pneg %p104
      %p197 = pneg %p101
      %p198 = pneg %p130
      %p199 = pneg %p127
      %s200 = smul.u32 32, %s15
      %p201 = scmp.lt.s32.totalorder %s200, 63
      %s202 = scalar_select %p201, %s200, 63
      %s203 = smul.addr %s202, 8
      %s204 = scalar_lea.vmem %s4, %s203
      %s205 = smul.u32 32, %s15
      %p206 = scmp.lt.s32.totalorder %s205, 63
      %s207 = scalar_select %p206, %s205, 63
      %s208 = smul.addr %s207, 4
      %s209 = scalar_lea.vmem %s0, %s208
      %s210 = smul.u32 32, %s15
      %s211 = smul.u32 32, %s15
      %p212 = scmp.lt.s32.totalorder %s211, 63
      %s213 = scalar_select %p212, %s211, 63
      %s214 = smul.addr %s213, 4
      %s215 = scalar_lea.vmem %s1, %s214
      %s216 = smul.u32 32, %s15
      %s217 = smul.u32 32, %s15
      %p218 = scmp.lt.s32.totalorder %s217, 63
      %s219 = scalar_select %p218, %s217, 63
      %s220 = smul.addr %s219, 8
      %s221 = scalar_lea.vmem %s4, %s220
      %s222 = smul.u32 32, %s15
      %v223 = vld [vmem:[%s209] sm:$0xf]
      %v224 = vld [vmem:[%s209 + $0x4] sm:$0xf]
      %v225 = vld [vmem:[%s209 + $0x8] sm:$0xf]
      %v226 = vld [vmem:[%s209 + $0xc] sm:$0xf]
      %v227 = vld [vmem:[%s209 + $0x10] sm:$0xf]
      %v228 = vld [vmem:[%s209 + $0x14] sm:$0xf]
      %v229 = vld [vmem:[%s209 + $0x18] sm:$0xf]
      %v230 = vld [vmem:[%s209 + $0x1c] sm:$0xf]
      %v231 = vld [vmem:[%s209 + $0x20] sm:$0xf]
      %v232 = vld [vmem:[%s209 + $0x24] sm:$0xf]
      %v233 = vld [vmem:[%s209 + $0x28] sm:$0xf]
      %v234 = vld [vmem:[%s209 + $0x2c] sm:$0xf]
      %v235 = vld [vmem:[%s209 + $0x30] sm:$0xf]
      %v236 = vld [vmem:[%s209 + $0x34] sm:$0xf]
      %v237 = vld [vmem:[%s209 + $0x38] sm:$0xf]
      %v238 = vld [vmem:[%s209 + $0x3c] sm:$0xf]
      %v239 = vld [vmem:[%s209 + $0x40] sm:$0xf]
      %v240 = vld [vmem:[%s209 + $0x44] sm:$0xf]
      %v241 = vld [vmem:[%s209 + $0x48] sm:$0xf]
      %v242 = vld [vmem:[%s209 + $0x4c] sm:$0xf]
      %v243 = vld [vmem:[%s209 + $0x50] sm:$0xf]
      %v244 = vld [vmem:[%s209 + $0x54] sm:$0xf]
      %v245 = vld [vmem:[%s209 + $0x58] sm:$0xf]
      %v246 = vld [vmem:[%s209 + $0x5c] sm:$0xf]
      %v247 = vld [vmem:[%s209 + $0x60] sm:$0xf]
      %v248 = vld [vmem:[%s209 + $0x64] sm:$0xf]
      %v249 = vld [vmem:[%s209 + $0x68] sm:$0xf]
      %v250 = vld [vmem:[%s209 + $0x6c] sm:$0xf]
      %v251 = vld [vmem:[%s209 + $0x70] sm:$0xf]
      %v252 = vld [vmem:[%s209 + $0x74] sm:$0xf]
      %v253 = vld [vmem:[%s209 + $0x78] sm:$0xf]
      %v254 = vld [vmem:[%s209 + $0x7c] sm:$0xf]
      %v255 = vunpack.c.l.bf16 %v223
      %v256 = vunpack.c.l.bf16 %v224
      %v257 = vunpack.c.l.bf16 %v225
      %v258 = vunpack.c.l.bf16 %v226
      %v259 = vunpack.c.l.bf16 %v227
      %v260 = vunpack.c.l.bf16 %v228
      %v261 = vunpack.c.l.bf16 %v229
      %v262 = vunpack.c.l.bf16 %v230
      %v263 = vunpack.c.l.bf16 %v231
      %v264 = vunpack.c.l.bf16 %v232
      %v265 = vunpack.c.l.bf16 %v233
      %v266 = vunpack.c.l.bf16 %v234
      %v267 = vunpack.c.l.bf16 %v235
      %v268 = vunpack.c.l.bf16 %v236
      %v269 = vunpack.c.l.bf16 %v237
      %v270 = vunpack.c.l.bf16 %v238
      %v271 = vunpack.c.l.bf16 %v239
      %v272 = vunpack.c.l.bf16 %v240
      %v273 = vunpack.c.l.bf16 %v241
      %v274 = vunpack.c.l.bf16 %v242
      %v275 = vunpack.c.l.bf16 %v243
      %v276 = vunpack.c.l.bf16 %v244
      %v277 = vunpack.c.l.bf16 %v245
      %v278 = vunpack.c.l.bf16 %v246
      %v279 = vunpack.c.l.bf16 %v247
      %v280 = vunpack.c.l.bf16 %v248
      %v281 = vunpack.c.l.bf16 %v249
      %v282 = vunpack.c.l.bf16 %v250
      %v283 = vunpack.c.l.bf16 %v251
      %v284 = vunpack.c.l.bf16 %v252
      %v285 = vunpack.c.l.bf16 %v253
      %v286 = vunpack.c.l.bf16 %v254
      %v287 = vld [vmem:[%s2] sm:$0x1]
      %v289 = vlaneseq
      %v290 = vshrl.u32 %v289, 7
      %v291 = vsub.s32 0, %v290
      %v292 = vrot.slane %v287, %v291
      %v294 = vmul.f32 %v255, %v292
      %v295 = vmul.f32 %v256, %v292
      %v296 = vmul.f32 %v257, %v292
      %v297 = vmul.f32 %v258, %v292
      %v298 = vmul.f32 %v259, %v292
      %v299 = vmul.f32 %v260, %v292
      %v300 = vmul.f32 %v261, %v292
      %v301 = vmul.f32 %v262, %v292
      %v302 = vmul.f32 %v263, %v292
      %v303 = vmul.f32 %v264, %v292
      %v304 = vmul.f32 %v265, %v292
      %v305 = vmul.f32 %v266, %v292
      %v306 = vmul.f32 %v267, %v292
      %v307 = vmul.f32 %v268, %v292
      %v308 = vmul.f32 %v269, %v292
      %v309 = vmul.f32 %v270, %v292
      %v310 = vmul.f32 %v271, %v292
      %v311 = vmul.f32 %v272, %v292
      %v312 = vmul.f32 %v273, %v292
      %v313 = vmul.f32 %v274, %v292
      %v314 = vmul.f32 %v275, %v292
      %v315 = vmul.f32 %v276, %v292
      %v316 = vmul.f32 %v277, %v292
      %v317 = vmul.f32 %v278, %v292
      %v318 = vmul.f32 %v279, %v292
      %v319 = vmul.f32 %v280, %v292
      %v320 = vmul.f32 %v281, %v292
      %v321 = vmul.f32 %v282, %v292
      %v322 = vmul.f32 %v283, %v292
      %v323 = vmul.f32 %v284, %v292
      %v324 = vmul.f32 %v285, %v292
      %v325 = vmul.f32 %v286, %v292
      %v326 = vld [vmem:[%s3] sm:$0x1]
      %v328 = vlaneseq
      %v329 = vshrl.u32 %v328, 7
      %v330 = vsub.s32 0, %v329
      %v331 = vrot.slane %v326, %v330
      %v333 = vadd.f32 %v294, %v331
      %v334 = vadd.f32 %v295, %v331
      %v335 = vadd.f32 %v296, %v331
      %v336 = vadd.f32 %v297, %v331
      %v337 = vadd.f32 %v298, %v331
      %v338 = vadd.f32 %v299, %v331
      %v339 = vadd.f32 %v300, %v331
      %v340 = vadd.f32 %v301, %v331
      %v341 = vadd.f32 %v302, %v331
      %v342 = vadd.f32 %v303, %v331
      %v343 = vadd.f32 %v304, %v331
      %v344 = vadd.f32 %v305, %v331
      %v345 = vadd.f32 %v306, %v331
      %v346 = vadd.f32 %v307, %v331
      %v347 = vadd.f32 %v308, %v331
      %v348 = vadd.f32 %v309, %v331
      %v349 = vadd.f32 %v310, %v331
      %v350 = vadd.f32 %v311, %v331
      %v351 = vadd.f32 %v312, %v331
      %v352 = vadd.f32 %v313, %v331
      %v353 = vadd.f32 %v314, %v331
      %v354 = vadd.f32 %v315, %v331
      %v355 = vadd.f32 %v316, %v331
      %v356 = vadd.f32 %v317, %v331
      %v357 = vadd.f32 %v318, %v331
      %v358 = vadd.f32 %v319, %v331
      %v359 = vadd.f32 %v320, %v331
      %v360 = vadd.f32 %v321, %v331
      %v361 = vadd.f32 %v322, %v331
      %v362 = vadd.f32 %v323, %v331
      %v363 = vadd.f32 %v324, %v331
      %v364 = vadd.f32 %v325, %v331
      %v365 = vld [vmem:[%s215] sm:$0xf]
      %v366 = vld [vmem:[%s215 + $0x4] sm:$0xf]
      %v367 = vld [vmem:[%s215 + $0x8] sm:$0xf]
      %v368 = vld [vmem:[%s215 + $0xc] sm:$0xf]
      %v369 = vld [vmem:[%s215 + $0x10] sm:$0xf]
      %v370 = vld [vmem:[%s215 + $0x14] sm:$0xf]
      %v371 = vld [vmem:[%s215 + $0x18] sm:$0xf]
      %v372 = vld [vmem:[%s215 + $0x1c] sm:$0xf]
      %v373 = vld [vmem:[%s215 + $0x20] sm:$0xf]
      %v374 = vld [vmem:[%s215 + $0x24] sm:$0xf]
      %v375 = vld [vmem:[%s215 + $0x28] sm:$0xf]
      %v376 = vld [vmem:[%s215 + $0x2c] sm:$0xf]
      %v377 = vld [vmem:[%s215 + $0x30] sm:$0xf]
      %v378 = vld [vmem:[%s215 + $0x34] sm:$0xf]
      %v379 = vld [vmem:[%s215 + $0x38] sm:$0xf]
      %v380 = vld [vmem:[%s215 + $0x3c] sm:$0xf]
      %v381 = vld [vmem:[%s215 + $0x40] sm:$0xf]
      %v382 = vld [vmem:[%s215 + $0x44] sm:$0xf]
      %v383 = vld [vmem:[%s215 + $0x48] sm:$0xf]
      %v384 = vld [vmem:[%s215 + $0x4c] sm:$0xf]
      %v385 = vld [vmem:[%s215 + $0x50] sm:$0xf]
      %v386 = vld [vmem:[%s215 + $0x54] sm:$0xf]
      %v387 = vld [vmem:[%s215 + $0x58] sm:$0xf]
      %v388 = vld [vmem:[%s215 + $0x5c] sm:$0xf]
      %v389 = vld [vmem:[%s215 + $0x60] sm:$0xf]
      %v390 = vld [vmem:[%s215 + $0x64] sm:$0xf]
      %v391 = vld [vmem:[%s215 + $0x68] sm:$0xf]
      %v392 = vld [vmem:[%s215 + $0x6c] sm:$0xf]
      %v393 = vld [vmem:[%s215 + $0x70] sm:$0xf]
      %v394 = vld [vmem:[%s215 + $0x74] sm:$0xf]
      %v395 = vld [vmem:[%s215 + $0x78] sm:$0xf]
      %v396 = vld [vmem:[%s215 + $0x7c] sm:$0xf]
      %v397 = vunpack.c.l.bf16 %v365
      %v398 = vunpack.c.l.bf16 %v366
      %v399 = vunpack.c.l.bf16 %v367
      %v400 = vunpack.c.l.bf16 %v368
      %v401 = vunpack.c.l.bf16 %v369
      %v402 = vunpack.c.l.bf16 %v370
      %v403 = vunpack.c.l.bf16 %v371
      %v404 = vunpack.c.l.bf16 %v372
      %v405 = vunpack.c.l.bf16 %v373
      %v406 = vunpack.c.l.bf16 %v374
      %v407 = vunpack.c.l.bf16 %v375
      %v408 = vunpack.c.l.bf16 %v376
      %v409 = vunpack.c.l.bf16 %v377
      %v410 = vunpack.c.l.bf16 %v378
      %v411 = vunpack.c.l.bf16 %v379
      %v412 = vunpack.c.l.bf16 %v380
      %v413 = vunpack.c.l.bf16 %v381
      %v414 = vunpack.c.l.bf16 %v382
      %v415 = vunpack.c.l.bf16 %v383
      %v416 = vunpack.c.l.bf16 %v384
      %v417 = vunpack.c.l.bf16 %v385
      %v418 = vunpack.c.l.bf16 %v386
      %v419 = vunpack.c.l.bf16 %v387
      %v420 = vunpack.c.l.bf16 %v388
      %v421 = vunpack.c.l.bf16 %v389
      %v422 = vunpack.c.l.bf16 %v390
      %v423 = vunpack.c.l.bf16 %v391
      %v424 = vunpack.c.l.bf16 %v392
      %v425 = vunpack.c.l.bf16 %v393
      %v426 = vunpack.c.l.bf16 %v394
      %v427 = vunpack.c.l.bf16 %v395
      %v428 = vunpack.c.l.bf16 %v396
      %v429 = vadd.f32 %v333, %v397
      %v430 = vadd.f32 %v334, %v398
      %v431 = vadd.f32 %v335, %v399
      %v432 = vadd.f32 %v336, %v400
      %v433 = vadd.f32 %v337, %v401
      %v434 = vadd.f32 %v338, %v402
      %v435 = vadd.f32 %v339, %v403
      %v436 = vadd.f32 %v340, %v404
      %v437 = vadd.f32 %v341, %v405
      %v438 = vadd.f32 %v342, %v406
      %v439 = vadd.f32 %v343, %v407
      %v440 = vadd.f32 %v344, %v408
      %v441 = vadd.f32 %v345, %v409
      %v442 = vadd.f32 %v346, %v410
      %v443 = vadd.f32 %v347, %v411
      %v444 = vadd.f32 %v348, %v412
      %v445 = vadd.f32 %v349, %v413
      %v446 = vadd.f32 %v350, %v414
      %v447 = vadd.f32 %v351, %v415
      %v448 = vadd.f32 %v352, %v416
      %v449 = vadd.f32 %v353, %v417
      %v450 = vadd.f32 %v354, %v418
      %v451 = vadd.f32 %v355, %v419
      %v452 = vadd.f32 %v356, %v420
      %v453 = vadd.f32 %v357, %v421
      %v454 = vadd.f32 %v358, %v422
      %v455 = vadd.f32 %v359, %v423
      %v456 = vadd.f32 %v360, %v424
      %v457 = vadd.f32 %v361, %v425
      %v458 = vadd.f32 %v362, %v426
      %v459 = vadd.f32 %v363, %v427
      %v460 = vadd.f32 %v364, %v428
      %v461 = vmax.f32 %v429, 0.0
      %v462 = vmax.f32 %v430, 0.0
      %v463 = vmax.f32 %v431, 0.0
      %v464 = vmax.f32 %v432, 0.0
      %v465 = vmax.f32 %v433, 0.0
      %v466 = vmax.f32 %v434, 0.0
      %v467 = vmax.f32 %v435, 0.0
      %v468 = vmax.f32 %v436, 0.0
      %v469 = vmax.f32 %v437, 0.0
      %v470 = vmax.f32 %v438, 0.0
      %v471 = vmax.f32 %v439, 0.0
      %v472 = vmax.f32 %v440, 0.0
      %v473 = vmax.f32 %v441, 0.0
      %v474 = vmax.f32 %v442, 0.0
      %v475 = vmax.f32 %v443, 0.0
      %v476 = vmax.f32 %v444, 0.0
      %v477 = vmax.f32 %v445, 0.0
      %v478 = vmax.f32 %v446, 0.0
      %v479 = vmax.f32 %v447, 0.0
      %v480 = vmax.f32 %v448, 0.0
      %v481 = vmax.f32 %v449, 0.0
      %v482 = vmax.f32 %v450, 0.0
      %v483 = vmax.f32 %v451, 0.0
      %v484 = vmax.f32 %v452, 0.0
      %v485 = vmax.f32 %v453, 0.0
      %v486 = vmax.f32 %v454, 0.0
      %v487 = vmax.f32 %v455, 0.0
      %v488 = vmax.f32 %v456, 0.0
      %v489 = vmax.f32 %v457, 0.0
      %v490 = vmax.f32 %v458, 0.0
      %v491 = vmax.f32 %v459, 0.0
      %v492 = vmax.f32 %v460, 0.0
      %vm493 = vcmask 130048
      %494 = vst.msk [vmem:[%s221] sm:$0xff] %vm493, %v461
      %495 = vst.msk [vmem:[%s221 + $0x8] sm:$0xff] %vm493, %v462
      %496 = vst.msk [vmem:[%s221 + $0x10] sm:$0xff] %vm493, %v463
      %497 = vst.msk [vmem:[%s221 + $0x18] sm:$0xff] %vm493, %v464
      %498 = vst.msk [vmem:[%s221 + $0x20] sm:$0xff] %vm493, %v465
      %499 = vst.msk [vmem:[%s221 + $0x28] sm:$0xff] %vm493, %v466
      %500 = vst.msk [vmem:[%s221 + $0x30] sm:$0xff] %vm493, %v467
      %501 = vst.msk [vmem:[%s221 + $0x38] sm:$0xff] %vm493, %v468
      %502 = vst.msk [vmem:[%s221 + $0x40] sm:$0xff] %vm493, %v469
      %503 = vst.msk [vmem:[%s221 + $0x48] sm:$0xff] %vm493, %v470
      %504 = vst.msk [vmem:[%s221 + $0x50] sm:$0xff] %vm493, %v471
      %505 = vst.msk [vmem:[%s221 + $0x58] sm:$0xff] %vm493, %v472
      %506 = vst.msk [vmem:[%s221 + $0x60] sm:$0xff] %vm493, %v473
      %507 = vst.msk [vmem:[%s221 + $0x68] sm:$0xff] %vm493, %v474
      %508 = vst.msk [vmem:[%s221 + $0x70] sm:$0xff] %vm493, %v475
      %509 = vst.msk [vmem:[%s221 + $0x78] sm:$0xff] %vm493, %v476
      %510 = vst.msk [vmem:[%s221 + $0x80] sm:$0xff] %vm493, %v477
      %511 = vst.msk [vmem:[%s221 + $0x88] sm:$0xff] %vm493, %v478
      %512 = vst.msk [vmem:[%s221 + $0x90] sm:$0xff] %vm493, %v479
      %513 = vst.msk [vmem:[%s221 + $0x98] sm:$0xff] %vm493, %v480
      %514 = vst.msk [vmem:[%s221 + $0xa0] sm:$0xff] %vm493, %v481
      %515 = vst.msk [vmem:[%s221 + $0xa8] sm:$0xff] %vm493, %v482
      %516 = vst.msk [vmem:[%s221 + $0xb0] sm:$0xff] %vm493, %v483
      %517 = vst.msk [vmem:[%s221 + $0xb8] sm:$0xff] %vm493, %v484
      %518 = vst.msk [vmem:[%s221 + $0xc0] sm:$0xff] %vm493, %v485
      %519 = vst.msk [vmem:[%s221 + $0xc8] sm:$0xff] %vm493, %v486
      %520 = vst.msk [vmem:[%s221 + $0xd0] sm:$0xff] %vm493, %v487
      %521 = vst.msk [vmem:[%s221 + $0xd8] sm:$0xff] %vm493, %v488
      %522 = vst.msk [vmem:[%s221 + $0xe0] sm:$0xff] %vm493, %v489
      %523 = vst.msk [vmem:[%s221 + $0xe8] sm:$0xff] %vm493, %v490
      %524 = vst.msk [vmem:[%s221 + $0xf0] sm:$0xff] %vm493, %v491
      %525 = vst.msk [vmem:[%s221 + $0xf8] sm:$0xff] %vm493, %v492
      %s526 = smul.u32 32, %s15
      %p527 = scmp.lt.s32.totalorder %s526, 63
      %s528 = scalar_select %p527, %s526, 63
      %s529 = smul.addr %s528, 8
      %s530 = scalar_lea.vmem %s4, %s529
      // Predicated region
      $region37: #{bottleneck_pallas.7} parent=35 // pred_check
        %p531 = pneg %p127
      $region38: #{bottleneck_pallas.7} parent=35 // pred_check_branch
        %533 = sbr.rel (%p531) target = $region40
      $region39: #{bottleneck_pallas.7} parent=35 // pred_region
        %s534 = smul.u32 32, %s15
      $region40: #{bottleneck_pallas.7} parent=35 // pred_fallthru
        _
    $region36: #{bottleneck_pallas.7} parent=5 // pred_fallthru
      _
    %p535 = scmp.le.s32.totalorder 2, %s10
    // Predicated region
    $region41: #{bottleneck_pallas.7} parent=5 // pred_check
      %p536 = pneg %p535
    $region42: #{bottleneck_pallas.7} parent=5 // pred_check_branch
      %538 = sbr.rel (%p536) target = $region44
    $region43: #{bottleneck_pallas.7} parent=5 // pred_region
      %s539 = ssub.s32 %s10, 2
      // Predicated region
      $region45: #{bottleneck_pallas.7} parent=43 // pred_check
        %p540 = pneg %p133
      $region46: #{bottleneck_pallas.7} parent=43 // pred_check_branch
        %542 = sbr.rel (%p540) target = $region48
      $region47: #{bottleneck_pallas.7} parent=43 // pred_region
        %s543 = smul.u32 32, %s16
        %p544 = scmp.lt.s32.totalorder %s543, 63
        %s545 = scalar_select %p544, %s543, 63
        %s546 = smul.addr %s545, 8
        %s547 = scalar_lea.vmem %s4, %s546
      $region48: #{bottleneck_pallas.7} parent=43 // pred_fallthru
        _
    $region44: #{bottleneck_pallas.7} parent=5 // pred_fallthru
      _
  $region6: #{bottleneck_pallas.7} parent=0 // loop_footer
    %s14 = sadd.s32 1, %s10
  $region7: #{bottleneck_pallas.7} parent=0 // loop_footer_branch
    %9 = sbr.rel target = $region3
  $region8: #{bottleneck_pallas.7} parent=0 // loop_exit
    _

// kernel: bottleneck_pallas.5
$region0: #{bottleneck_pallas.5}
  #allocation0 [shape = 'u32[]', space=smem, size = 0x4, offset = 0x4, fixed_abs, tag = 'smem constant byte address 0x4 - core index']
  #allocation1 [shape = 'u32[144,128]{1,0:T(1,128)}', space=vmem, size = 0x12000, scoped, tag = 'internal scratch']
  #allocation2 [shape = 'f32[18,18,4]{2,1,0:T(8,128)}', space=vmem, size = 0x36000, scoped, tag = 'scratch operand']
  %s0 = inlined_call_operand.vmem [shape: bf16[2,16,16,4], index: 0, kind: input, shape index: {}]
  %s1 = inlined_call_operand.vmem [shape: bf16[9,4,4], index: 1, kind: input, shape index: {}]
  %s2 = inlined_call_operand.vmem [shape: f32[1,4], index: 2, kind: input, shape index: {}]
  %s3 = inlined_call_operand.vmem [shape: f32[1,4], index: 3, kind: input, shape index: {}]
  %s4 = inlined_call_operand.vmem [shape: bf16[2,16,16,4], index: 4, kind: output, shape index: {0}]
  %s5 = inlined_call_operand.vmem [shape: f32[2,2,4], index: 5, kind: output, shape index: {1}]
  %6 = xla_tuple %s4, %s5
  %s7 = sld [smem:[#allocation0]]
  $region57: #{bottleneck_pallas.5} parent=0
    _
  %s9 = ssub.s32 1, %s7
  %s10 = scalar_select 0, %s9, %s7
  loop: start=0, step=1, limit=4
  $region2: #{bottleneck_pallas.5} parent=0 // loop_pre_header
    _
  $region3: #{bottleneck_pallas.5} parent=0 // loop_header
    %s12 = sphi 0, %s16
    %p13 = scmp.ge.s32.totalorder %s12, 4
    %s22 = sphi 0, %s24
    %s25 = sphi 0, %s22
    %s26 = sphi 0, %s25
    %s42 = sphi 0, %s26
    %s46 = sphi 0, %s46
    %s48 = sphi 0, %s46
    %s49 = sphi 0, %s48
    %s63 = sphi 0, %s49
    %s67 = sphi 0, %s67
    %s69 = sphi 0, %s67
    %s70 = sphi 0, %s69
    %s84 = sphi 0, %s70
    %s88 = sphi 0, %s88
    %s90 = sphi 0, %s88
    %s91 = sphi 0, %s90
    %s105 = sphi 0, %s91
    %s111 = sphi 0, %s113
    %s114 = sphi 0, %s111
    %s115 = sphi 0, %s114
    %s131 = sphi 0, %s115
    %s137 = sphi 0, %s139
    %s140 = sphi 0, %s137
    %s141 = sphi 0, %s140
    %s157 = sphi 0, %s141
  $region4: #{bottleneck_pallas.5} parent=0 // loop_header_branch
    %15 = sbr.rel (%p13) target = $region8
  $region5: #{bottleneck_pallas.5} parent=0 // loop_body
    %s17 = ssub.s32 %s12, 1
    %s18 = ssub.s32 %s12, 2
    %s19 = sadd.s32 %s12, 1
    %s20 = ssub.s32 %s12, %s19
    %p21 = scmp.eq.s32.totalorder %s20, 0
    %s23 = sadd.s32 %s22, 1
    %s24 = scalar_select %p21, %s22, %s23
    %p27 = pneg %p21
    %p28 = scmp.eq.s32.totalorder %s12, 1
    %p29 = por %p27, %p28
    %p30 = scmp.ne.s32.totalorder %s22, %s25
    %p31 = scmp.eq.s32.totalorder %s12, 0
    %p32 = por %p30, %p31
    %p33 = scmp.ne.s32.totalorder %s22, %s25
    %p34 = scmp.eq.s32.totalorder %s17, 1
    %p35 = por %p33, %p34
    %p36 = scmp.ne.s32.totalorder %s25, %s26
    %p37 = scmp.eq.s32.totalorder %s17, 0
    %p38 = por %p36, %p37
    %p39 = scmp.ne.s32.totalorder %s25, %s26
    %p40 = scmp.eq.s32.totalorder %s18, 1
    %p41 = por %p39, %p40
    %p43 = scmp.ne.s32.totalorder %s26, %s42
    %p44 = scmp.eq.s32.totalorder %s18, 0
    %p45 = por %p43, %p44
    %s47 = sadd.s32 %s46, 1
    %p50 = scmp.eq.s32.totalorder %s12, 1
    %p51 = scmp.ne.s32.totalorder %s46, %s48
    %p52 = scmp.eq.s32.totalorder %s12, 0
    %p53 = por %p51, %p52
    %p54 = scmp.ne.s32.totalorder %s46, %s48
    %p55 = scmp.eq.s32.totalorder %s17, 1
    %p56 = por %p54, %p55
    %p57 = scmp.ne.s32.totalorder %s48, %s49
    %p58 = scmp.eq.s32.totalorder %s17, 0
    %p59 = por %p57, %p58
    %p60 = scmp.ne.s32.totalorder %s48, %s49
    %p61 = scmp.eq.s32.totalorder %s18, 1
    %p62 = por %p60, %p61
    %p64 = scmp.ne.s32.totalorder %s49, %s63
    %p65 = scmp.eq.s32.totalorder %s18, 0
    %p66 = por %p64, %p65
    %s68 = sadd.s32 %s67, 1
    %p71 = scmp.eq.s32.totalorder %s12, 1
    %p72 = scmp.ne.s32.totalorder %s67, %s69
    %p73 = scmp.eq.s32.totalorder %s12, 0
    %p74 = por %p72, %p73
    %p75 = scmp.ne.s32.totalorder %s67, %s69
    %p76 = scmp.eq.s32.totalorder %s17, 1
    %p77 = por %p75, %p76
    %p78 = scmp.ne.s32.totalorder %s69, %s70
    %p79 = scmp.eq.s32.totalorder %s17, 0
    %p80 = por %p78, %p79
    %p81 = scmp.ne.s32.totalorder %s69, %s70
    %p82 = scmp.eq.s32.totalorder %s18, 1
    %p83 = por %p81, %p82
    %p85 = scmp.ne.s32.totalorder %s70, %s84
    %p86 = scmp.eq.s32.totalorder %s18, 0
    %p87 = por %p85, %p86
    %s89 = sadd.s32 %s88, 1
    %p92 = scmp.eq.s32.totalorder %s12, 1
    %p93 = scmp.ne.s32.totalorder %s88, %s90
    %p94 = scmp.eq.s32.totalorder %s12, 0
    %p95 = por %p93, %p94
    %p96 = scmp.ne.s32.totalorder %s88, %s90
    %p97 = scmp.eq.s32.totalorder %s17, 1
    %p98 = por %p96, %p97
    %p99 = scmp.ne.s32.totalorder %s90, %s91
    %p100 = scmp.eq.s32.totalorder %s17, 0
    %p101 = por %p99, %p100
    %p102 = scmp.ne.s32.totalorder %s90, %s91
    %p103 = scmp.eq.s32.totalorder %s18, 1
    %p104 = por %p102, %p103
    %p106 = scmp.ne.s32.totalorder %s91, %s105
    %p107 = scmp.eq.s32.totalorder %s18, 0
    %p108 = por %p106, %p107
    %s109 = ssub.s32 %s12, %s19
    %p110 = scmp.eq.s32.totalorder %s109, 0
    %s112 = sadd.s32 %s111, 1
    %s113 = scalar_select %p110, %s111, %s112
    %p116 = pneg %p110
    %p117 = scmp.eq.s32.totalorder %s12, 1
    %p118 = por %p116, %p117
    %p119 = scmp.ne.s32.totalorder %s111, %s114
    %p120 = scmp.eq.s32.totalorder %s12, 0
    %p121 = por %p119, %p120
    %p122 = scmp.ne.s32.totalorder %s111, %s114
    %p123 = scmp.eq.s32.totalorder %s17, 1
    %p124 = por %p122, %p123
    %p125 = scmp.ne.s32.totalorder %s114, %s115
    %p126 = scmp.eq.s32.totalorder %s17, 0
    %p127 = por %p125, %p126
    %p128 = scmp.ne.s32.totalorder %s114, %s115
    %p129 = scmp.eq.s32.totalorder %s18, 1
    %p130 = por %p128, %p129
    %p132 = scmp.ne.s32.totalorder %s115, %s131
    %p133 = scmp.eq.s32.totalorder %s18, 0
    %p134 = por %p132, %p133
    %s135 = ssub.s32 %s12, %s19
    %p136 = scmp.eq.s32.totalorder %s135, 0
    %s138 = sadd.s32 %s137, 1
    %s139 = scalar_select %p136, %s137, %s138
    %p142 = pneg %p136
    %p143 = scmp.eq.s32.totalorder %s12, 1
    %p144 = por %p142, %p143
    %p145 = scmp.ne.s32.totalorder %s137, %s140
    %p146 = scmp.eq.s32.totalorder %s12, 0
    %p147 = por %p145, %p146
    %p148 = scmp.ne.s32.totalorder %s137, %s140
    %p149 = scmp.eq.s32.totalorder %s17, 1
    %p150 = por %p148, %p149
    %p151 = scmp.ne.s32.totalorder %s140, %s141
    %p152 = scmp.eq.s32.totalorder %s17, 0
    %p153 = por %p151, %p152
    %p154 = scmp.ne.s32.totalorder %s140, %s141
    %p155 = scmp.eq.s32.totalorder %s18, 1
    %p156 = por %p154, %p155
    %p158 = scmp.ne.s32.totalorder %s141, %s157
    %p159 = scmp.eq.s32.totalorder %s18, 0
    %p160 = por %p158, %p159
    %p161 = scmp.le.s32.totalorder 1, %s12
    %p162 = scmp.lt.s32.totalorder %s12, 3
    %p163 = pnand %p161, %p162
    %p164 = pneg %p163
    // Predicated region
    $region9: #{bottleneck_pallas.5} parent=5 // pred_check
      _
    $region10: #{bottleneck_pallas.5} parent=5 // pred_check_branch
      %166 = sbr.rel (%p163) target = $region12
    $region11: #{bottleneck_pallas.5} parent=5 // pred_region
      %s167 = ssub.s32 %s12, 1
      // Predicated region
      $region13: #{bottleneck_pallas.5} parent=11 // pred_check
        %p168 = pneg %p59
      $region14: #{bottleneck_pallas.5} parent=11 // pred_check_branch
        %170 = sbr.rel (%p168) target = $region16
      $region15: #{bottleneck_pallas.5} parent=11 // pred_region
        _
      $region16: #{bottleneck_pallas.5} parent=11 // pred_fallthru
        _
      // Predicated region
      $region17: #{bottleneck_pallas.5} parent=11 // pred_check
        %p171 = pneg %p80
      $region18: #{bottleneck_pallas.5} parent=11 // pred_check_branch
        %173 = sbr.rel (%p171) target = $region20
      $region19: #{bottleneck_pallas.5} parent=11 // pred_region
        _
      $region20: #{bottleneck_pallas.5} parent=11 // pred_fallthru
        _
      // Predicated region
      $region21: #{bottleneck_pallas.5} parent=11 // pred_check
        %p174 = pneg %p101
      $region22: #{bottleneck_pallas.5} parent=11 // pred_check_branch
        %176 = sbr.rel (%p174) target = $region24
      $region23: #{bottleneck_pallas.5} parent=11 // pred_region
        _
      $region24: #{bottleneck_pallas.5} parent=11 // pred_fallthru
        _
    $region12: #{bottleneck_pallas.5} parent=5 // pred_fallthru
      _
    %p177 = scmp.lt.s32.totalorder %s12, 2
    // Predicated region
    $region25: #{bottleneck_pallas.5} parent=5 // pred_check
      %p178 = pneg %p177
    $region26: #{bottleneck_pallas.5} parent=5 // pred_check_branch
      %180 = sbr.rel (%p178) target = $region28
    $region27: #{bottleneck_pallas.5} parent=5 // pred_region
      // Predicated region
      $region29: #{bottleneck_pallas.5} parent=27 // pred_check
        %p181 = pneg %p32
      $region30: #{bottleneck_pallas.5} parent=27 // pred_check_branch
        %183 = sbr.rel (%p181) target = $region32
      $region31: #{bottleneck_pallas.5} parent=27 // pred_region
        %p184 = scmp.lt.s32.totalorder %s12, 1
        %s185 = scalar_select %p184, %s12, 1
        %s186 = smul.addr %s185, 32
        %s187 = smul.addr %s186, 4
        %s188 = scalar_lea.vmem %s0, %s187
      $region32: #{bottleneck_pallas.5} parent=27 // pred_fallthru
        _
    $region28: #{bottleneck_pallas.5} parent=5 // pred_fallthru
      _
    %p189 = scmp.le.s32.totalorder 1, %s12
    %p190 = scmp.lt.s32.totalorder %s12, 3
    %p191 = pnand %p189, %p190
    %p192 = pneg %p191
    // Predicated region
    $region33: #{bottleneck_pallas.5} parent=5 // pred_check
      _
    $region34: #{bottleneck_pallas.5} parent=5 // pred_check_branch
      %194 = sbr.rel (%p191) target = $region36
    $region35: #{bottleneck_pallas.5} parent=5 // pred_region
      %s195 = ssub.s32 %s12, 1
      %p196 = scmp.lt.s32.totalorder %s17, 1
      %s197 = scalar_select %p196, %s17, 1
      %s198 = smul.addr %s197, 32
      %s199 = smul.addr %s198, 4
      %s200 = scalar_lea.vmem %s0, %s199
      %p201 = pneg %p38
      %p202 = pneg %p35
      %p203 = pneg %p59
      %p204 = pneg %p56
      %p205 = pneg %p80
      %p206 = pneg %p77
      %p207 = pneg %p101
      %p208 = pneg %p98
      %p209 = pneg %p127
      %p210 = pneg %p124
      %p211 = scmp.lt.s32.totalorder %s17, 1
      %s212 = scalar_select %p211, %s17, 1
      %s213 = smul.addr %s212, 32
      %s214 = smul.addr %s213, 4
      %s215 = scalar_lea.vmem %s4, %s214
      %p216 = pneg %p153
      %p217 = pneg %p150
      %p218 = scmp.lt.s32.totalorder %s17, 1
      %s219 = scalar_select %p218, %s17, 1
      %s220 = smul.addr %s219, 2
      %s221 = scalar_lea.vmem %s5, %s220
      %p222 = scmp.lt.s32.totalorder %s17, 1
      %s223 = scalar_select %p222, %s17, 1
      %s224 = smul.addr %s223, 32
      %s225 = smul.addr %s224, 4
      %s226 = scalar_lea.vmem %s0, %s225
      %p227 = scmp.lt.s32.totalorder %s17, 1
      %s228 = scalar_select %p227, %s17, 1
      %s229 = smul.addr %s228, 32
      %s230 = smul.addr %s229, 4
      %s231 = scalar_lea.vmem %s4, %s230
      %p232 = scmp.lt.s32.totalorder %s17, 1
      %s233 = scalar_select %p232, %s17, 1
      %s234 = smul.addr %s233, 2
      %s235 = scalar_lea.vmem %s5, %s234
      %vm237 = vcmask 31744
      %238 = vst.msk [vmem:[#allocation2] sm:$0xff] %vm237, 0.0
      %239 = vst.msk [vmem:[#allocation2 + $0x8] sm:$0xff] %vm237, 0.0
      %vm240 = vcmask 25600
      %241 = vst.msk [vmem:[#allocation2 + $0x10] sm:$0x3] %vm240, 0.0
      %s242 = scalar_lea.vmem [#allocation2], 408
      %243 = vst.msk [vmem:[%s242] sm:$0xff] %vm237, 0.0
      %244 = vst.msk [vmem:[%s242 + $0x8] sm:$0xff] %vm237, 0.0
      %245 = vst.msk [vmem:[%s242 + $0x10] sm:$0x3] %vm240, 0.0
      %vm246 = vcmask 24576
      %247 = vst.msk [vmem:[#allocation2] sm:$0x1] %vm246, 0.0
      %248 = vst.msk [vmem:[#allocation2 + $0x18] sm:$0x1] %vm246, 0.0
      %249 = vst.msk [vmem:[#allocation2 + $0x30] sm:$0x1] %vm246, 0.0
      %250 = vst.msk [vmem:[#allocation2 + $0x48] sm:$0x1] %vm246, 0.0
      %251 = vst.msk [vmem:[#allocation2 + $0x60] sm:$0x1] %vm246, 0.0
      %252 = vst.msk [vmem:[#allocation2 + $0x78] sm:$0x1] %vm246, 0.0
      %253 = vst.msk [vmem:[#allocation2 + $0x90] sm:$0x1] %vm246, 0.0
      %254 = vst.msk [vmem:[#allocation2 + $0xa8] sm:$0x1] %vm246, 0.0
      %255 = vst.msk [vmem:[#allocation2 + $0xc0] sm:$0x1] %vm246, 0.0
      %256 = vst.msk [vmem:[#allocation2 + $0xd8] sm:$0x1] %vm246, 0.0
      %257 = vst.msk [vmem:[#allocation2 + $0xf0] sm:$0x1] %vm246, 0.0
      %258 = vst.msk [vmem:[#allocation2 + $0x108] sm:$0x1] %vm246, 0.0
      %259 = vst.msk [vmem:[#allocation2 + $0x120] sm:$0x1] %vm246, 0.0
      %260 = vst.msk [vmem:[#allocation2 + $0x138] sm:$0x1] %vm246, 0.0
      %261 = vst.msk [vmem:[#allocation2 + $0x150] sm:$0x1] %vm246, 0.0
      %262 = vst.msk [vmem:[#allocation2 + $0x168] sm:$0x1] %vm246, 0.0
      %263 = vst.msk [vmem:[#allocation2 + $0x180] sm:$0x1] %vm246, 0.0
      %264 = vst.msk [vmem:[#allocation2 + $0x198] sm:$0x1] %vm246, 0.0
      %265 = vst.msk [vmem:[#allocation2 + $0x11] sm:$0x1] %vm246, 0.0
      %266 = vst.msk [vmem:[#allocation2 + $0x29] sm:$0x1] %vm246, 0.0
      %267 = vst.msk [vmem:[#allocation2 + $0x41] sm:$0x1] %vm246, 0.0
      %268 = vst.msk [vmem:[#allocation2 + $0x59] sm:$0x1] %vm246, 0.0
      %269 = vst.msk [vmem:[#allocation2 + $0x71] sm:$0x1] %vm246, 0.0
      %270 = vst.msk [vmem:[#allocation2 + $0x89] sm:$0x1] %vm246, 0.0
      %271 = vst.msk [vmem:[#allocation2 + $0xa1] sm:$0x1] %vm246, 0.0
      %272 = vst.msk [vmem:[#allocation2 + $0xb9] sm:$0x1] %vm246, 0.0
      %273 = vst.msk [vmem:[#allocation2 + $0xd1] sm:$0x1] %vm246, 0.0
      %274 = vst.msk [vmem:[#allocation2 + $0xe9] sm:$0x1] %vm246, 0.0
      %275 = vst.msk [vmem:[#allocation2 + $0x101] sm:$0x1] %vm246, 0.0
      %276 = vst.msk [vmem:[#allocation2 + $0x119] sm:$0x1] %vm246, 0.0
      %277 = vst.msk [vmem:[#allocation2 + $0x131] sm:$0x1] %vm246, 0.0
      %278 = vst.msk [vmem:[#allocation2 + $0x149] sm:$0x1] %vm246, 0.0
      %279 = vst.msk [vmem:[#allocation2 + $0x161] sm:$0x1] %vm246, 0.0
      %280 = vst.msk [vmem:[#allocation2 + $0x179] sm:$0x1] %vm246, 0.0
      %281 = vst.msk [vmem:[#allocation2 + $0x191] sm:$0x1] %vm246, 0.0
      %282 = vst.msk [vmem:[#allocation2 + $0x1a9] sm:$0x1] %vm246, 0.0
      %v283 = vld [vmem:[%s226] sm:$0xf]
      %v284 = vld [vmem:[%s226 + $0x4] sm:$0xf]
      %v285 = vld [vmem:[%s226 + $0x8] sm:$0xf]
      %v286 = vld [vmem:[%s226 + $0xc] sm:$0xf]
      %v287 = vld [vmem:[%s226 + $0x10] sm:$0xf]
      %v288 = vld [vmem:[%s226 + $0x14] sm:$0xf]
      %v289 = vld [vmem:[%s226 + $0x18] sm:$0xf]
      %v290 = vld [vmem:[%s226 + $0x1c] sm:$0xf]
      %v291 = vld [vmem:[%s226 + $0x20] sm:$0xf]
      %v292 = vld [vmem:[%s226 + $0x24] sm:$0xf]
      %v293 = vld [vmem:[%s226 + $0x28] sm:$0xf]
      %v294 = vld [vmem:[%s226 + $0x2c] sm:$0xf]
      %v295 = vld [vmem:[%s226 + $0x30] sm:$0xf]
      %v296 = vld [vmem:[%s226 + $0x34] sm:$0xf]
      %v297 = vld [vmem:[%s226 + $0x38] sm:$0xf]
      %v298 = vld [vmem:[%s226 + $0x3c] sm:$0xf]
      %v299 = vld [vmem:[%s226 + $0x40] sm:$0xf]
      %v300 = vld [vmem:[%s226 + $0x44] sm:$0xf]
      %v301 = vld [vmem:[%s226 + $0x48] sm:$0xf]
      %v302 = vld [vmem:[%s226 + $0x4c] sm:$0xf]
      %v303 = vld [vmem:[%s226 + $0x50] sm:$0xf]
      %v304 = vld [vmem:[%s226 + $0x54] sm:$0xf]
      %v305 = vld [vmem:[%s226 + $0x58] sm:$0xf]
      %v306 = vld [vmem:[%s226 + $0x5c] sm:$0xf]
      %v307 = vld [vmem:[%s226 + $0x60] sm:$0xf]
      %v308 = vld [vmem:[%s226 + $0x64] sm:$0xf]
      %v309 = vld [vmem:[%s226 + $0x68] sm:$0xf]
      %v310 = vld [vmem:[%s226 + $0x6c] sm:$0xf]
      %v311 = vld [vmem:[%s226 + $0x70] sm:$0xf]
      %v312 = vld [vmem:[%s226 + $0x74] sm:$0xf]
      %v313 = vld [vmem:[%s226 + $0x78] sm:$0xf]
      %v314 = vld [vmem:[%s226 + $0x7c] sm:$0xf]
      %v315 = vunpack.c.l.bf16 %v283
      %v316 = vunpack.c.l.bf16 %v284
      %v317 = vunpack.c.l.bf16 %v285
      %v318 = vunpack.c.l.bf16 %v286
      %v319 = vunpack.c.l.bf16 %v287
      %v320 = vunpack.c.l.bf16 %v288
      %v321 = vunpack.c.l.bf16 %v289
      %v322 = vunpack.c.l.bf16 %v290
      %v323 = vunpack.c.l.bf16 %v291
      %v324 = vunpack.c.l.bf16 %v292
      %v325 = vunpack.c.l.bf16 %v293
      %v326 = vunpack.c.l.bf16 %v294
      %v327 = vunpack.c.l.bf16 %v295
      %v328 = vunpack.c.l.bf16 %v296
      %v329 = vunpack.c.l.bf16 %v297
      %v330 = vunpack.c.l.bf16 %v298
      %v331 = vunpack.c.l.bf16 %v299
      %v332 = vunpack.c.l.bf16 %v300
      %v333 = vunpack.c.l.bf16 %v301
      %v334 = vunpack.c.l.bf16 %v302
      %v335 = vunpack.c.l.bf16 %v303
      %v336 = vunpack.c.l.bf16 %v304
      %v337 = vunpack.c.l.bf16 %v305
      %v338 = vunpack.c.l.bf16 %v306
      %v339 = vunpack.c.l.bf16 %v307
      %v340 = vunpack.c.l.bf16 %v308
      %v341 = vunpack.c.l.bf16 %v309
      %v342 = vunpack.c.l.bf16 %v310
      %v343 = vunpack.c.l.bf16 %v311
      %v344 = vunpack.c.l.bf16 %v312
      %v345 = vunpack.c.l.bf16 %v313
      %v346 = vunpack.c.l.bf16 %v314
      %v347 = vld [vmem:[%s2] sm:$0x1]
      %v349 = vlaneseq
      %v350 = vshrl.u32 %v349, 7
      %v351 = vsub.s32 0, %v350
      %v352 = vrot.slane %v347, %v351
      %v354 = vmul.f32 %v315, %v352
      %v355 = vmul.f32 %v316, %v352
      %v356 = vmul.f32 %v317, %v352
      %v357 = vmul.f32 %v318, %v352
      %v358 = vmul.f32 %v319, %v352
      %v359 = vmul.f32 %v320, %v352
      %v360 = vmul.f32 %v321, %v352
      %v361 = vmul.f32 %v322, %v352
      %v362 = vmul.f32 %v323, %v352
      %v363 = vmul.f32 %v324, %v352
      %v364 = vmul.f32 %v325, %v352
      %v365 = vmul.f32 %v326, %v352
      %v366 = vmul.f32 %v327, %v352
      %v367 = vmul.f32 %v328, %v352
      %v368 = vmul.f32 %v329, %v352
      %v369 = vmul.f32 %v330, %v352
      %v370 = vmul.f32 %v331, %v352
      %v371 = vmul.f32 %v332, %v352
      %v372 = vmul.f32 %v333, %v352
      %v373 = vmul.f32 %v334, %v352
      %v374 = vmul.f32 %v335, %v352
      %v375 = vmul.f32 %v336, %v352
      %v376 = vmul.f32 %v337, %v352
      %v377 = vmul.f32 %v338, %v352
      %v378 = vmul.f32 %v339, %v352
      %v379 = vmul.f32 %v340, %v352
      %v380 = vmul.f32 %v341, %v352
      %v381 = vmul.f32 %v342, %v352
      %v382 = vmul.f32 %v343, %v352
      %v383 = vmul.f32 %v344, %v352
      %v384 = vmul.f32 %v345, %v352
      %v385 = vmul.f32 %v346, %v352
      %v386 = vld [vmem:[%s3] sm:$0x1]
      %v388 = vlaneseq
      %v389 = vshrl.u32 %v388, 7
      %v390 = vsub.s32 0, %v389
      %v391 = vrot.slane %v386, %v390
      %v393 = vadd.f32 %v354, %v391
      %v394 = vadd.f32 %v355, %v391
      %v395 = vadd.f32 %v356, %v391
      %v396 = vadd.f32 %v357, %v391
      %v397 = vadd.f32 %v358, %v391
      %v398 = vadd.f32 %v359, %v391
      %v399 = vadd.f32 %v360, %v391
      %v400 = vadd.f32 %v361, %v391
      %v401 = vadd.f32 %v362, %v391
      %v402 = vadd.f32 %v363, %v391
      %v403 = vadd.f32 %v364, %v391
      %v404 = vadd.f32 %v365, %v391
      %v405 = vadd.f32 %v366, %v391
      %v406 = vadd.f32 %v367, %v391
      %v407 = vadd.f32 %v368, %v391
      %v408 = vadd.f32 %v369, %v391
      %v409 = vadd.f32 %v370, %v391
      %v410 = vadd.f32 %v371, %v391
      %v411 = vadd.f32 %v372, %v391
      %v412 = vadd.f32 %v373, %v391
      %v413 = vadd.f32 %v374, %v391
      %v414 = vadd.f32 %v375, %v391
      %v415 = vadd.f32 %v376, %v391
      %v416 = vadd.f32 %v377, %v391
      %v417 = vadd.f32 %v378, %v391
      %v418 = vadd.f32 %v379, %v391
      %v419 = vadd.f32 %v380, %v391
      %v420 = vadd.f32 %v381, %v391
      %v421 = vadd.f32 %v382, %v391
      %v422 = vadd.f32 %v383, %v391
      %v423 = vadd.f32 %v384, %v391
      %v424 = vadd.f32 %v385, %v391
      %v425 = vmax.f32 %v393, 0.0
      %v426 = vmax.f32 %v394, 0.0
      %v427 = vmax.f32 %v395, 0.0
      %v428 = vmax.f32 %v396, 0.0
      %v429 = vmax.f32 %v397, 0.0
      %v430 = vmax.f32 %v398, 0.0
      %v431 = vmax.f32 %v399, 0.0
      %v432 = vmax.f32 %v400, 0.0
      %v433 = vmax.f32 %v401, 0.0
      %v434 = vmax.f32 %v402, 0.0
      %v435 = vmax.f32 %v403, 0.0
      %v436 = vmax.f32 %v404, 0.0
      %v437 = vmax.f32 %v405, 0.0
      %v438 = vmax.f32 %v406, 0.0
      %v439 = vmax.f32 %v407, 0.0
      %v440 = vmax.f32 %v408, 0.0
      %v441 = vmax.f32 %v409, 0.0
      %v442 = vmax.f32 %v410, 0.0
      %v443 = vmax.f32 %v411, 0.0
      %v444 = vmax.f32 %v412, 0.0
      %v445 = vmax.f32 %v413, 0.0
      %v446 = vmax.f32 %v414, 0.0
      %v447 = vmax.f32 %v415, 0.0
      %v448 = vmax.f32 %v416, 0.0
      %v449 = vmax.f32 %v417, 0.0
      %v450 = vmax.f32 %v418, 0.0
      %v451 = vmax.f32 %v419, 0.0
      %v452 = vmax.f32 %v420, 0.0
      %v453 = vmax.f32 %v421, 0.0
      %v454 = vmax.f32 %v422, 0.0
      %v455 = vmax.f32 %v423, 0.0
      %v456 = vmax.f32 %v424, 0.0
      %s457 = scalar_lea.vmem [#allocation2], 24
      %458 = vst.msk [vmem:[%s457 + $0x1] sm:$0xff] %vm237, %v425
      %459 = vst.msk [vmem:[%s457 + $0x9] sm:$0xff] %vm237, %v426
      %460 = vst.msk [vmem:[%s457 + $0x19] sm:$0xff] %vm237, %v427
      %461 = vst.msk [vmem:[%s457 + $0x21] sm:$0xff] %vm237, %v428
      %462 = vst.msk [vmem:[%s457 + $0x31] sm:$0xff] %vm237, %v429
      %463 = vst.msk [vmem:[%s457 + $0x39] sm:$0xff] %vm237, %v430
      %464 = vst.msk [vmem:[%s457 + $0x49] sm:$0xff] %vm237, %v431
      %465 = vst.msk [vmem:[%s457 + $0x51] sm:$0xff] %vm237, %v432
      %466 = vst.msk [vmem:[%s457 + $0x61] sm:$0xff] %vm237, %v433
      %467 = vst.msk [vmem:[%s457 + $0x69] sm:$0xff] %vm237, %v434
      %468 = vst.msk [vmem:[%s457 + $0x79] sm:$0xff] %vm237, %v435
      %469 = vst.msk [vmem:[%s457 + $0x81] sm:$0xff] %vm237, %v436
      %470 = vst.msk [vmem:[%s457 + $0x91] sm:$0xff] %vm237, %v437
      %471 = vst.msk [vmem:[%s457 + $0x99] sm:$0xff] %vm237, %v438
      %472 = vst.msk [vmem:[%s457 + $0xa9] sm:$0xff] %vm237, %v439
      %473 = vst.msk [vmem:[%s457 + $0xb1] sm:$0xff] %vm237, %v440
      %474 = vst.msk [vmem:[%s457 + $0xc1] sm:$0xff] %vm237, %v441
      %475 = vst.msk [vmem:[%s457 + $0xc9] sm:$0xff] %vm237, %v442
      %476 = vst.msk [vmem:[%s457 + $0xd9] sm:$0xff] %vm237, %v443
      %477 = vst.msk [vmem:[%s457 + $0xe1] sm:$0xff] %vm237, %v444
      %478 = vst.msk [vmem:[%s457 + $0xf1] sm:$0xff] %vm237, %v445
      %479 = vst.msk [vmem:[%s457 + $0xf9] sm:$0xff] %vm237, %v446
      %480 = vst.msk [vmem:[%s457 + $0x109] sm:$0xff] %vm237, %v447
      %481 = vst.msk [vmem:[%s457 + $0x111] sm:$0xff] %vm237, %v448
      %482 = vst.msk [vmem:[%s457 + $0x121] sm:$0xff] %vm237, %v449
      %483 = vst.msk [vmem:[%s457 + $0x129] sm:$0xff] %vm237, %v450
      %484 = vst.msk [vmem:[%s457 + $0x139] sm:$0xff] %vm237, %v451
      %485 = vst.msk [vmem:[%s457 + $0x141] sm:$0xff] %vm237, %v452
      %486 = vst.msk [vmem:[%s457 + $0x151] sm:$0xff] %vm237, %v453
      %487 = vst.msk [vmem:[%s457 + $0x159] sm:$0xff] %vm237, %v454
      %488 = vst.msk [vmem:[%s457 + $0x169] sm:$0xff] %vm237, %v455
      %489 = vst.msk [vmem:[%s457 + $0x171] sm:$0xff] %vm237, %v456
      %v490 = vld [vmem:[#allocation2] sm:$0xff]
      %v491 = vld [vmem:[#allocation2 + $0x8] sm:$0xff]
      %v492 = vld [vmem:[#allocation2 + $0x18] sm:$0xff]
      %v493 = vld [vmem:[#allocation2 + $0x20] sm:$0xff]
      %v494 = vld [vmem:[#allocation2 + $0x30] sm:$0xff]
      %v495 = vld [vmem:[#allocation2 + $0x38] sm:$0xff]
      %v496 = vld [vmem:[#allocation2 + $0x48] sm:$0xff]
      %v497 = vld [vmem:[#allocation2 + $0x50] sm:$0xff]
      %v498 = vld [vmem:[#allocation2 + $0x60] sm:$0xff]
      %v499 = vld [vmem:[#allocation2 + $0x68] sm:$0xff]
      %v500 = vld [vmem:[#allocation2 + $0x78] sm:$0xff]
      %v501 = vld [vmem:[#allocation2 + $0x80] sm:$0xff]
      %v502 = vld [vmem:[#allocation2 + $0x90] sm:$0xff]
      %v503 = vld [vmem:[#allocation2 + $0x98] sm:$0xff]
      %v504 = vld [vmem:[#allocation2 + $0xa8] sm:$0xff]
      %v505 = vld [vmem:[#allocation2 + $0xb0] sm:$0xff]
      %v506 = vld [vmem:[#allocation2 + $0xc0] sm:$0xff]
      %v507 = vld [vmem:[#allocation2 + $0xc8] sm:$0xff]
      %v508 = vld [vmem:[#allocation2 + $0xd8] sm:$0xff]
      %v509 = vld [vmem:[#allocation2 + $0xe0] sm:$0xff]
      %v510 = vld [vmem:[#allocation2 + $0xf0] sm:$0xff]
      %v511 = vld [vmem:[#allocation2 + $0xf8] sm:$0xff]
      %v512 = vld [vmem:[#allocation2 + $0x108] sm:$0xff]
      %v513 = vld [vmem:[#allocation2 + $0x110] sm:$0xff]
      %v514 = vld [vmem:[#allocation2 + $0x120] sm:$0xff]
      %v515 = vld [vmem:[#allocation2 + $0x128] sm:$0xff]
      %v516 = vld [vmem:[#allocation2 + $0x138] sm:$0xff]
      %v517 = vld [vmem:[#allocation2 + $0x140] sm:$0xff]
      %v518 = vld [vmem:[#allocation2 + $0x150] sm:$0xff]
      %v519 = vld [vmem:[#allocation2 + $0x158] sm:$0xff]
      %v520 = vld [vmem:[#allocation2 + $0x168] sm:$0xff]
      %v521 = vld [vmem:[#allocation2 + $0x170] sm:$0xff]
      %v522 = vpack.c.bf16 %v491, %v490
      %v523 = vpack.c.bf16 %v493, %v492
      %v524 = vpack.c.bf16 %v495, %v494
      %v525 = vpack.c.bf16 %v497, %v496
      %v526 = vpack.c.bf16 %v499, %v498
      %v527 = vpack.c.bf16 %v501, %v500
      %v528 = vpack.c.bf16 %v503, %v502
      %v529 = vpack.c.bf16 %v505, %v504
      %v530 = vpack.c.bf16 %v507, %v506
      %v531 = vpack.c.bf16 %v509, %v508
      %v532 = vpack.c.bf16 %v511, %v510
      %v533 = vpack.c.bf16 %v513, %v512
      %v534 = vpack.c.bf16 %v515, %v514
      %v535 = vpack.c.bf16 %v517, %v516
      %v536 = vpack.c.bf16 %v519, %v518
      %v537 = vpack.c.bf16 %v521, %v520
      %v538 = vld [vmem:[%s1] sm:$0x3]
      %v539 = vld [vmem:[#allocation2 + $0x1] sm:$0xff]
      %v540 = vld [vmem:[#allocation2 + $0x9] sm:$0xff]
      %v541 = vld [vmem:[#allocation2 + $0x19] sm:$0xff]
      %v542 = vld [vmem:[#allocation2 + $0x21] sm:$0xff]
      %v543 = vld [vmem:[#allocation2 + $0x31] sm:$0xff]
      %v544 = vld [vmem:[#allocation2 + $0x39] sm:$0xff]
      %v545 = vld [vmem:[#allocation2 + $0x49] sm:$0xff]
      %v546 = vld [vmem:[#allocation2 + $0x51] sm:$0xff]
      %v547 = vld [vmem:[#allocation2 + $0x61] sm:$0xff]
      %v548 = vld [vmem:[#allocation2 + $0x69] sm:$0xff]
      %v549 = vld [vmem:[#allocation2 + $0x79] sm:$0xff]
      %v550 = vld [vmem:[#allocation2 + $0x81] sm:$0xff]
      %v551 = vld [vmem:[#allocation2 + $0x91] sm:$0xff]
      %v552 = vld [vmem:[#allocation2 + $0x99] sm:$0xff]
      %v553 = vld [vmem:[#allocation2 + $0xa9] sm:$0xff]
      %v554 = vld [vmem:[#allocation2 + $0xb1] sm:$0xff]
      %v555 = vld [vmem:[#allocation2 + $0xc1] sm:$0xff]
      %v556 = vld [vmem:[#allocation2 + $0xc9] sm:$0xff]
      %v557 = vld [vmem:[#allocation2 + $0xd9] sm:$0xff]
      %v558 = vld [vmem:[#allocation2 + $0xe1] sm:$0xff]
      %v559 = vld [vmem:[#allocation2 + $0xf1] sm:$0xff]
      %v560 = vld [vmem:[#allocation2 + $0xf9] sm:$0xff]
      %v561 = vld [vmem:[#allocation2 + $0x109] sm:$0xff]
      %v562 = vld [vmem:[#allocation2 + $0x111] sm:$0xff]
      %v563 = vld [vmem:[#allocation2 + $0x121] sm:$0xff]
      %v564 = vld [vmem:[#allocation2 + $0x129] sm:$0xff]
      %v565 = vld [vmem:[#allocation2 + $0x139] sm:$0xff]
      %v566 = vld [vmem:[#allocation2 + $0x141] sm:$0xff]
      %v567 = vld [vmem:[#allocation2 + $0x151] sm:$0xff]
      %v568 = vld [vmem:[#allocation2 + $0x159] sm:$0xff]
      %v569 = vld [vmem:[#allocation2 + $0x169] sm:$0xff]
      %v570 = vld [vmem:[#allocation2 + $0x171] sm:$0xff]
      %v571 = vpack.c.bf16 %v540, %v539
      %v572 = vpack.c.bf16 %v542, %v541
      %v573 = vpack.c.bf16 %v544, %v543
      %v574 = vpack.c.bf16 %v546, %v545
      %v575 = vpack.c.bf16 %v548, %v547
      %v576 = vpack.c.bf16 %v550, %v549
      %v577 = vpack.c.bf16 %v552, %v551
      %v578 = vpack.c.bf16 %v554, %v553
      %v579 = vpack.c.bf16 %v556, %v555
      %v580 = vpack.c.bf16 %v558, %v557
      %v581 = vpack.c.bf16 %v560, %v559
      %v582 = vpack.c.bf16 %v562, %v561
      %v583 = vpack.c.bf16 %v564, %v563
      %v584 = vpack.c.bf16 %v566, %v565
      %v585 = vpack.c.bf16 %v568, %v567
      %v586 = vpack.c.bf16 %v570, %v569
      %s587 = scalar_lea.vmem %s1, 2
      %v588 = vld [vmem:[%s587] sm:$0x3]
      %v590 = vsel %vm237, %v571, 0
      %v593 = vsel %vm237, %v572, 0
      %v596 = vsel %vm237, %v573, 0
      %v599 = vsel %vm237, %v574, 0
      %v602 = vsel %vm237, %v575, 0
      %v605 = vsel %vm237, %v576, 0
      %v608 = vsel %vm237, %v577, 0
      %v611 = vsel %vm237, %v578, 0
      %v614 = vsel %vm237, %v579, 0
      %v617 = vsel %vm237, %v580, 0
      %v620 = vsel %vm237, %v581, 0
      %v623 = vsel %vm237, %v582, 0
      %v626 = vsel %vm237, %v583, 0
      %v629 = vsel %vm237, %v584, 0
      %v632 = vsel %vm237, %v585, 0
      %v635 = vsel %vm237, %v586, 0
      %vm637 = vcmask 1041408
      %v639 = vsel %vm637, %v588, 0
      %641 = vmatprep.subr.bf16.mxu0 0
      %642 = vmatpush1.bf16.msra.mxu0 %v639
      %643 = vmatprep.subr.bf16.mxu0 0
      %644 = vmatpush1.bf16.msra.mxu0 0
      %645 = vmatprep.subr.bf16.mxu0 0
      %646 = vmatpush1.bf16.msra.mxu0 0
      %647 = vmatprep.subr.bf16.mxu0 0
      %648 = vmatpush1.bf16.msra.mxu0 0
      %649 = vmatprep.subr.bf16.mxu0 0
      %650 = vmatpush1.bf16.msra.mxu0 0
      %651 = vmatprep.subr.bf16.mxu0 0
      %652 = vmatpush1.bf16.msra.mxu0 0
      %653 = vmatprep.subr.bf16.mxu0 0
      %654 = vmatpush1.bf16.msra.mxu0 0
      %655 = vmatprep.subr.bf16.mxu0 0
      %656 = vmatpush1.bf16.msra.mxu0 0
      %657 = vmatprep.subr.bf16.mxu0 0
      %658 = vmatpush1.bf16.msra.mxu0 0
      %659 = vmatprep.subr.bf16.mxu0 0
      %660 = vmatpush1.bf16.msra.mxu0 0
      %661 = vmatprep.subr.bf16.mxu0 0
      %662 = vmatpush1.bf16.msra.mxu0 0
      %663 = vmatprep.subr.bf16.mxu0 0
      %664 = vmatpush1.bf16.msra.mxu0 0
      %665 = vmatprep.subr.bf16.mxu0 0
      %666 = vmatpush1.bf16.msra.mxu0 0
      %667 = vmatprep.subr.bf16.mxu0 0
      %668 = vmatpush1.bf16.msra.mxu0 0
      %669 = vmatprep.subr.bf16.mxu0 0
      %670 = vmatpush1.bf16.msra.mxu0 0
      %671 = vmatprep.subr.bf16.mxu0 0
      %672 = vmatpush1.bf16.msra.mxu0 0
      %673 = vmatprep.mubr.bf16.mxu0 0
      %674 = vmatmul.mubr.bf16.gmra.mrb[0].mxu0 %v590
      %v675 = vpop.f32.mrb[0].mxu0
      %v676 = vadd.f32 0.0, %v675
      %v677 = vpop.f32.mrb[0].mxu0
      %v678 = vpop.f32.mrb[0].mxu0
      %v679 = vadd.f32 0.0, %v678
      %v680 = vpop.f32.mrb[0].mxu0
      %681 = vmatprep.mubr.bf16.mxu0 0
      %682 = vmatmul.mubr.bf16.gmra.mrb[0].mxu0 %v593
      %v683 = vpop.f32.mrb[0].mxu0
      %v684 = vadd.f32 0.0, %v683
      %v685 = vpop.f32.mrb[0].mxu0
      %v686 = vpop.f32.mrb[0].mxu0
      %v687 = vadd.f32 0.0, %v686
      %v688 = vpop.f32.mrb[0].mxu0
      %689 = vmatprep.mubr.bf16.mxu0 0
      %690 = vmatmul.mubr.bf16.gmra.mrb[0].mxu0 %v596
      %v691 = vpop.f32.mrb[0].mxu0
      %v692 = vadd.f32 0.0, %v691
      %v693 = vpop.f32.mrb[0].mxu0
      %v694 = vpop.f32.mrb[0].mxu0
      %v695 = vadd.f32 0.0, %v694
      %v696 = vpop.f32.mrb[0].mxu0
      %697 = vmatprep.mubr.bf16.mxu0 0
      %698 = vmatmul.mubr.bf16.gmra.mrb[0].mxu0 %v599
      %v699 = vpop.f32.mrb[0].mxu0
      %v700 = vadd.f32 0.0, %v699
      %v701 = vpop.f32.mrb[0].mxu0
      %v702 = vpop.f32.mrb[0].mxu0
      %v703 = vadd.f32 0.0, %v702
      %v704 = vpop.f32.mrb[0].mxu0
      %705 = vmatprep.mubr.bf16.mxu0 0
      %706 = vmatmul.mubr.bf16.gmra.mrb[0].mxu0 %v602
      %v707 = vpop.f32.mrb[0].mxu0
      %v708 = vadd.f32 0.0, %v707
      %v709 = vpop.f32.mrb[0].mxu0
      %v710 = vpop.f32.mrb[0].mxu0
      %v711 = vadd.f32 0.0, %v710
      %v712 = vpop.f32.mrb[0].mxu0
      %713 = vmatprep.mubr.bf16.mxu0 0
      %714 = vmatmul.mubr.bf16.gmra.mrb[0].mxu0 %v605
      %v715 = vpop.f32.mrb[0].mxu0
      %v716 = vadd.f32 0.0, %v715
      %v717 = vpop.f32.mrb[0].mxu0
      %v718 = vpop.f32.mrb[0].mxu0
      %v719 = vadd.f32 0.0, %v718
      %v720 = vpop.f32.mrb[0].mxu0
      %721 = vmatprep.mubr.bf16.mxu0 0
      %722 = vmatmul.mubr.bf16.gmra.mrb[0].mxu0 %v608
      %v723 = vpop.f32.mrb[0].mxu0
      %v724 = vadd.f32 0.0, %v723
      %v725 = vpop.f32.mrb[0].mxu0
      %v726 = vpop.f32.mrb[0].mxu0
      %v727 = vadd.f32 0.0, %v726
      %v728 = vpop.f32.mrb[0].mxu0
      %729 = vmatprep.mubr.bf16.mxu0 0
      %730 = vmatmul.mubr.bf16.gmra.mrb[0].mxu0 %v611
      %v731 = vpop.f32.mrb[0].mxu0
      %v732 = vadd.f32 0.0, %v731
      %v733 = vpop.f32.mrb[0].mxu0
      %v734 = vpop.f32.mrb[0].mxu0
      %v735 = vadd.f32 0.0, %v734
      %v736 = vpop.f32.mrb[0].mxu0
      %737 = vmatprep.mubr.bf16.mxu0 0
      %738 = vmatmul.mubr.bf16.gmra.mrb[0].mxu0 %v614
      %v739 = vpop.f32.mrb[0].mxu0
      %v740 = vadd.f32 0.0, %v739
      %v741 = vpop.f32.mrb[0].mxu0
      %v742 = vpop.f32.mrb[0].mxu0
      %v743 = vadd.f32 0.0, %v742
      %v744 = vpop.f32.mrb[0].mxu0
      %745 = vmatprep.mubr.bf16.mxu0 0
      %746 = vmatmul.mubr.bf16.gmra.mrb[0].mxu0 %v617
      %v747 = vpop.f32.mrb[0].mxu0
      %v748 = vadd.f32 0.0, %v747
      %v749 = vpop.f32.mrb[0].mxu0
      %v750 = vpop.f32.mrb[0].mxu0
      %v751 = vadd.f32 0.0, %v750
      %v752 = vpop.f32.mrb[0].mxu0
      %753 = vmatprep.mubr.bf16.mxu0 0
      %754 = vmatmul.mubr.bf16.gmra.mrb[0].mxu0 %v620
      %v755 = vpop.f32.mrb[0].mxu0
      %v756 = vadd.f32 0.0, %v755
      %v757 = vpop.f32.mrb[0].mxu0
      %v758 = vpop.f32.mrb[0].mxu0
      %v759 = vadd.f32 0.0, %v758
      %v760 = vpop.f32.mrb[0].mxu0
      %761 = vmatprep.mubr.bf16.mxu0 0
      %762 = vmatmul.mubr.bf16.gmra.mrb[0].mxu0 %v623
      %v763 = vpop.f32.mrb[0].mxu0
      %v764 = vadd.f32 0.0, %v763
      %v765 = vpop.f32.mrb[0].mxu0
      %v766 = vpop.f32.mrb[0].mxu0
      %v767 = vadd.f32 0.0, %v766
      %v768 = vpop.f32.mrb[0].mxu0
      %769 = vmatprep.mubr.bf16.mxu0 0
      %770 = vmatmul.mubr.bf16.gmra.mrb[0].mxu0 %v626
      %v771 = vpop.f32.mrb[0].mxu0
      %v772 = vadd.f32 0.0, %v771
      %v773 = vpop.f32.mrb[0].mxu0
      %v774 = vpop.f32.mrb[0].mxu0
      %v775 = vadd.f32 0.0, %v774
      %v776 = vpop.f32.mrb[0].mxu0
      %777 = vmatprep.mubr.bf16.mxu0 0
      %778 = vmatmul.mubr.bf16.gmra.mrb[0].mxu0 %v629
      %v779 = vpop.f32.mrb[0].mxu0
      %v780 = vadd.f32 0.0, %v779
      %v781 = vpop.f32.mrb[0].mxu0
      %v782 = vpop.f32.mrb[0].mxu0
      %v783 = vadd.f32 0.0, %v782
      %v784 = vpop.f32.mrb[0].mxu0
      %785 = vmatprep.mubr.bf16.mxu0 0
      %786 = vmatmul.mubr.bf16.gmra.mrb[0].mxu0 %v632
      %v787 = vpop.f32.mrb[0].mxu0
      %v788 = vadd.f32 0.0, %v787
      %v789 = vpop.f32.mrb[0].mxu0
      %v790 = vpop.f32.mrb[0].mxu0
      %v791 = vadd.f32 0.0, %v790
      %v792 = vpop.f32.mrb[0].mxu0
      %793 = vmatprep.mubr.bf16.mxu0 0
      %794 = vmatmul.mubr.bf16.gmra.mrb[0].mxu0 %v635
      %v795 = vpop.f32.mrb[0].mxu0
      %v796 = vadd.f32 0.0, %v795
      %v797 = vpop.f32.mrb[0].mxu0
      %v798 = vpop.f32.mrb[0].mxu0
      %v799 = vadd.f32 0.0, %v798
      %v800 = vpop.f32.mrb[0].mxu0
      %801 = vdwg.mxu0
      %v803 = vsel %vm237, %v522, 0
      %v806 = vsel %vm237, %v523, 0
      %v809 = vsel %vm237, %v524, 0
      %v812 = vsel %vm237, %v525, 0
      %v815 = vsel %vm237, %v526, 0
      %v818 = vsel %vm237, %v527, 0
      %v821 = vsel %vm237, %v528, 0
      %v824 = vsel %vm237, %v529, 0
      %v827 = vsel %vm237, %v530, 0
      %v830 = vsel %vm237, %v531, 0
      %v833 = vsel %vm237, %v532, 0
      %v836 = vsel %vm237, %v533, 0
      %v839 = vsel %vm237, %v534, 0
      %v842 = vsel %vm237, %v535, 0
      %v845 = vsel %vm237, %v536, 0
      %v848 = vsel %vm237, %v537, 0
      %v851 = vsel %vm637, %v538, 0
      %853 = vmatprep.subr.bf16.mxu0 0
      %854 = vmatpush1.bf16.msra.mxu0 %v851
      %855 = vmatprep.subr.bf16.mxu0 0
      %856 = vmatpush1.bf16.msra.mxu0 0
      %857 = vmatprep.subr.bf16.mxu0 0
      %858 = vmatpush1.bf16.msra.mxu0 0
      %859 = vmatprep.subr.bf16.mxu0 0
      %860 = vmatpush1.bf16.msra.mxu0 0
      %861 = vmatprep.subr.bf16.mxu0 0
      %862 = vmatpush1.bf16.msra.mxu0 0
      %863 = vmatprep.subr.bf16.mxu0 0
      %864 = vmatpush1.bf16.msra.mxu0 0
      %865 = vmatprep.subr.bf16.mxu0 0
      %866 = vmatpush1.bf16.msra.mxu0 0
      %867 = vmatprep.subr.bf16.mxu0 0
      %868 = vmatpush1.bf16.msra.mxu0 0
      %869 = vmatprep.subr.bf16.mxu0 0
      %870 = vmatpush1.bf16.msra.mxu0 0
      %871 = vmatprep.subr.bf16.mxu0 0
      %872 = vmatpush1.bf16.msra.mxu0 0
      %873 = vmatprep.subr.bf16.mxu0 0
      %874 = vmatpush1.bf16.msra.mxu0 0
      %875 = vmatprep.subr.bf16.mxu0 0
      %876 = vmatpush1.bf16.msra.mxu0 0
      %877 = vmatprep.subr.bf16.mxu0 0
      %878 = vmatpush1.bf16.msra.mxu0 0
      %879 = vmatprep.subr.bf16.mxu0 0
      %880 = vmatpush1.bf16.msra.mxu0 0
      %881 = vmatprep.subr.bf16.mxu0 0
      %882 = vmatpush1.bf16.msra.mxu0 0
      %883 = vmatprep.subr.bf16.mxu0 0
      %884 = vmatpush1.bf16.msra.mxu0 0
      %885 = vmatprep.mubr.bf16.mxu0 0
      %886 = vmatmul.mubr.bf16.gmra.mrb[0].mxu0 %v803
      %v887 = vpop.f32.mrb[0].mxu0
      %v888 = vadd.f32 %v676, %v887
      %v889 = vpop.f32.mrb[0].mxu0
      %v890 = vpop.f32.mrb[0].mxu0
      %v891 = vadd.f32 %v679, %v890
      %v892 = vpop.f32.mrb[0].mxu0
      %893 = vmatprep.mubr.bf16.mxu0 0
      %894 = vmatmul.mubr.bf16.gmra.mrb[0].mxu0 %v806
      %v895 = vpop.f32.mrb[0].mxu0
      %v896 = vadd.f32 %v684, %v895
      %v897 = vpop.f32.mrb[0].mxu0
      %v898 = vpop.f32.mrb[0].mxu0
      %v899 = vadd.f32 %v687, %v898
      %v900 = vpop.f32.mrb[0].mxu0
      %901 = vmatprep.mubr.bf16.mxu0 0
      %902 = vmatmul.mubr.bf16.gmra.mrb[0].mxu0 %v809
      %v903 = vpop.f32.mrb[0].mxu0
      %v904 = vadd.f32 %v692, %v903
      %v905 = vpop.f32.mrb[0].mxu0
      %v906 = vpop.f32.mrb[0].mxu0
      %v907 = vadd.f32 %v695, %v906
      %v908 = vpop.f32.mrb[0].mxu0
      %909 = vmatprep.mubr.bf16.mxu0 0
      %910 = vmatmul.mubr.bf16.gmra.mrb[0].mxu0 %v812
      %v911 = vpop.f32.mrb[0].mxu0
      %v912 = vadd.f32 %v700, %v911
      %v913 = vpop.f32.mrb[0].mxu0
      %v914 = vpop.f32.mrb[0].mxu0
      %v915 = vadd.f32 %v703, %v914
      %v916 = vpop.f32.mrb[0].mxu0
      %917 = vmatprep.mubr.bf16.mxu0 0
      %918 = vmatmul.mubr.bf16.gmra.mrb[0].mxu0 %v815
      %v919 = vpop.f32.mrb[0].mxu0
      %v920 = vadd.f32 %v708, %v919
      %v921 = vpop.f32.mrb[0].mxu0
      %v922 = vpop.f32.mrb[0].mxu0
      %v923 = vadd.f32 %v711, %v922
      %v924 = vpop.f32.mrb[0].mxu0
      %925 = vmatprep.mubr.bf16.mxu0 0
      %926 = vmatmul.mubr.bf16.gmra.mrb[0].mxu0 %v818
      %v927 = vpop.f32.mrb[0].mxu0
      %v928 = vadd.f32 %v716, %v927
      %v929 = vpop.f32.mrb[0].mxu0
      %v930 = vpop.f32.mrb[0].mxu0
      %v931 = vadd.f32 %v719, %v930
      %v932 = vpop.f32.mrb[0].mxu0
      %933 = vmatprep.mubr.bf16.mxu0 0
      %934 = vmatmul.mubr.bf16.gmra.mrb[0].mxu0 %v821
      %v935 = vpop.f32.mrb[0].mxu0
      %v936 = vadd.f32 %v724, %v935
      %v937 = vpop.f32.mrb[0].mxu0
      %v938 = vpop.f32.mrb[0].mxu0
      %v939 = vadd.f32 %v727, %v938
      %v940 = vpop.f32.mrb[0].mxu0
      %941 = vmatprep.mubr.bf16.mxu0 0
      %942 = vmatmul.mubr.bf16.gmra.mrb[0].mxu0 %v824
      %v943 = vpop.f32.mrb[0].mxu0
      %v944 = vadd.f32 %v732, %v943
      %v945 = vpop.f32.mrb[0].mxu0
      %v946 = vpop.f32.mrb[0].mxu0
      %v947 = vadd.f32 %v735, %v946
      %v948 = vpop.f32.mrb[0].mxu0
      %949 = vmatprep.mubr.bf16.mxu0 0
      %950 = vmatmul.mubr.bf16.gmra.mrb[0].mxu0 %v827
      %v951 = vpop.f32.mrb[0].mxu0
      %v952 = vadd.f32 %v740, %v951
      %v953 = vpop.f32.mrb[0].mxu0
      %v954 = vpop.f32.mrb[0].mxu0
      %v955 = vadd.f32 %v743, %v954
      %v956 = vpop.f32.mrb[0].mxu0
      %957 = vmatprep.mubr.bf16.mxu0 0
      %958 = vmatmul.mubr.bf16.gmra.mrb[0].mxu0 %v830
      %v959 = vpop.f32.mrb[0].mxu0
      %v960 = vadd.f32 %v748, %v959
      %v961 = vpop.f32.mrb[0].mxu0
      %v962 = vpop.f32.mrb[0].mxu0
      %v963 = vadd.f32 %v751, %v962
      %v964 = vpop.f32.mrb[0].mxu0
      %965 = vmatprep.mubr.bf16.mxu0 0
      %966 = vmatmul.mubr.bf16.gmra.mrb[0].mxu0 %v833
      %v967 = vpop.f32.mrb[0].mxu0
      %v968 = vadd.f32 %v756, %v967
      %v969 = vpop.f32.mrb[0].mxu0
      %v970 = vpop.f32.mrb[0].mxu0
      %v971 = vadd.f32 %v759, %v970
      %v972 = vpop.f32.mrb[0].mxu0
      %973 = vmatprep.mubr.bf16.mxu0 0
      %974 = vmatmul.mubr.bf16.gmra.mrb[0].mxu0 %v836
      %v975 = vpop.f32.mrb[0].mxu0
      %v976 = vadd.f32 %v764, %v975
      %v977 = vpop.f32.mrb[0].mxu0
      %v978 = vpop.f32.mrb[0].mxu0
      %v979 = vadd.f32 %v767, %v978
      %v980 = vpop.f32.mrb[0].mxu0
      %981 = vmatprep.mubr.bf16.mxu0 0
      %982 = vmatmul.mubr.bf16.gmra.mrb[0].mxu0 %v839
      %v983 = vpop.f32.mrb[0].mxu0
      %v984 = vadd.f32 %v772, %v983
      %v985 = vpop.f32.mrb[0].mxu0
      %v986 = vpop.f32.mrb[0].mxu0
      %v987 = vadd.f32 %v775, %v986
      %v988 = vpop.f32.mrb[0].mxu0
      %989 = vmatprep.mubr.bf16.mxu0 0
      %990 = vmatmul.mubr.bf16.gmra.mrb[0].mxu0 %v842
      %v991 = vpop.f32.mrb[0].mxu0
      %v992 = vadd.f32 %v780, %v991
      %v993 = vpop.f32.mrb[0].mxu0
      %v994 = vpop.f32.mrb[0].mxu0
      %v995 = vadd.f32 %v783, %v994
      %v996 = vpop.f32.mrb[0].mxu0
      %997 = vmatprep.mubr.bf16.mxu0 0
      %998 = vmatmul.mubr.bf16.gmra.mrb[0].mxu0 %v845
      %v999 = vpop.f32.mrb[0].mxu0
      %v1000 = vadd.f32 %v788, %v999
      %v1001 = vpop.f32.mrb[0].mxu0
      %v1002 = vpop.f32.mrb[0].mxu0
      %v1003 = vadd.f32 %v791, %v1002
      %v1004 = vpop.f32.mrb[0].mxu0
      %1005 = vmatprep.mubr.bf16.mxu0 0
      %1006 = vmatmul.mubr.bf16.gmra.mrb[0].mxu0 %v848
      %v1007 = vpop.f32.mrb[0].mxu0
      %v1008 = vadd.f32 %v796, %v1007
      %v1009 = vpop.f32.mrb[0].mxu0
      %v1010 = vpop.f32.mrb[0].mxu0
      %v1011 = vadd.f32 %v799, %v1010
      %v1012 = vpop.f32.mrb[0].mxu0
      %1013 = vdwg.mxu0
      %v1014 = vld [vmem:[#allocation2 + $0x2] sm:$0xff]
      %v1015 = vld [vmem:[#allocation2 + $0xa] sm:$0xff]
      %v1016 = vld [vmem:[#allocation2 + $0x1a] sm:$0xff]
      %v1017 = vld [vmem:[#allocation2 + $0x22] sm:$0xff]
      %v1018 = vld [vmem:[#allocation2 + $0x32] sm:$0xff]
      %v1019 = vld [vmem:[#allocation2 + $0x3a] sm:$0xff]
      %v1020 = vld [vmem:[#allocation2 + $0x4a] sm:$0xff]
      %v1021 = vld [vmem:[#allocation2 + $0x52] sm:$0xff]
      %v1022 = vld [vmem:[#allocation2 + $0x62] sm:$0xff]
      %v1023 = vld [vmem:[#allocation2 + $0x6a] sm:$0xff]
      %v1024 = vld [vmem:[#allocation2 + $0x7a] sm:$0xff]
      %v1025 = vld [vmem:[#allocation2 + $0x82] sm:$0xff]
      %v1026 = vld [vmem:[#allocation2 + $0x92] sm:$0xff]
      %v1027 = vld [vmem:[#allocation2 + $0x9a] sm:$0xff]
      %v1028 = vld [vmem:[#allocation2 + $0xaa] sm:$0xff]
      %v1029 = vld [vmem:[#allocation2 + $0xb2] sm:$0xff]
      %v1030 = vld [vmem:[#allocation2 + $0xc2] sm:$0xff]
      %v1031 = vld [vmem:[#allocation2 + $0xca] sm:$0xff]
      %v1032 = vld [vmem:[#allocation2 + $0xda] sm:$0xff]
      %v1033 = vld [vmem:[#allocation2 + $0xe2] sm:$0xff]
      %v1034 = vld [vmem:[#allocation2 + $0xf2] sm:$0xff]
      %v1035 = vld [vmem:[#allocation2 + $0xfa] sm:$0xff]
      %v1036 = vld [vmem:[#allocation2 + $0x10a] sm:$0xff]
      %v1037 = vld [vmem:[#allocation2 + $0x112] sm:$0xff]
      %v1038 = vld [vmem:[#allocation2 + $0x122] sm:$0xff]
      %v1039 = vld [vmem:[#allocation2 + $0x12a] sm:$0xff]
      %v1040 = vld [vmem:[#allocation2 + $0x13a] sm:$0xff]
      %v1041 = vld [vmem:[#allocation2 + $0x142] sm:$0xff]
      %v1042 = vld [vmem:[#allocation2 + $0x152] sm:$0xff]
      %v1043 = vld [vmem:[#allocation2 + $0x15a] sm:$0xff]
      %v1044 = vld [vmem:[#allocation2 + $0x16a] sm:$0xff]
      %v1045 = vld [vmem:[#allocation2 + $0x172] sm:$0xff]
      %v1046 = vpack.c.bf16 %v1015, %v1014
      %v1047 = vpack.c.bf16 %v1017, %v1016
      %v1048 = vpack.c.bf16 %v1019, %v1018
      %v1049 = vpack.c.bf16 %v1021, %v1020
      %v1050 = vpack.c.bf16 %v1023, %v1022
      %v1051 = vpack.c.bf16 %v1025, %v1024
      %v1052 = vpack.c.bf16 %v1027, %v1026
      %v1053 = vpack.c.bf16 %v1029, %v1028
      %v1054 = vpack.c.bf16 %v1031, %v1030
      %v1055 = vpack.c.bf16 %v1033, %v1032
      %v1056 = vpack.c.bf16 %v1035, %v1034
      %v1057 = vpack.c.bf16 %v1037, %v1036
      %v1058 = vpack.c.bf16 %v1039, %v1038
      %v1059 = vpack.c.bf16 %v1041, %v1040
      %v1060 = vpack.c.bf16 %v1043, %v1042
      %v1061 = vpack.c.bf16 %v1045, %v1044
      %s1062 = scalar_lea.vmem %s1, 4
      %v1063 = vld [vmem:[%s1062] sm:$0x3]
      %v1065 = vsel %vm237, %v1046, 0
      %v1068 = vsel %vm237, %v1047, 0
      %v1071 = vsel %vm237, %v1048, 0
      %v1074 = vsel %vm237, %v1049, 0
      %v1077 = vsel %vm237, %v1050, 0
      %v1080 = vsel %vm237, %v1051, 0
      %v1083 = vsel %vm237, %v1052, 0
      %v1086 = vsel %vm237, %v1053, 0
      %v1089 = vsel %vm237, %v1054, 0
      %v1092 = vsel %vm237, %v1055, 0
      %v1095 = vsel %vm237, %v1056, 0
      %v1098 = vsel %vm237, %v1057, 0
      %v1101 = vsel %vm237, %v1058, 0
      %v1104 = vsel %vm237, %v1059, 0
      %v1107 = vsel %vm237, %v1060, 0
      %v1110 = vsel %vm237, %v1061, 0
      %v1113 = vsel %vm637, %v1063, 0
      %1115 = vmatprep.subr.bf16.mxu0 0
      %1116 = vmatpush1.bf16.msra.mxu0 %v1113
      %1117 = vmatprep.subr.bf16.mxu0 0
      %1118 = vmatpush1.bf16.msra.mxu0 0
      %1119 = vmatprep.subr.bf16.mxu0 0
      %1120 = vmatpush1.bf16.msra.mxu0 0
      %1121 = vmatprep.subr.bf16.mxu0 0
      %1122 = vmatpush1.bf16.msra.mxu0 0
      %1123 = vmatprep.subr.bf16.mxu0 0
      %1124 = vmatpush1.bf16.msra.mxu0 0
      %1125 = vmatprep.subr.bf16.mxu0 0
      %1126 = vmatpush1.bf16.msra.mxu0 0
      %1127 = vmatprep.subr.bf16.mxu0 0
      %1128 = vmatpush1.bf16.msra.mxu0 0
      %1129 = vmatprep.subr.bf16.mxu0 0
      %1130 = vmatpush1.bf16.msra.mxu0 0
      %1131 = vmatprep.subr.bf16.mxu0 0
      %1132 = vmatpush1.bf16.msra.mxu0 0
      %1133 = vmatprep.subr.bf16.mxu0 0
      %1134 = vmatpush1.bf16.msra.mxu0 0
      %1135 = vmatprep.subr.bf16.mxu0 0
      %1136 = vmatpush1.bf16.msra.mxu0 0
      %1137 = vmatprep.subr.bf16.mxu0 0
      %1138 = vmatpush1.bf16.msra.mxu0 0
      %1139 = vmatprep.subr.bf16.mxu0 0
      %1140 = vmatpush1.bf16.msra.mxu0 0
      %1141 = vmatprep.subr.bf16.mxu0 0
      %1142 = vmatpush1.bf16.msra.mxu0 0
      %1143 = vmatprep.subr.bf16.mxu0 0
      %1144 = vmatpush1.bf16.msra.mxu0 0
      %1145 = vmatprep.subr.bf16.mxu0 0
      %1146 = vmatpush1.bf16.msra.mxu0 0
      %1147 = vmatprep.mubr.bf16.mxu0 0
      %1148 = vmatmul.mubr.bf16.gmra.mrb[0].mxu0 %v1065
      %v1149 = vpop.f32.mrb[0].mxu0
      %v1150 = vadd.f32 0.0, %v1149
      %v1151 = vpop.f32.mrb[0].mxu0
      %v1152 = vpop.f32.mrb[0].mxu0
      %v1153 = vadd.f32 0.0, %v1152
      %v1154 = vpop.f32.mrb[0].mxu0
      %1155 = vmatprep.mubr.bf16.mxu0 0
      %1156 = vmatmul.mubr.bf16.gmra.mrb[0].mxu0 %v1068
      %v1157 = vpop.f32.mrb[0].mxu0
      %v1158 = vadd.f32 0.0, %v1157
      %v1159 = vpop.f32.mrb[0].mxu0
      %v1160 = vpop.f32.mrb[0].mxu0
      %v1161 = vadd.f32 0.0, %v1160
      %v1162 = vpop.f32.mrb[0].mxu0
      %1163 = vmatprep.mubr.bf16.mxu0 0
      %1164 = vmatmul.mubr.bf16.gmra.mrb[0].mxu0 %v1071
      %v1165 = vpop.f32.mrb[0].mxu0
      %v1166 = vadd.f32 0.0, %v1165
      %v1167 = vpop.f32.mrb[0].mxu0
      %v1168 = vpop.f32.mrb[0].mxu0
      %v1169 = vadd.f32 0.0, %v1168
      %v1170 = vpop.f32.mrb[0].mxu0
      %1171 = vmatprep.mubr.bf16.mxu0 0
      %1172 = vmatmul.mubr.bf16.gmra.mrb[0].mxu0 %v1074
      %v1173 = vpop.f32.mrb[0].mxu0
      %v1174 = vadd.f32 0.0, %v1173
      %v1175 = vpop.f32.mrb[0].mxu0
      %v1176 = vpop.f32.mrb[0].mxu0
      %v1177 = vadd.f32 0.0, %v1176
      %v1178 = vpop.f32.mrb[0].mxu0
      %1179 = vmatprep.mubr.bf16.mxu0 0
      %1180 = vmatmul.mubr.bf16.gmra.mrb[0].mxu0 %v1077
      %v1181 = vpop.f32.mrb[0].mxu0
      %v1182 = vadd.f32 0.0, %v1181
      %v1183 = vpop.f32.mrb[0].mxu0
      %v1184 = vpop.f32.mrb[0].mxu0
      %v1185 = vadd.f32 0.0, %v1184
      %v1186 = vpop.f32.mrb[0].mxu0
      %1187 = vmatprep.mubr.bf16.mxu0 0
      %1188 = vmatmul.mubr.bf16.gmra.mrb[0].mxu0 %v1080
      %v1189 = vpop.f32.mrb[0].mxu0
      %v1190 = vadd.f32 0.0, %v1189
      %v1191 = vpop.f32.mrb[0].mxu0
      %v1192 = vpop.f32.mrb[0].mxu0
      %v1193 = vadd.f32 0.0, %v1192
      %v1194 = vpop.f32.mrb[0].mxu0
      %1195 = vmatprep.mubr.bf16.mxu0 0
      %1196 = vmatmul.mubr.bf16.gmra.mrb[0].mxu0 %v1083
      %v1197 = vpop.f32.mrb[0].mxu0
      %v1198 = vadd.f32 0.0, %v1197
      %v1199 = vpop.f32.mrb[0].mxu0
      %v1200 = vpop.f32.mrb[0].mxu0
      %v1201 = vadd.f32 0.0, %v1200
      %v1202 = vpop.f32.mrb[0].mxu0
      %1203 = vmatprep.mubr.bf16.mxu0 0
      %1204 = vmatmul.mubr.bf16.gmra.mrb[0].mxu0 %v1086
      %v1205 = vpop.f32.mrb[0].mxu0
      %v1206 = vadd.f32 0.0, %v1205
      %v1207 = vpop.f32.mrb[0].mxu0
      %v1208 = vpop.f32.mrb[0].mxu0
      %v1209 = vadd.f32 0.0, %v1208
      %v1210 = vpop.f32.mrb[0].mxu0
      %1211 = vmatprep.mubr.bf16.mxu0 0
      %1212 = vmatmul.mubr.bf16.gmra.mrb[0].mxu0 %v1089
      %v1213 = vpop.f32.mrb[0].mxu0
      %v1214 = vadd.f32 0.0, %v1213
      %v1215 = vpop.f32.mrb[0].mxu0
      %v1216 = vpop.f32.mrb[0].mxu0
      %v1217 = vadd.f32 0.0, %v1216
      %v1218 = vpop.f32.mrb[0].mxu0
      %1219 = vmatprep.mubr.bf16.mxu0 0
      %1220 = vmatmul.mubr.bf16.gmra.mrb[0].mxu0 %v1092
      %v1221 = vpop.f32.mrb[0].mxu0
      %v1222 = vadd.f32 0.0, %v1221
      %v1223 = vpop.f32.mrb[0].mxu0
      %v1224 = vpop.f32.mrb[0].mxu0
      %v1225 = vadd.f32 0.0, %v1224
      %v1226 = vpop.f32.mrb[0].mxu0
      %1227 = vmatprep.mubr.bf16.mxu0 0
      %1228 = vmatmul.mubr.bf16.gmra.mrb[0].mxu0 %v1095
      %v1229 = vpop.f32.mrb[0].mxu0
      %v1230 = vadd.f32 0.0, %v1229
      %v1231 = vpop.f32.mrb[0].mxu0
      %v1232 = vpop.f32.mrb[0].mxu0
      %v1233 = vadd.f32 0.0, %v1232
      %v1234 = vpop.f32.mrb[0].mxu0
      %1235 = vmatprep.mubr.bf16.mxu0 0
      %1236 = vmatmul.mubr.bf16.gmra.mrb[0].mxu0 %v1098
      %v1237 = vpop.f32.mrb[0].mxu0
      %v1238 = vadd.f32 0.0, %v1237
      %v1239 = vpop.f32.mrb[0].mxu0
      %v1240 = vpop.f32.mrb[0].mxu0
      %v1241 = vadd.f32 0.0, %v1240
      %v1242 = vpop.f32.mrb[0].mxu0
      %1243 = vmatprep.mubr.bf16.mxu0 0
      %1244 = vmatmul.mubr.bf16.gmra.mrb[0].mxu0 %v1101
      %v1245 = vpop.f32.mrb[0].mxu0
      %v1246 = vadd.f32 0.0, %v1245
      %v1247 = vpop.f32.mrb[0].mxu0
      %v1248 = vpop.f32.mrb[0].mxu0
      %v1249 = vadd.f32 0.0, %v1248
      %v1250 = vpop.f32.mrb[0].mxu0
      %1251 = vmatprep.mubr.bf16.mxu0 0
      %1252 = vmatmul.mubr.bf16.gmra.mrb[0].mxu0 %v1104
      %v1253 = vpop.f32.mrb[0].mxu0
      %v1254 = vadd.f32 0.0, %v1253
      %v1255 = vpop.f32.mrb[0].mxu0
      %v1256 = vpop.f32.mrb[0].mxu0
      %v1257 = vadd.f32 0.0, %v1256
      %v1258 = vpop.f32.mrb[0].mxu0
      %1259 = vmatprep.mubr.bf16.mxu0 0
      %1260 = vmatmul.mubr.bf16.gmra.mrb[0].mxu0 %v1107
      %v1261 = vpop.f32.mrb[0].mxu0
      %v1262 = vadd.f32 0.0, %v1261
      %v1263 = vpop.f32.mrb[0].mxu0
      %v1264 = vpop.f32.mrb[0].mxu0
      %v1265 = vadd.f32 0.0, %v1264
      %v1266 = vpop.f32.mrb[0].mxu0
      %1267 = vmatprep.mubr.bf16.mxu0 0
      %1268 = vmatmul.mubr.bf16.gmra.mrb[0].mxu0 %v1110
      %v1269 = vpop.f32.mrb[0].mxu0
      %v1270 = vadd.f32 0.0, %v1269
      %v1271 = vpop.f32.mrb[0].mxu0
      %v1272 = vpop.f32.mrb[0].mxu0
      %v1273 = vadd.f32 0.0, %v1272
      %v1274 = vpop.f32.mrb[0].mxu0
      %1275 = vdwg.mxu0
      %v1276 = vadd.f32 %v888, %v1150
      %v1277 = vadd.f32 %v891, %v1153
      %v1278 = vadd.f32 %v896, %v1158
      %v1279 = vadd.f32 %v899, %v1161
      %v1280 = vadd.f32 %v904, %v1166
      %v1281 = vadd.f32 %v907, %v1169
      %v1282 = vadd.f32 %v912, %v1174
      %v1283 = vadd.f32 %v915, %v1177
      %v1284 = vadd.f32 %v920, %v1182
      %v1285 = vadd.f32 %v923, %v1185
      %v1286 = vadd.f32 %v928, %v1190
      %v1287 = vadd.f32 %v931, %v1193
      %v1288 = vadd.f32 %v936, %v1198
      %v1289 = vadd.f32 %v939, %v1201
      %v1290 = vadd.f32 %v944, %v1206
      %v1291 = vadd.f32 %v947, %v1209
      %v1292 = vadd.f32 %v952, %v1214
      %v1293 = vadd.f32 %v955, %v1217
      %v1294 = vadd.f32 %v960, %v1222
      %v1295 = vadd.f32 %v963, %v1225
      %v1296 = vadd.f32 %v968, %v1230
      %v1297 = vadd.f32 %v971, %v1233
      %v1298 = vadd.f32 %v976, %v1238
      %v1299 = vadd.f32 %v979, %v1241
      %v1300 = vadd.f32 %v984, %v1246
      %v1301 = vadd.f32 %v987, %v1249
      %v1302 = vadd.f32 %v992, %v1254
      %v1303 = vadd.f32 %v995, %v1257
      %v1304 = vadd.f32 %v1000, %v1262
      %v1305 = vadd.f32 %v1003, %v1265
      %v1306 = vadd.f32 %v1008, %v1270
      %v1307 = vadd.f32 %v1011, %v1273
      %v1308 = vld [vmem:[%s457] sm:$0xff]
      %v1309 = vld [vmem:[%s457 + $0x8] sm:$0xff]
      %v1310 = vld [vmem:[%s457 + $0x18] sm:$0xff]
      %v1311 = vld [vmem:[%s457 + $0x20] sm:$0xff]
      %v1312 = vld [vmem:[%s457 + $0x30] sm:$0xff]
      %v1313 = vld [vmem:[%s457 + $0x38] sm:$0xff]
      %v1314 = vld [vmem:[%s457 + $0x48] sm:$0xff]
      %v1315 = vld [vmem:[%s457 + $0x50] sm:$0xff]
      %v1316 = vld [vmem:[%s457 + $0x60] sm:$0xff]
      %v1317 = vld [vmem:[%s457 + $0x68] sm:$0xff]
      %v1318 = vld [vmem:[%s457 + $0x78] sm:$0xff]
      %v1319 = vld [vmem:[%s457 + $0x80] sm:$0xff]
      %v1320 = vld [vmem:[%s457 + $0x90] sm:$0xff]
      %v1321 = vld [vmem:[%s457 + $0x98] sm:$0xff]
      %v1322 = vld [vmem:[%s457 + $0xa8] sm:$0xff]
      %v1323 = vld [vmem:[%s457 + $0xb0] sm:$0xff]
      %v1324 = vld [vmem:[%s457 + $0xc0] sm:$0xff]
      %v1325 = vld [vmem:[%s457 + $0xc8] sm:$0xff]
      %v1326 = vld [vmem:[%s457 + $0xd8] sm:$0xff]
      %v1327 = vld [vmem:[%s457 + $0xe0] sm:$0xff]
      %v1328 = vld [vmem:[%s457 + $0xf0] sm:$0xff]
      %v1329 = vld [vmem:[%s457 + $0xf8] sm:$0xff]
      %v1330 = vld [vmem:[%s457 + $0x108] sm:$0xff]
      %v1331 = vld [vmem:[%s457 + $0x110] sm:$0xff]
      %v1332 = vld [vmem:[%s457 + $0x120] sm:$0xff]
      %v1333 = vld [vmem:[%s457 + $0x128] sm:$0xff]
      %v1334 = vld [vmem:[%s457 + $0x138] sm:$0xff]
      %v1335 = vld [vmem:[%s457 + $0x140] sm:$0xff]
      %v1336 = vld [vmem:[%s457 + $0x150] sm:$0xff]
      %v1337 = vld [vmem:[%s457 + $0x158] sm:$0xff]
      %v1338 = vld [vmem:[%s457 + $0x168] sm:$0xff]
      %v1339 = vld [vmem:[%s457 + $0x170] sm:$0xff]
      %v1340 = vpack.c.bf16 %v1309, %v1308
      %v1341 = vpack.c.bf16 %v1311, %v1310
      %v1342 = vpack.c.bf16 %v1313, %v1312
      %v1343 = vpack.c.bf16 %v1315, %v1314
      %v1344 = vpack.c.bf16 %v1317, %v1316
      %v1345 = vpack.c.bf16 %v1319, %v1318
      %v1346 = vpack.c.bf16 %v1321, %v1320
      %v1347 = vpack.c.bf16 %v1323, %v1322
      %v1348 = vpack.c.bf16 %v1325, %v1324
      %v1349 = vpack.c.bf16 %v1327, %v1326
      %v1350 = vpack.c.bf16 %v1329, %v1328
      %v1351 = vpack.c.bf16 %v1331, %v1330
      %v1352 = vpack.c.bf16 %v1333, %v1332
      %v1353 = vpack.c.bf16 %v1335, %v1334
      %v1354 = vpack.c.bf16 %v1337, %v1336
      %v1355 = vpack.c.bf16 %v1339, %v1338
      %s1356 = scalar_lea.vmem %s1, 6
      %v1357 = vld [vmem:[%s1356] sm:$0x3]
      %v1359 = vsel %vm237, %v1340, 0
      %v1362 = vsel %vm237, %v1341, 0
      %v1365 = vsel %vm237, %v1342, 0
      %v1368 = vsel %vm237, %v1343, 0
      %v1371 = vsel %vm237, %v1344, 0
      %v1374 = vsel %vm237, %v1345, 0
      %v1377 = vsel %vm237, %v1346, 0
      %v1380 = vsel %vm237, %v1347, 0
      %v1383 = vsel %vm237, %v1348, 0
      %v1386 = vsel %vm237, %v1349, 0
      %v1389 = vsel %vm237, %v1350, 0
      %v1392 = vsel %vm237, %v1351, 0
      %v1395 = vsel %vm237, %v1352, 0
      %v1398 = vsel %vm237, %v1353, 0
      %v1401 = vsel %vm237, %v1354, 0
      %v1404 = vsel %vm237, %v1355, 0
      %v1407 = vsel %vm637, %v1357, 0
      %1409 = vmatprep.subr.bf16.mxu0 0
      %1410 = vmatpush1.bf16.msra.mxu0 %v1407
      %1411 = vmatprep.subr.bf16.mxu0 0
      %1412 = vmatpush1.bf16.msra.mxu0 0
      %1413 = vmatprep.subr.bf16.mxu0 0
      %1414 = vmatpush1.bf16.msra.mxu0 0
      %1415 = vmatprep.subr.bf16.mxu0 0
      %1416 = vmatpush1.bf16.msra.mxu0 0
      %1417 = vmatprep.subr.bf16.mxu0 0
      %1418 = vmatpush1.bf16.msra.mxu0 0
      %1419 = vmatprep.subr.bf16.mxu0 0
      %1420 = vmatpush1.bf16.msra.mxu0 0
      %1421 = vmatprep.subr.bf16.mxu0 0
      %1422 = vmatpush1.bf16.msra.mxu0 0
      %1423 = vmatprep.subr.bf16.mxu0 0
      %1424 = vmatpush1.bf16.msra.mxu0 0
      %1425 = vmatprep.subr.bf16.mxu0 0
      %1426 = vmatpush1.bf16.msra.mxu0 0
      %1427 = vmatprep.subr.bf16.mxu0 0
      %1428 = vmatpush1.bf16.msra.mxu0 0
      %1429 = vmatprep.subr.bf16.mxu0 0
      %1430 = vmatpush1.bf16.msra.mxu0 0
      %1431 = vmatprep.subr.bf16.mxu0 0
      %1432 = vmatpush1.bf16.msra.mxu0 0
      %1433 = vmatprep.subr.bf16.mxu0 0
      %1434 = vmatpush1.bf16.msra.mxu0 0
      %1435 = vmatprep.subr.bf16.mxu0 0
      %1436 = vmatpush1.bf16.msra.mxu0 0
      %1437 = vmatprep.subr.bf16.mxu0 0
      %1438 = vmatpush1.bf16.msra.mxu0 0
      %1439 = vmatprep.subr.bf16.mxu0 0
      %1440 = vmatpush1.bf16.msra.mxu0 0
      %1441 = vmatprep.mubr.bf16.mxu0 0
      %1442 = vmatmul.mubr.bf16.gmra.mrb[0].mxu0 %v1359
      %v1443 = vpop.f32.mrb[0].mxu0
      %v1444 = vadd.f32 0.0, %v1443
      %v1445 = vpop.f32.mrb[0].mxu0
      %v1446 = vpop.f32.mrb[0].mxu0
      %v1447 = vadd.f32 0.0, %v1446
      %v1448 = vpop.f32.mrb[0].mxu0
      %1449 = vmatprep.mubr.bf16.mxu0 0
      %1450 = vmatmul.mubr.bf16.gmra.mrb[0].mxu0 %v1362
      %v1451 = vpop.f32.mrb[0].mxu0
      %v1452 = vadd.f32 0.0, %v1451
      %v1453 = vpop.f32.mrb[0].mxu0
      %v1454 = vpop.f32.mrb[0].mxu0
      %v1455 = vadd.f32 0.0, %v1454
      %v1456 = vpop.f32.mrb[0].mxu0
      %1457 = vmatprep.mubr.bf16.mxu0 0
      %1458 = vmatmul.mubr.bf16.gmra.mrb[0].mxu0 %v1365
      %v1459 = vpop.f32.mrb[0].mxu0
      %v1460 = vadd.f32 0.0, %v1459
      %v1461 = vpop.f32.mrb[0].mxu0
      %v1462 = vpop.f32.mrb[0].mxu0
      %v1463 = vadd.f32 0.0, %v1462
      %v1464 = vpop.f32.mrb[0].mxu0
      %1465 = vmatprep.mubr.bf16.mxu0 0
      %1466 = vmatmul.mubr.bf16.gmra.mrb[0].mxu0 %v1368
      %v1467 = vpop.f32.mrb[0].mxu0
      %v1468 = vadd.f32 0.0, %v1467
      %v1469 = vpop.f32.mrb[0].mxu0
      %v1470 = vpop.f32.mrb[0].mxu0
      %v1471 = vadd.f32 0.0, %v1470
      %v1472 = vpop.f32.mrb[0].mxu0
      %1473 = vmatprep.mubr.bf16.mxu0 0
      %1474 = vmatmul.mubr.bf16.gmra.mrb[0].mxu0 %v1371
      %v1475 = vpop.f32.mrb[0].mxu0
      %v1476 = vadd.f32 0.0, %v1475
      %v1477 = vpop.f32.mrb[0].mxu0
      %v1478 = vpop.f32.mrb[0].mxu0
      %v1479 = vadd.f32 0.0, %v1478
      %v1480 = vpop.f32.mrb[0].mxu0
      %1481 = vmatprep.mubr.bf16.mxu0 0
      %1482 = vmatmul.mubr.bf16.gmra.mrb[0].mxu0 %v1374
      %v1483 = vpop.f32.mrb[0].mxu0
      %v1484 = vadd.f32 0.0, %v1483
      %v1485 = vpop.f32.mrb[0].mxu0
      %v1486 = vpop.f32.mrb[0].mxu0
      %v1487 = vadd.f32 0.0, %v1486
      %v1488 = vpop.f32.mrb[0].mxu0
      %1489 = vmatprep.mubr.bf16.mxu0 0
      %1490 = vmatmul.mubr.bf16.gmra.mrb[0].mxu0 %v1377
      %v1491 = vpop.f32.mrb[0].mxu0
      %v1492 = vadd.f32 0.0, %v1491
      %v1493 = vpop.f32.mrb[0].mxu0
      %v1494 = vpop.f32.mrb[0].mxu0
      %v1495 = vadd.f32 0.0, %v1494
      %v1496 = vpop.f32.mrb[0].mxu0
      %1497 = vmatprep.mubr.bf16.mxu0 0
      %1498 = vmatmul.mubr.bf16.gmra.mrb[0].mxu0 %v1380
      %v1499 = vpop.f32.mrb[0].mxu0
      %v1500 = vadd.f32 0.0, %v1499
      %v1501 = vpop.f32.mrb[0].mxu0
      %v1502 = vpop.f32.mrb[0].mxu0
      %v1503 = vadd.f32 0.0, %v1502
      %v1504 = vpop.f32.mrb[0].mxu0
      %1505 = vmatprep.mubr.bf16.mxu0 0
      %1506 = vmatmul.mubr.bf16.gmra.mrb[0].mxu0 %v1383
      %v1507 = vpop.f32.mrb[0].mxu0
      %v1508 = vadd.f32 0.0, %v1507
      %v1509 = vpop.f32.mrb[0].mxu0
      %v1510 = vpop.f32.mrb[0].mxu0
      %v1511 = vadd.f32 0.0, %v1510
      %v1512 = vpop.f32.mrb[0].mxu0
      %1513 = vmatprep.mubr.bf16.mxu0 0
      %1514 = vmatmul.mubr.bf16.gmra.mrb[0].mxu0 %v1386
      %v1515 = vpop.f32.mrb[0].mxu0
      %v1516 = vadd.f32 0.0, %v1515
      %v1517 = vpop.f32.mrb[0].mxu0
      %v1518 = vpop.f32.mrb[0].mxu0
      %v1519 = vadd.f32 0.0, %v1518
      %v1520 = vpop.f32.mrb[0].mxu0
      %1521 = vmatprep.mubr.bf16.mxu0 0
      %1522 = vmatmul.mubr.bf16.gmra.mrb[0].mxu0 %v1389
      %v1523 = vpop.f32.mrb[0].mxu0
      %v1524 = vadd.f32 0.0, %v1523
      %v1525 = vpop.f32.mrb[0].mxu0
      %v1526 = vpop.f32.mrb[0].mxu0
      %v1527 = vadd.f32 0.0, %v1526
      %v1528 = vpop.f32.mrb[0].mxu0
      %1529 = vmatprep.mubr.bf16.mxu0 0
      %1530 = vmatmul.mubr.bf16.gmra.mrb[0].mxu0 %v1392
      %v1531 = vpop.f32.mrb[0].mxu0
      %v1532 = vadd.f32 0.0, %v1531
      %v1533 = vpop.f32.mrb[0].mxu0
      %v1534 = vpop.f32.mrb[0].mxu0
      %v1535 = vadd.f32 0.0, %v1534
      %v1536 = vpop.f32.mrb[0].mxu0
      %1537 = vmatprep.mubr.bf16.mxu0 0
      %1538 = vmatmul.mubr.bf16.gmra.mrb[0].mxu0 %v1395
      %v1539 = vpop.f32.mrb[0].mxu0
      %v1540 = vadd.f32 0.0, %v1539
      %v1541 = vpop.f32.mrb[0].mxu0
      %v1542 = vpop.f32.mrb[0].mxu0
      %v1543 = vadd.f32 0.0, %v1542
      %v1544 = vpop.f32.mrb[0].mxu0
      %1545 = vmatprep.mubr.bf16.mxu0 0
      %1546 = vmatmul.mubr.bf16.gmra.mrb[0].mxu0 %v1398
      %v1547 = vpop.f32.mrb[0].mxu0
      %v1548 = vadd.f32 0.0, %v1547
      %v1549 = vpop.f32.mrb[0].mxu0
      %v1550 = vpop.f32.mrb[0].mxu0
      %v1551 = vadd.f32 0.0, %v1550
      %v1552 = vpop.f32.mrb[0].mxu0
      %1553 = vmatprep.mubr.bf16.mxu0 0
      %1554 = vmatmul.mubr.bf16.gmra.mrb[0].mxu0 %v1401
      %v1555 = vpop.f32.mrb[0].mxu0
      %v1556 = vadd.f32 0.0, %v1555
      %v1557 = vpop.f32.mrb[0].mxu0
      %v1558 = vpop.f32.mrb[0].mxu0
      %v1559 = vadd.f32 0.0, %v1558
      %v1560 = vpop.f32.mrb[0].mxu0
      %1561 = vmatprep.mubr.bf16.mxu0 0
      %1562 = vmatmul.mubr.bf16.gmra.mrb[0].mxu0 %v1404
      %v1563 = vpop.f32.mrb[0].mxu0
      %v1564 = vadd.f32 0.0, %v1563
      %v1565 = vpop.f32.mrb[0].mxu0
      %v1566 = vpop.f32.mrb[0].mxu0
      %v1567 = vadd.f32 0.0, %v1566
      %v1568 = vpop.f32.mrb[0].mxu0
      %1569 = vdwg.mxu0
      %v1570 = vadd.f32 %v1276, %v1444
      %v1571 = vadd.f32 %v1277, %v1447
      %v1572 = vadd.f32 %v1278, %v1452
      %v1573 = vadd.f32 %v1279, %v1455
      %v1574 = vadd.f32 %v1280, %v1460
      %v1575 = vadd.f32 %v1281, %v1463
      %v1576 = vadd.f32 %v1282, %v1468
      %v1577 = vadd.f32 %v1283, %v1471
      %v1578 = vadd.f32 %v1284, %v1476
      %v1579 = vadd.f32 %v1285, %v1479
      %v1580 = vadd.f32 %v1286, %v1484
      %v1581 = vadd.f32 %v1287, %v1487
      %v1582 = vadd.f32 %v1288, %v1492
      %v1583 = vadd.f32 %v1289, %v1495
      %v1584 = vadd.f32 %v1290, %v1500
      %v1585 = vadd.f32 %v1291, %v1503
      %v1586 = vadd.f32 %v1292, %v1508
      %v1587 = vadd.f32 %v1293, %v1511
      %v1588 = vadd.f32 %v1294, %v1516
      %v1589 = vadd.f32 %v1295, %v1519
      %v1590 = vadd.f32 %v1296, %v1524
      %v1591 = vadd.f32 %v1297, %v1527
      %v1592 = vadd.f32 %v1298, %v1532
      %v1593 = vadd.f32 %v1299, %v1535
      %v1594 = vadd.f32 %v1300, %v1540
      %v1595 = vadd.f32 %v1301, %v1543
      %v1596 = vadd.f32 %v1302, %v1548
      %v1597 = vadd.f32 %v1303, %v1551
      %v1598 = vadd.f32 %v1304, %v1556
      %v1599 = vadd.f32 %v1305, %v1559
      %v1600 = vadd.f32 %v1306, %v1564
      %v1601 = vadd.f32 %v1307, %v1567
      %v1602 = vld [vmem:[%s457 + $0x1] sm:$0xff]
      %v1603 = vld [vmem:[%s457 + $0x9] sm:$0xff]
      %v1604 = vld [vmem:[%s457 + $0x19] sm:$0xff]
      %v1605 = vld [vmem:[%s457 + $0x21] sm:$0xff]
      %v1606 = vld [vmem:[%s457 + $0x31] sm:$0xff]
      %v1607 = vld [vmem:[%s457 + $0x39] sm:$0xff]
      %v1608 = vld [vmem:[%s457 + $0x49] sm:$0xff]
      %v1609 = vld [vmem:[%s457 + $0x51] sm:$0xff]
      %v1610 = vld [vmem:[%s457 + $0x61] sm:$0xff]
      %v1611 = vld [vmem:[%s457 + $0x69] sm:$0xff]
      %v1612 = vld [vmem:[%s457 + $0x79] sm:$0xff]
      %v1613 = vld [vmem:[%s457 + $0x81] sm:$0xff]
      %v1614 = vld [vmem:[%s457 + $0x91] sm:$0xff]
      %v1615 = vld [vmem:[%s457 + $0x99] sm:$0xff]
      %v1616 = vld [vmem:[%s457 + $0xa9] sm:$0xff]
      %v1617 = vld [vmem:[%s457 + $0xb1] sm:$0xff]
      %v1618 = vld [vmem:[%s457 + $0xc1] sm:$0xff]
      %v1619 = vld [vmem:[%s457 + $0xc9] sm:$0xff]
      %v1620 = vld [vmem:[%s457 + $0xd9] sm:$0xff]
      %v1621 = vld [vmem:[%s457 + $0xe1] sm:$0xff]
      %v1622 = vld [vmem:[%s457 + $0xf1] sm:$0xff]
      %v1623 = vld [vmem:[%s457 + $0xf9] sm:$0xff]
      %v1624 = vld [vmem:[%s457 + $0x109] sm:$0xff]
      %v1625 = vld [vmem:[%s457 + $0x111] sm:$0xff]
      %v1626 = vld [vmem:[%s457 + $0x121] sm:$0xff]
      %v1627 = vld [vmem:[%s457 + $0x129] sm:$0xff]
      %v1628 = vld [vmem:[%s457 + $0x139] sm:$0xff]
      %v1629 = vld [vmem:[%s457 + $0x141] sm:$0xff]
      %v1630 = vld [vmem:[%s457 + $0x151] sm:$0xff]
      %v1631 = vld [vmem:[%s457 + $0x159] sm:$0xff]
      %v1632 = vld [vmem:[%s457 + $0x169] sm:$0xff]
      %v1633 = vld [vmem:[%s457 + $0x171] sm:$0xff]
      %v1634 = vpack.c.bf16 %v1603, %v1602
      %v1635 = vpack.c.bf16 %v1605, %v1604
      %v1636 = vpack.c.bf16 %v1607, %v1606
      %v1637 = vpack.c.bf16 %v1609, %v1608
      %v1638 = vpack.c.bf16 %v1611, %v1610
      %v1639 = vpack.c.bf16 %v1613, %v1612
      %v1640 = vpack.c.bf16 %v1615, %v1614
      %v1641 = vpack.c.bf16 %v1617, %v1616
      %v1642 = vpack.c.bf16 %v1619, %v1618
      %v1643 = vpack.c.bf16 %v1621, %v1620
      %v1644 = vpack.c.bf16 %v1623, %v1622
      %v1645 = vpack.c.bf16 %v1625, %v1624
      %v1646 = vpack.c.bf16 %v1627, %v1626
      %v1647 = vpack.c.bf16 %v1629, %v1628
      %v1648 = vpack.c.bf16 %v1631, %v1630
      %v1649 = vpack.c.bf16 %v1633, %v1632
      %s1650 = scalar_lea.vmem %s1, 8
      %v1651 = vld [vmem:[%s1650] sm:$0x3]
      %v1653 = vsel %vm237, %v1634, 0
      %v1656 = vsel %vm237, %v1635, 0
      %v1659 = vsel %vm237, %v1636, 0
      %v1662 = vsel %vm237, %v1637, 0
      %v1665 = vsel %vm237, %v1638, 0
      %v1668 = vsel %vm237, %v1639, 0
      %v1671 = vsel %vm237, %v1640, 0
      %v1674 = vsel %vm237, %v1641, 0
      %v1677 = vsel %vm237, %v1642, 0
      %v1680 = vsel %vm237, %v1643, 0
      %v1683 = vsel %vm237, %v1644, 0
      %v1686 = vsel %vm237, %v1645, 0
      %v1689 = vsel %vm237, %v1646, 0
      %v1692 = vsel %vm237, %v1647, 0
      %v1695 = vsel %vm237, %v1648, 0
      %v1698 = vsel %vm237, %v1649, 0
      %v1701 = vsel %vm637, %v1651, 0
      %1703 = vmatprep.subr.bf16.mxu0 0
      %1704 = vmatpush1.bf16.msra.mxu0 %v1701
      %1705 = vmatprep.subr.bf16.mxu0 0
      %1706 = vmatpush1.bf16.msra.mxu0 0
      %1707 = vmatprep.subr.bf16.mxu0 0
      %1708 = vmatpush1.bf16.msra.mxu0 0
      %1709 = vmatprep.subr.bf16.mxu0 0
      %1710 = vmatpush1.bf16.msra.mxu0 0
      %1711 = vmatprep.subr.bf16.mxu0 0
      %1712 = vmatpush1.bf16.msra.mxu0 0
      %1713 = vmatprep.subr.bf16.mxu0 0
      %1714 = vmatpush1.bf16.msra.mxu0 0
      %1715 = vmatprep.subr.bf16.mxu0 0
      %1716 = vmatpush1.bf16.msra.mxu0 0
      %1717 = vmatprep.subr.bf16.mxu0 0
      %1718 = vmatpush1.bf16.msra.mxu0 0
      %1719 = vmatprep.subr.bf16.mxu0 0
      %1720 = vmatpush1.bf16.msra.mxu0 0
      %1721 = vmatprep.subr.bf16.mxu0 0
      %1722 = vmatpush1.bf16.msra.mxu0 0
      %1723 = vmatprep.subr.bf16.mxu0 0
      %1724 = vmatpush1.bf16.msra.mxu0 0
      %1725 = vmatprep.subr.bf16.mxu0 0
      %1726 = vmatpush1.bf16.msra.mxu0 0
      %1727 = vmatprep.subr.bf16.mxu0 0
      %1728 = vmatpush1.bf16.msra.mxu0 0
      %1729 = vmatprep.subr.bf16.mxu0 0
      %1730 = vmatpush1.bf16.msra.mxu0 0
      %1731 = vmatprep.subr.bf16.mxu0 0
      %1732 = vmatpush1.bf16.msra.mxu0 0
      %1733 = vmatprep.subr.bf16.mxu0 0
      %1734 = vmatpush1.bf16.msra.mxu0 0
      %1735 = vmatprep.mubr.bf16.mxu0 0
      %1736 = vmatmul.mubr.bf16.gmra.mrb[0].mxu0 %v1653
      %v1737 = vpop.f32.mrb[0].mxu0
      %v1738 = vadd.f32 0.0, %v1737
      %v1739 = vpop.f32.mrb[0].mxu0
      %v1740 = vpop.f32.mrb[0].mxu0
      %v1741 = vadd.f32 0.0, %v1740
      %v1742 = vpop.f32.mrb[0].mxu0
      %1743 = vmatprep.mubr.bf16.mxu0 0
      %1744 = vmatmul.mubr.bf16.gmra.mrb[0].mxu0 %v1656
      %v1745 = vpop.f32.mrb[0].mxu0
      %v1746 = vadd.f32 0.0, %v1745
      %v1747 = vpop.f32.mrb[0].mxu0
      %v1748 = vpop.f32.mrb[0].mxu0
      %v1749 = vadd.f32 0.0, %v1748
      %v1750 = vpop.f32.mrb[0].mxu0
      %1751 = vmatprep.mubr.bf16.mxu0 0
      %1752 = vmatmul.mubr.bf16.gmra.mrb[0].mxu0 %v1659
      %v1753 = vpop.f32.mrb[0].mxu0
      %v1754 = vadd.f32 0.0, %v1753
      %v1755 = vpop.f32.mrb[0].mxu0
      %v1756 = vpop.f32.mrb[0].mxu0
      %v1757 = vadd.f32 0.0, %v1756
      %v1758 = vpop.f32.mrb[0].mxu0
      %1759 = vmatprep.mubr.bf16.mxu0 0
      %1760 = vmatmul.mubr.bf16.gmra.mrb[0].mxu0 %v1662
      %v1761 = vpop.f32.mrb[0].mxu0
      %v1762 = vadd.f32 0.0, %v1761
      %v1763 = vpop.f32.mrb[0].mxu0
      %v1764 = vpop.f32.mrb[0].mxu0
      %v1765 = vadd.f32 0.0, %v1764
      %v1766 = vpop.f32.mrb[0].mxu0
      %1767 = vmatprep.mubr.bf16.mxu0 0
      %1768 = vmatmul.mubr.bf16.gmra.mrb[0].mxu0 %v1665
      %v1769 = vpop.f32.mrb[0].mxu0
      %v1770 = vadd.f32 0.0, %v1769
      %v1771 = vpop.f32.mrb[0].mxu0
      %v1772 = vpop.f32.mrb[0].mxu0
      %v1773 = vadd.f32 0.0, %v1772
      %v1774 = vpop.f32.mrb[0].mxu0
      %1775 = vmatprep.mubr.bf16.mxu0 0
      %1776 = vmatmul.mubr.bf16.gmra.mrb[0].mxu0 %v1668
      %v1777 = vpop.f32.mrb[0].mxu0
      %v1778 = vadd.f32 0.0, %v1777
      %v1779 = vpop.f32.mrb[0].mxu0
      %v1780 = vpop.f32.mrb[0].mxu0
      %v1781 = vadd.f32 0.0, %v1780
      %v1782 = vpop.f32.mrb[0].mxu0
      %1783 = vmatprep.mubr.bf16.mxu0 0
      %1784 = vmatmul.mubr.bf16.gmra.mrb[0].mxu0 %v1671
      %v1785 = vpop.f32.mrb[0].mxu0
      %v1786 = vadd.f32 0.0, %v1785
      %v1787 = vpop.f32.mrb[0].mxu0
      %v1788 = vpop.f32.mrb[0].mxu0
      %v1789 = vadd.f32 0.0, %v1788
      %v1790 = vpop.f32.mrb[0].mxu0
      %1791 = vmatprep.mubr.bf16.mxu0 0
      %1792 = vmatmul.mubr.bf16.gmra.mrb[0].mxu0 %v1674
      %v1793 = vpop.f32.mrb[0].mxu0
      %v1794 = vadd.f32 0.0, %v1793
      %v1795 = vpop.f32.mrb[0].mxu0
      %v1796 = vpop.f32.mrb[0].mxu0
      %v1797 = vadd.f32 0.0, %v1796
      %v1798 = vpop.f32.mrb[0].mxu0
      %1799 = vmatprep.mubr.bf16.mxu0 0
      %1800 = vmatmul.mubr.bf16.gmra.mrb[0].mxu0 %v1677
      %v1801 = vpop.f32.mrb[0].mxu0
      %v1802 = vadd.f32 0.0, %v1801
      %v1803 = vpop.f32.mrb[0].mxu0
      %v1804 = vpop.f32.mrb[0].mxu0
      %v1805 = vadd.f32 0.0, %v1804
      %v1806 = vpop.f32.mrb[0].mxu0
      %1807 = vmatprep.mubr.bf16.mxu0 0
      %1808 = vmatmul.mubr.bf16.gmra.mrb[0].mxu0 %v1680
      %v1809 = vpop.f32.mrb[0].mxu0
      %v1810 = vadd.f32 0.0, %v1809
      %v1811 = vpop.f32.mrb[0].mxu0
      %v1812 = vpop.f32.mrb[0].mxu0
      %v1813 = vadd.f32 0.0, %v1812
      %v1814 = vpop.f32.mrb[0].mxu0
      %1815 = vmatprep.mubr.bf16.mxu0 0
      %1816 = vmatmul.mubr.bf16.gmra.mrb[0].mxu0 %v1683
      %v1817 = vpop.f32.mrb[0].mxu0
      %v1818 = vadd.f32 0.0, %v1817
      %v1819 = vpop.f32.mrb[0].mxu0
      %v1820 = vpop.f32.mrb[0].mxu0
      %v1821 = vadd.f32 0.0, %v1820
      %v1822 = vpop.f32.mrb[0].mxu0
      %1823 = vmatprep.mubr.bf16.mxu0 0
      %1824 = vmatmul.mubr.bf16.gmra.mrb[0].mxu0 %v1686
      %v1825 = vpop.f32.mrb[0].mxu0
      %v1826 = vadd.f32 0.0, %v1825
      %v1827 = vpop.f32.mrb[0].mxu0
      %v1828 = vpop.f32.mrb[0].mxu0
      %v1829 = vadd.f32 0.0, %v1828
      %v1830 = vpop.f32.mrb[0].mxu0
      %1831 = vmatprep.mubr.bf16.mxu0 0
      %1832 = vmatmul.mubr.bf16.gmra.mrb[0].mxu0 %v1689
      %v1833 = vpop.f32.mrb[0].mxu0
      %v1834 = vadd.f32 0.0, %v1833
      %v1835 = vpop.f32.mrb[0].mxu0
      %v1836 = vpop.f32.mrb[0].mxu0
      %v1837 = vadd.f32 0.0, %v1836
      %v1838 = vpop.f32.mrb[0].mxu0
      %1839 = vmatprep.mubr.bf16.mxu0 0
      %1840 = vmatmul.mubr.bf16.gmra.mrb[0].mxu0 %v1692
      %v1841 = vpop.f32.mrb[0].mxu0
      %v1842 = vadd.f32 0.0, %v1841
      %v1843 = vpop.f32.mrb[0].mxu0
      %v1844 = vpop.f32.mrb[0].mxu0
      %v1845 = vadd.f32 0.0, %v1844
      %v1846 = vpop.f32.mrb[0].mxu0
      %1847 = vmatprep.mubr.bf16.mxu0 0
      %1848 = vmatmul.mubr.bf16.gmra.mrb[0].mxu0 %v1695
      %v1849 = vpop.f32.mrb[0].mxu0
      %v1850 = vadd.f32 0.0, %v1849
      %v1851 = vpop.f32.mrb[0].mxu0
      %v1852 = vpop.f32.mrb[0].mxu0
      %v1853 = vadd.f32 0.0, %v1852
      %v1854 = vpop.f32.mrb[0].mxu0
      %1855 = vmatprep.mubr.bf16.mxu0 0
      %1856 = vmatmul.mubr.bf16.gmra.mrb[0].mxu0 %v1698
      %v1857 = vpop.f32.mrb[0].mxu0
      %v1858 = vadd.f32 0.0, %v1857
      %v1859 = vpop.f32.mrb[0].mxu0
      %v1860 = vpop.f32.mrb[0].mxu0
      %v1861 = vadd.f32 0.0, %v1860
      %v1862 = vpop.f32.mrb[0].mxu0
      %1863 = vdwg.mxu0
      %v1864 = vadd.f32 %v1570, %v1738
      %v1865 = vadd.f32 %v1571, %v1741
      %v1866 = vadd.f32 %v1572, %v1746
      %v1867 = vadd.f32 %v1573, %v1749
      %v1868 = vadd.f32 %v1574, %v1754
      %v1869 = vadd.f32 %v1575, %v1757
      %v1870 = vadd.f32 %v1576, %v1762
      %v1871 = vadd.f32 %v1577, %v1765
      %v1872 = vadd.f32 %v1578, %v1770
      %v1873 = vadd.f32 %v1579, %v1773
      %v1874 = vadd.f32 %v1580, %v1778
      %v1875 = vadd.f32 %v1581, %v1781
      %v1876 = vadd.f32 %v1582, %v1786
      %v1877 = vadd.f32 %v1583, %v1789
      %v1878 = vadd.f32 %v1584, %v1794
      %v1879 = vadd.f32 %v1585, %v1797
      %v1880 = vadd.f32 %v1586, %v1802
      %v1881 = vadd.f32 %v1587, %v1805
      %v1882 = vadd.f32 %v1588, %v1810
      %v1883 = vadd.f32 %v1589, %v1813
      %v1884 = vadd.f32 %v1590, %v1818
      %v1885 = vadd.f32 %v1591, %v1821
      %v1886 = vadd.f32 %v1592, %v1826
      %v1887 = vadd.f32 %v1593, %v1829
      %v1888 = vadd.f32 %v1594, %v1834
      %v1889 = vadd.f32 %v1595, %v1837
      %v1890 = vadd.f32 %v1596, %v1842
      %v1891 = vadd.f32 %v1597, %v1845
      %v1892 = vadd.f32 %v1598, %v1850
      %v1893 = vadd.f32 %v1599, %v1853
      %v1894 = vadd.f32 %v1600, %v1858
      %v1895 = vadd.f32 %v1601, %v1861
      %v1896 = vld [vmem:[%s457 + $0x2] sm:$0xff]
      %v1897 = vld [vmem:[%s457 + $0xa] sm:$0xff]
      %v1898 = vld [vmem:[%s457 + $0x1a] sm:$0xff]
      %v1899 = vld [vmem:[%s457 + $0x22] sm:$0xff]
      %v1900 = vld [vmem:[%s457 + $0x32] sm:$0xff]
      %v1901 = vld [vmem:[%s457 + $0x3a] sm:$0xff]
      %v1902 = vld [vmem:[%s457 + $0x4a] sm:$0xff]
      %v1903 = vld [vmem:[%s457 + $0x52] sm:$0xff]
      %v1904 = vld [vmem:[%s457 + $0x62] sm:$0xff]
      %v1905 = vld [vmem:[%s457 + $0x6a] sm:$0xff]
      %v1906 = vld [vmem:[%s457 + $0x7a] sm:$0xff]
      %v1907 = vld [vmem:[%s457 + $0x82] sm:$0xff]
      %v1908 = vld [vmem:[%s457 + $0x92] sm:$0xff]
      %v1909 = vld [vmem:[%s457 + $0x9a] sm:$0xff]
      %v1910 = vld [vmem:[%s457 + $0xaa] sm:$0xff]
      %v1911 = vld [vmem:[%s457 + $0xb2] sm:$0xff]
      %v1912 = vld [vmem:[%s457 + $0xc2] sm:$0xff]
      %v1913 = vld [vmem:[%s457 + $0xca] sm:$0xff]
      %v1914 = vld [vmem:[%s457 + $0xda] sm:$0xff]
      %v1915 = vld [vmem:[%s457 + $0xe2] sm:$0xff]
      %v1916 = vld [vmem:[%s457 + $0xf2] sm:$0xff]
      %v1917 = vld [vmem:[%s457 + $0xfa] sm:$0xff]
      %v1918 = vld [vmem:[%s457 + $0x10a] sm:$0xff]
      %v1919 = vld [vmem:[%s457 + $0x112] sm:$0xff]
      %v1920 = vld [vmem:[%s457 + $0x122] sm:$0xff]
      %v1921 = vld [vmem:[%s457 + $0x12a] sm:$0xff]
      %v1922 = vld [vmem:[%s457 + $0x13a] sm:$0xff]
      %v1923 = vld [vmem:[%s457 + $0x142] sm:$0xff]
      %v1924 = vld [vmem:[%s457 + $0x152] sm:$0xff]
      %v1925 = vld [vmem:[%s457 + $0x15a] sm:$0xff]
      %v1926 = vld [vmem:[%s457 + $0x16a] sm:$0xff]
      %v1927 = vld [vmem:[%s457 + $0x172] sm:$0xff]
      %v1928 = vpack.c.bf16 %v1897, %v1896
      %v1929 = vpack.c.bf16 %v1899, %v1898
      %v1930 = vpack.c.bf16 %v1901, %v1900
      %v1931 = vpack.c.bf16 %v1903, %v1902
      %v1932 = vpack.c.bf16 %v1905, %v1904
      %v1933 = vpack.c.bf16 %v1907, %v1906
      %v1934 = vpack.c.bf16 %v1909, %v1908
      %v1935 = vpack.c.bf16 %v1911, %v1910
      %v1936 = vpack.c.bf16 %v1913, %v1912
      %v1937 = vpack.c.bf16 %v1915, %v1914
      %v1938 = vpack.c.bf16 %v1917, %v1916
      %v1939 = vpack.c.bf16 %v1919, %v1918
      %v1940 = vpack.c.bf16 %v1921, %v1920
      %v1941 = vpack.c.bf16 %v1923, %v1922
      %v1942 = vpack.c.bf16 %v1925, %v1924
      %v1943 = vpack.c.bf16 %v1927, %v1926
      %s1944 = scalar_lea.vmem %s1, 10
      %v1945 = vld [vmem:[%s1944] sm:$0x3]
      %v1947 = vsel %vm237, %v1928, 0
      %v1950 = vsel %vm237, %v1929, 0
      %v1953 = vsel %vm237, %v1930, 0
      %v1956 = vsel %vm237, %v1931, 0
      %v1959 = vsel %vm237, %v1932, 0
      %v1962 = vsel %vm237, %v1933, 0
      %v1965 = vsel %vm237, %v1934, 0
      %v1968 = vsel %vm237, %v1935, 0
      %v1971 = vsel %vm237, %v1936, 0
      %v1974 = vsel %vm237, %v1937, 0
      %v1977 = vsel %vm237, %v1938, 0
      %v1980 = vsel %vm237, %v1939, 0
      %v1983 = vsel %vm237, %v1940, 0
      %v1986 = vsel %vm237, %v1941, 0
      %v1989 = vsel %vm237, %v1942, 0
      %v1992 = vsel %vm237, %v1943, 0
      %v1995 = vsel %vm637, %v1945, 0
      %1997 = vmatprep.subr.bf16.mxu0 0
      %1998 = vmatpush1.bf16.msra.mxu0 %v1995
      %1999 = vmatprep.subr.bf16.mxu0 0
      %2000 = vmatpush1.bf16.msra.mxu0 0
      %2001 = vmatprep.subr.bf16.mxu0 0
      %2002 = vmatpush1.bf16.msra.mxu0 0
      %2003 = vmatprep.subr.bf16.mxu0 0
      %2004 = vmatpush1.bf16.msra.mxu0 0
      %2005 = vmatprep.subr.bf16.mxu0 0
      %2006 = vmatpush1.bf16.msra.mxu0 0
      %2007 = vmatprep.subr.bf16.mxu0 0
      %2008 = vmatpush1.bf16.msra.mxu0 0
      %2009 = vmatprep.subr.bf16.mxu0 0
      %2010 = vmatpush1.bf16.msra.mxu0 0
      %2011 = vmatprep.subr.bf16.mxu0 0
      %2012 = vmatpush1.bf16.msra.mxu0 0
      %2013 = vmatprep.subr.bf16.mxu0 0
      %2014 = vmatpush1.bf16.msra.mxu0 0
      %2015 = vmatprep.subr.bf16.mxu0 0
      %2016 = vmatpush1.bf16.msra.mxu0 0
      %2017 = vmatprep.subr.bf16.mxu0 0
      %2018 = vmatpush1.bf16.msra.mxu0 0
      %2019 = vmatprep.subr.bf16.mxu0 0
      %2020 = vmatpush1.bf16.msra.mxu0 0
      %2021 = vmatprep.subr.bf16.mxu0 0
      %2022 = vmatpush1.bf16.msra.mxu0 0
      %2023 = vmatprep.subr.bf16.mxu0 0
      %2024 = vmatpush1.bf16.msra.mxu0 0
      %2025 = vmatprep.subr.bf16.mxu0 0
      %2026 = vmatpush1.bf16.msra.mxu0 0
      %2027 = vmatprep.subr.bf16.mxu0 0
      %2028 = vmatpush1.bf16.msra.mxu0 0
      %2029 = vmatprep.mubr.bf16.mxu0 0
      %2030 = vmatmul.mubr.bf16.gmra.mrb[0].mxu0 %v1947
      %v2031 = vpop.f32.mrb[0].mxu0
      %v2032 = vadd.f32 0.0, %v2031
      %v2033 = vpop.f32.mrb[0].mxu0
      %v2034 = vpop.f32.mrb[0].mxu0
      %v2035 = vadd.f32 0.0, %v2034
      %v2036 = vpop.f32.mrb[0].mxu0
      %2037 = vmatprep.mubr.bf16.mxu0 0
      %2038 = vmatmul.mubr.bf16.gmra.mrb[0].mxu0 %v1950
      %v2039 = vpop.f32.mrb[0].mxu0
      %v2040 = vadd.f32 0.0, %v2039
      %v2041 = vpop.f32.mrb[0].mxu0
      %v2042 = vpop.f32.mrb[0].mxu0
      %v2043 = vadd.f32 0.0, %v2042
      %v2044 = vpop.f32.mrb[0].mxu0
      %2045 = vmatprep.mubr.bf16.mxu0 0
      %2046 = vmatmul.mubr.bf16.gmra.mrb[0].mxu0 %v1953
      %v2047 = vpop.f32.mrb[0].mxu0
      %v2048 = vadd.f32 0.0, %v2047
      %v2049 = vpop.f32.mrb[0].mxu0
      %v2050 = vpop.f32.mrb[0].mxu0
      %v2051 = vadd.f32 0.0, %v2050
      %v2052 = vpop.f32.mrb[0].mxu0
      %2053 = vmatprep.mubr.bf16.mxu0 0
      %2054 = vmatmul.mubr.bf16.gmra.mrb[0].mxu0 %v1956
      %v2055 = vpop.f32.mrb[0].mxu0
      %v2056 = vadd.f32 0.0, %v2055
      %v2057 = vpop.f32.mrb[0].mxu0
      %v2058 = vpop.f32.mrb[0].mxu0
      %v2059 = vadd.f32 0.0, %v2058
      %v2060 = vpop.f32.mrb[0].mxu0
      %2061 = vmatprep.mubr.bf16.mxu0 0
      %2062 = vmatmul.mubr.bf16.gmra.mrb[0].mxu0 %v1959
      %v2063 = vpop.f32.mrb[0].mxu0
      %v2064 = vadd.f32 0.0, %v2063
      %v2065 = vpop.f32.mrb[0].mxu0
      %v2066 = vpop.f32.mrb[0].mxu0
      %v2067 = vadd.f32 0.0, %v2066
      %v2068 = vpop.f32.mrb[0].mxu0
      %2069 = vmatprep.mubr.bf16.mxu0 0
      %2070 = vmatmul.mubr.bf16.gmra.mrb[0].mxu0 %v1962
      %v2071 = vpop.f32.mrb[0].mxu0
      %v2072 = vadd.f32 0.0, %v2071
      %v2073 = vpop.f32.mrb[0].mxu0
      %v2074 = vpop.f32.mrb[0].mxu0
      %v2075 = vadd.f32 0.0, %v2074
      %v2076 = vpop.f32.mrb[0].mxu0
      %2077 = vmatprep.mubr.bf16.mxu0 0
      %2078 = vmatmul.mubr.bf16.gmra.mrb[0].mxu0 %v1965
      %v2079 = vpop.f32.mrb[0].mxu0
      %v2080 = vadd.f32 0.0, %v2079
      %v2081 = vpop.f32.mrb[0].mxu0
      %v2082 = vpop.f32.mrb[0].mxu0
      %v2083 = vadd.f32 0.0, %v2082
      %v2084 = vpop.f32.mrb[0].mxu0
      %2085 = vmatprep.mubr.bf16.mxu0 0
      %2086 = vmatmul.mubr.bf16.gmra.mrb[0].mxu0 %v1968
      %v2087 = vpop.f32.mrb[0].mxu0
      %v2088 = vadd.f32 0.0, %v2087
      %v2089 = vpop.f32.mrb[0].mxu0
      %v2090 = vpop.f32.mrb[0].mxu0
      %v2091 = vadd.f32 0.0, %v2090
      %v2092 = vpop.f32.mrb[0].mxu0
      %2093 = vmatprep.mubr.bf16.mxu0 0
      %2094 = vmatmul.mubr.bf16.gmra.mrb[0].mxu0 %v1971
      %v2095 = vpop.f32.mrb[0].mxu0
      %v2096 = vadd.f32 0.0, %v2095
      %v2097 = vpop.f32.mrb[0].mxu0
      %v2098 = vpop.f32.mrb[0].mxu0
      %v2099 = vadd.f32 0.0, %v2098
      %v2100 = vpop.f32.mrb[0].mxu0
      %2101 = vmatprep.mubr.bf16.mxu0 0
      %2102 = vmatmul.mubr.bf16.gmra.mrb[0].mxu0 %v1974
      %v2103 = vpop.f32.mrb[0].mxu0
      %v2104 = vadd.f32 0.0, %v2103
      %v2105 = vpop.f32.mrb[0].mxu0
      %v2106 = vpop.f32.mrb[0].mxu0
      %v2107 = vadd.f32 0.0, %v2106
      %v2108 = vpop.f32.mrb[0].mxu0
      %2109 = vmatprep.mubr.bf16.mxu0 0
      %2110 = vmatmul.mubr.bf16.gmra.mrb[0].mxu0 %v1977
      %v2111 = vpop.f32.mrb[0].mxu0
      %v2112 = vadd.f32 0.0, %v2111
      %v2113 = vpop.f32.mrb[0].mxu0
      %v2114 = vpop.f32.mrb[0].mxu0
      %v2115 = vadd.f32 0.0, %v2114
      %v2116 = vpop.f32.mrb[0].mxu0
      %2117 = vmatprep.mubr.bf16.mxu0 0
      %2118 = vmatmul.mubr.bf16.gmra.mrb[0].mxu0 %v1980
      %v2119 = vpop.f32.mrb[0].mxu0
      %v2120 = vadd.f32 0.0, %v2119
      %v2121 = vpop.f32.mrb[0].mxu0
      %v2122 = vpop.f32.mrb[0].mxu0
      %v2123 = vadd.f32 0.0, %v2122
      %v2124 = vpop.f32.mrb[0].mxu0
      %2125 = vmatprep.mubr.bf16.mxu0 0
      %2126 = vmatmul.mubr.bf16.gmra.mrb[0].mxu0 %v1983
      %v2127 = vpop.f32.mrb[0].mxu0
      %v2128 = vadd.f32 0.0, %v2127
      %v2129 = vpop.f32.mrb[0].mxu0
      %v2130 = vpop.f32.mrb[0].mxu0
      %v2131 = vadd.f32 0.0, %v2130
      %v2132 = vpop.f32.mrb[0].mxu0
      %2133 = vmatprep.mubr.bf16.mxu0 0
      %2134 = vmatmul.mubr.bf16.gmra.mrb[0].mxu0 %v1986
      %v2135 = vpop.f32.mrb[0].mxu0
      %v2136 = vadd.f32 0.0, %v2135
      %v2137 = vpop.f32.mrb[0].mxu0
      %v2138 = vpop.f32.mrb[0].mxu0
      %v2139 = vadd.f32 0.0, %v2138
      %v2140 = vpop.f32.mrb[0].mxu0
      %2141 = vmatprep.mubr.bf16.mxu0 0
      %2142 = vmatmul.mubr.bf16.gmra.mrb[0].mxu0 %v1989
      %v2143 = vpop.f32.mrb[0].mxu0
      %v2144 = vadd.f32 0.0, %v2143
      %v2145 = vpop.f32.mrb[0].mxu0
      %v2146 = vpop.f32.mrb[0].mxu0
      %v2147 = vadd.f32 0.0, %v2146
      %v2148 = vpop.f32.mrb[0].mxu0
      %2149 = vmatprep.mubr.bf16.mxu0 0
      %2150 = vmatmul.mubr.bf16.gmra.mrb[0].mxu0 %v1992
      %v2151 = vpop.f32.mrb[0].mxu0
      %v2152 = vadd.f32 0.0, %v2151
      %v2153 = vpop.f32.mrb[0].mxu0
      %v2154 = vpop.f32.mrb[0].mxu0
      %v2155 = vadd.f32 0.0, %v2154
      %v2156 = vpop.f32.mrb[0].mxu0
      %2157 = vdwg.mxu0
      %v2158 = vadd.f32 %v1864, %v2032
      %v2159 = vadd.f32 %v1865, %v2035
      %v2160 = vadd.f32 %v1866, %v2040
      %v2161 = vadd.f32 %v1867, %v2043
      %v2162 = vadd.f32 %v1868, %v2048
      %v2163 = vadd.f32 %v1869, %v2051
      %v2164 = vadd.f32 %v1870, %v2056
      %v2165 = vadd.f32 %v1871, %v2059
      %v2166 = vadd.f32 %v1872, %v2064
      %v2167 = vadd.f32 %v1873, %v2067
      %v2168 = vadd.f32 %v1874, %v2072
      %v2169 = vadd.f32 %v1875, %v2075
      %v2170 = vadd.f32 %v1876, %v2080
      %v2171 = vadd.f32 %v1877, %v2083
      %v2172 = vadd.f32 %v1878, %v2088
      %v2173 = vadd.f32 %v1879, %v2091
      %v2174 = vadd.f32 %v1880, %v2096
      %v2175 = vadd.f32 %v1881, %v2099
      %v2176 = vadd.f32 %v1882, %v2104
      %v2177 = vadd.f32 %v1883, %v2107
      %v2178 = vadd.f32 %v1884, %v2112
      %v2179 = vadd.f32 %v1885, %v2115
      %v2180 = vadd.f32 %v1886, %v2120
      %v2181 = vadd.f32 %v1887, %v2123
      %v2182 = vadd.f32 %v1888, %v2128
      %v2183 = vadd.f32 %v1889, %v2131
      %v2184 = vadd.f32 %v1890, %v2136
      %v2185 = vadd.f32 %v1891, %v2139
      %v2186 = vadd.f32 %v1892, %v2144
      %v2187 = vadd.f32 %v1893, %v2147
      %v2188 = vadd.f32 %v1894, %v2152
      %v2189 = vadd.f32 %v1895, %v2155
      %s2190 = scalar_lea.vmem [#allocation2], 48
      %v2191 = vld [vmem:[%s2190] sm:$0xff]
      %v2192 = vld [vmem:[%s2190 + $0x8] sm:$0xff]
      %v2193 = vld [vmem:[%s2190 + $0x18] sm:$0xff]
      %v2194 = vld [vmem:[%s2190 + $0x20] sm:$0xff]
      %v2195 = vld [vmem:[%s2190 + $0x30] sm:$0xff]
      %v2196 = vld [vmem:[%s2190 + $0x38] sm:$0xff]
      %v2197 = vld [vmem:[%s2190 + $0x48] sm:$0xff]
      %v2198 = vld [vmem:[%s2190 + $0x50] sm:$0xff]
      %v2199 = vld [vmem:[%s2190 + $0x60] sm:$0xff]
      %v2200 = vld [vmem:[%s2190 + $0x68] sm:$0xff]
      %v2201 = vld [vmem:[%s2190 + $0x78] sm:$0xff]
      %v2202 = vld [vmem:[%s2190 + $0x80] sm:$0xff]
      %v2203 = vld [vmem:[%s2190 + $0x90] sm:$0xff]
      %v2204 = vld [vmem:[%s2190 + $0x98] sm:$0xff]
      %v2205 = vld [vmem:[%s2190 + $0xa8] sm:$0xff]
      %v2206 = vld [vmem:[%s2190 + $0xb0] sm:$0xff]
      %v2207 = vld [vmem:[%s2190 + $0xc0] sm:$0xff]
      %v2208 = vld [vmem:[%s2190 + $0xc8] sm:$0xff]
      %v2209 = vld [vmem:[%s2190 + $0xd8] sm:$0xff]
      %v2210 = vld [vmem:[%s2190 + $0xe0] sm:$0xff]
      %v2211 = vld [vmem:[%s2190 + $0xf0] sm:$0xff]
      %v2212 = vld [vmem:[%s2190 + $0xf8] sm:$0xff]
      %v2213 = vld [vmem:[%s2190 + $0x108] sm:$0xff]
      %v2214 = vld [vmem:[%s2190 + $0x110] sm:$0xff]
      %v2215 = vld [vmem:[%s2190 + $0x120] sm:$0xff]
      %v2216 = vld [vmem:[%s2190 + $0x128] sm:$0xff]
      %v2217 = vld [vmem:[%s2190 + $0x138] sm:$0xff]
      %v2218 = vld [vmem:[%s2190 + $0x140] sm:$0xff]
      %v2219 = vld [vmem:[%s2190 + $0x150] sm:$0xff]
      %v2220 = vld [vmem:[%s2190 + $0x158] sm:$0xff]
      %v2221 = vld [vmem:[%s2190 + $0x168] sm:$0xff]
      %v2222 = vld [vmem:[%s2190 + $0x170] sm:$0xff]
      %v2223 = vpack.c.bf16 %v2192, %v2191
      %v2224 = vpack.c.bf16 %v2194, %v2193
      %v2225 = vpack.c.bf16 %v2196, %v2195
      %v2226 = vpack.c.bf16 %v2198, %v2197
      %v2227 = vpack.c.bf16 %v2200, %v2199
      %v2228 = vpack.c.bf16 %v2202, %v2201
      %v2229 = vpack.c.bf16 %v2204, %v2203
      %v2230 = vpack.c.bf16 %v2206, %v2205
      %v2231 = vpack.c.bf16 %v2208, %v2207
      %v2232 = vpack.c.bf16 %v2210, %v2209
      %v2233 = vpack.c.bf16 %v2212, %v2211
      %v2234 = vpack.c.bf16 %v2214, %v2213
      %v2235 = vpack.c.bf16 %v2216, %v2215
      %v2236 = vpack.c.bf16 %v2218, %v2217
      %v2237 = vpack.c.bf16 %v2220, %v2219
      %v2238 = vpack.c.bf16 %v2222, %v2221
      %s2239 = scalar_lea.vmem %s1, 12
      %v2240 = vld [vmem:[%s2239] sm:$0x3]
      %v2242 = vsel %vm237, %v2223, 0
      %v2245 = vsel %vm237, %v2224, 0
      %v2248 = vsel %vm237, %v2225, 0
      %v2251 = vsel %vm237, %v2226, 0
      %v2254 = vsel %vm237, %v2227, 0
      %v2257 = vsel %vm237, %v2228, 0
      %v2260 = vsel %vm237, %v2229, 0
      %v2263 = vsel %vm237, %v2230, 0
      %v2266 = vsel %vm237, %v2231, 0
      %v2269 = vsel %vm237, %v2232, 0
      %v2272 = vsel %vm237, %v2233, 0
      %v2275 = vsel %vm237, %v2234, 0
      %v2278 = vsel %vm237, %v2235, 0
      %v2281 = vsel %vm237, %v2236, 0
      %v2284 = vsel %vm237, %v2237, 0
      %v2287 = vsel %vm237, %v2238, 0
      %v2290 = vsel %vm637, %v2240, 0
      %2292 = vmatprep.subr.bf16.mxu0 0
      %2293 = vmatpush1.bf16.msra.mxu0 %v2290
      %2294 = vmatprep.subr.bf16.mxu0 0
      %2295 = vmatpush1.bf16.msra.mxu0 0
      %2296 = vmatprep.subr.bf16.mxu0 0
      %2297 = vmatpush1.bf16.msra.mxu0 0
      %2298 = vmatprep.subr.bf16.mxu0 0
      %2299 = vmatpush1.bf16.msra.mxu0 0
      %2300 = vmatprep.subr.bf16.mxu0 0
      %2301 = vmatpush1.bf16.msra.mxu0 0
      %2302 = vmatprep.subr.bf16.mxu0 0
      %2303 = vmatpush1.bf16.msra.mxu0 0
      %2304 = vmatprep.subr.bf16.mxu0 0
      %2305 = vmatpush1.bf16.msra.mxu0 0
      %2306 = vmatprep.subr.bf16.mxu0 0
      %2307 = vmatpush1.bf16.msra.mxu0 0
      %2308 = vmatprep.subr.bf16.mxu0 0
      %2309 = vmatpush1.bf16.msra.mxu0 0
      %2310 = vmatprep.subr.bf16.mxu0 0
      %2311 = vmatpush1.bf16.msra.mxu0 0
      %2312 = vmatprep.subr.bf16.mxu0 0
      %2313 = vmatpush1.bf16.msra.mxu0 0
      %2314 = vmatprep.subr.bf16.mxu0 0
      %2315 = vmatpush1.bf16.msra.mxu0 0
      %2316 = vmatprep.subr.bf16.mxu0 0
      %2317 = vmatpush1.bf16.msra.mxu0 0
      %2318 = vmatprep.subr.bf16.mxu0 0
      %2319 = vmatpush1.bf16.msra.mxu0 0
      %2320 = vmatprep.subr.bf16.mxu0 0
      %2321 = vmatpush1.bf16.msra.mxu0 0
      %2322 = vmatprep.subr.bf16.mxu0 0
      %2323 = vmatpush1.bf16.msra.mxu0 0
      %2324 = vmatprep.mubr.bf16.mxu0 0
      %2325 = vmatmul.mubr.bf16.gmra.mrb[0].mxu0 %v2242
      %v2326 = vpop.f32.mrb[0].mxu0
      %v2327 = vadd.f32 0.0, %v2326
      %v2328 = vpop.f32.mrb[0].mxu0
      %v2329 = vpop.f32.mrb[0].mxu0
      %v2330 = vadd.f32 0.0, %v2329
      %v2331 = vpop.f32.mrb[0].mxu0
      %2332 = vmatprep.mubr.bf16.mxu0 0
      %2333 = vmatmul.mubr.bf16.gmra.mrb[0].mxu0 %v2245
      %v2334 = vpop.f32.mrb[0].mxu0
      %v2335 = vadd.f32 0.0, %v2334
      %v2336 = vpop.f32.mrb[0].mxu0
      %v2337 = vpop.f32.mrb[0].mxu0
      %v2338 = vadd.f32 0.0, %v2337
      %v2339 = vpop.f32.mrb[0].mxu0
      %2340 = vmatprep.mubr.bf16.mxu0 0
      %2341 = vmatmul.mubr.bf16.gmra.mrb[0].mxu0 %v2248
      %v2342 = vpop.f32.mrb[0].mxu0
      %v2343 = vadd.f32 0.0, %v2342
      %v2344 = vpop.f32.mrb[0].mxu0
      %v2345 = vpop.f32.mrb[0].mxu0
      %v2346 = vadd.f32 0.0, %v2345
      %v2347 = vpop.f32.mrb[0].mxu0
      %2348 = vmatprep.mubr.bf16.mxu0 0
      %2349 = vmatmul.mubr.bf16.gmra.mrb[0].mxu0 %v2251
      %v2350 = vpop.f32.mrb[0].mxu0
      %v2351 = vadd.f32 0.0, %v2350
      %v2352 = vpop.f32.mrb[0].mxu0
      %v2353 = vpop.f32.mrb[0].mxu0
      %v2354 = vadd.f32 0.0, %v2353
      %v2355 = vpop.f32.mrb[0].mxu0
      %2356 = vmatprep.mubr.bf16.mxu0 0
      %2357 = vmatmul.mubr.bf16.gmra.mrb[0].mxu0 %v2254
      %v2358 = vpop.f32.mrb[0].mxu0
      %v2359 = vadd.f32 0.0, %v2358
      %v2360 = vpop.f32.mrb[0].mxu0
      %v2361 = vpop.f32.mrb[0].mxu0
      %v2362 = vadd.f32 0.0, %v2361
      %v2363 = vpop.f32.mrb[0].mxu0
      %2364 = vmatprep.mubr.bf16.mxu0 0
      %2365 = vmatmul.mubr.bf16.gmra.mrb[0].mxu0 %v2257
      %v2366 = vpop.f32.mrb[0].mxu0
      %v2367 = vadd.f32 0.0, %v2366
      %v2368 = vpop.f32.mrb[0].mxu0
      %v2369 = vpop.f32.mrb[0].mxu0
      %v2370 = vadd.f32 0.0, %v2369
      %v2371 = vpop.f32.mrb[0].mxu0
      %2372 = vmatprep.mubr.bf16.mxu0 0
      %2373 = vmatmul.mubr.bf16.gmra.mrb[0].mxu0 %v2260
      %v2374 = vpop.f32.mrb[0].mxu0
      %v2375 = vadd.f32 0.0, %v2374
      %v2376 = vpop.f32.mrb[0].mxu0
      %v2377 = vpop.f32.mrb[0].mxu0
      %v2378 = vadd.f32 0.0, %v2377
      %v2379 = vpop.f32.mrb[0].mxu0
      %2380 = vmatprep.mubr.bf16.mxu0 0
      %2381 = vmatmul.mubr.bf16.gmra.mrb[0].mxu0 %v2263
      %v2382 = vpop.f32.mrb[0].mxu0
      %v2383 = vadd.f32 0.0, %v2382
      %v2384 = vpop.f32.mrb[0].mxu0
      %v2385 = vpop.f32.mrb[0].mxu0
      %v2386 = vadd.f32 0.0, %v2385
      %v2387 = vpop.f32.mrb[0].mxu0
      %2388 = vmatprep.mubr.bf16.mxu0 0
      %2389 = vmatmul.mubr.bf16.gmra.mrb[0].mxu0 %v2266
      %v2390 = vpop.f32.mrb[0].mxu0
      %v2391 = vadd.f32 0.0, %v2390
      %v2392 = vpop.f32.mrb[0].mxu0
      %v2393 = vpop.f32.mrb[0].mxu0
      %v2394 = vadd.f32 0.0, %v2393
      %v2395 = vpop.f32.mrb[0].mxu0
      %2396 = vmatprep.mubr.bf16.mxu0 0
      %2397 = vmatmul.mubr.bf16.gmra.mrb[0].mxu0 %v2269
      %v2398 = vpop.f32.mrb[0].mxu0
      %v2399 = vadd.f32 0.0, %v2398
      %v2400 = vpop.f32.mrb[0].mxu0
      %v2401 = vpop.f32.mrb[0].mxu0
      %v2402 = vadd.f32 0.0, %v2401
      %v2403 = vpop.f32.mrb[0].mxu0
      %2404 = vmatprep.mubr.bf16.mxu0 0
      %2405 = vmatmul.mubr.bf16.gmra.mrb[0].mxu0 %v2272
      %v2406 = vpop.f32.mrb[0].mxu0
      %v2407 = vadd.f32 0.0, %v2406
      %v2408 = vpop.f32.mrb[0].mxu0
      %v2409 = vpop.f32.mrb[0].mxu0
      %v2410 = vadd.f32 0.0, %v2409
      %v2411 = vpop.f32.mrb[0].mxu0
      %2412 = vmatprep.mubr.bf16.mxu0 0
      %2413 = vmatmul.mubr.bf16.gmra.mrb[0].mxu0 %v2275
      %v2414 = vpop.f32.mrb[0].mxu0
      %v2415 = vadd.f32 0.0, %v2414
      %v2416 = vpop.f32.mrb[0].mxu0
      %v2417 = vpop.f32.mrb[0].mxu0
      %v2418 = vadd.f32 0.0, %v2417
      %v2419 = vpop.f32.mrb[0].mxu0
      %2420 = vmatprep.mubr.bf16.mxu0 0
      %2421 = vmatmul.mubr.bf16.gmra.mrb[0].mxu0 %v2278
      %v2422 = vpop.f32.mrb[0].mxu0
      %v2423 = vadd.f32 0.0, %v2422
      %v2424 = vpop.f32.mrb[0].mxu0
      %v2425 = vpop.f32.mrb[0].mxu0
      %v2426 = vadd.f32 0.0, %v2425
      %v2427 = vpop.f32.mrb[0].mxu0
      %2428 = vmatprep.mubr.bf16.mxu0 0
      %2429 = vmatmul.mubr.bf16.gmra.mrb[0].mxu0 %v2281
      %v2430 = vpop.f32.mrb[0].mxu0
      %v2431 = vadd.f32 0.0, %v2430
      %v2432 = vpop.f32.mrb[0].mxu0
      %v2433 = vpop.f32.mrb[0].mxu0
      %v2434 = vadd.f32 0.0, %v2433
      %v2435 = vpop.f32.mrb[0].mxu0
      %2436 = vmatprep.mubr.bf16.mxu0 0
      %2437 = vmatmul.mubr.bf16.gmra.mrb[0].mxu0 %v2284
      %v2438 = vpop.f32.mrb[0].mxu0
      %v2439 = vadd.f32 0.0, %v2438
      %v2440 = vpop.f32.mrb[0].mxu0
      %v2441 = vpop.f32.mrb[0].mxu0
      %v2442 = vadd.f32 0.0, %v2441
      %v2443 = vpop.f32.mrb[0].mxu0
      %2444 = vmatprep.mubr.bf16.mxu0 0
      %2445 = vmatmul.mubr.bf16.gmra.mrb[0].mxu0 %v2287
      %v2446 = vpop.f32.mrb[0].mxu0
      %v2447 = vadd.f32 0.0, %v2446
      %v2448 = vpop.f32.mrb[0].mxu0
      %v2449 = vpop.f32.mrb[0].mxu0
      %v2450 = vadd.f32 0.0, %v2449
      %v2451 = vpop.f32.mrb[0].mxu0
      %2452 = vdwg.mxu0
      %v2453 = vadd.f32 %v2158, %v2327
      %v2454 = vadd.f32 %v2159, %v2330
      %v2455 = vadd.f32 %v2160, %v2335
      %v2456 = vadd.f32 %v2161, %v2338
      %v2457 = vadd.f32 %v2162, %v2343
      %v2458 = vadd.f32 %v2163, %v2346
      %v2459 = vadd.f32 %v2164, %v2351
      %v2460 = vadd.f32 %v2165, %v2354
      %v2461 = vadd.f32 %v2166, %v2359
      %v2462 = vadd.f32 %v2167, %v2362
      %v2463 = vadd.f32 %v2168, %v2367
      %v2464 = vadd.f32 %v2169, %v2370
      %v2465 = vadd.f32 %v2170, %v2375
      %v2466 = vadd.f32 %v2171, %v2378
      %v2467 = vadd.f32 %v2172, %v2383
      %v2468 = vadd.f32 %v2173, %v2386
      %v2469 = vadd.f32 %v2174, %v2391
      %v2470 = vadd.f32 %v2175, %v2394
      %v2471 = vadd.f32 %v2176, %v2399
      %v2472 = vadd.f32 %v2177, %v2402
      %v2473 = vadd.f32 %v2178, %v2407
      %v2474 = vadd.f32 %v2179, %v2410
      %v2475 = vadd.f32 %v2180, %v2415
      %v2476 = vadd.f32 %v2181, %v2418
      %v2477 = vadd.f32 %v2182, %v2423
      %v2478 = vadd.f32 %v2183, %v2426
      %v2479 = vadd.f32 %v2184, %v2431
      %v2480 = vadd.f32 %v2185, %v2434
      %v2481 = vadd.f32 %v2186, %v2439
      %v2482 = vadd.f32 %v2187, %v2442
      %v2483 = vadd.f32 %v2188, %v2447
      %v2484 = vadd.f32 %v2189, %v2450
      %v2485 = vld [vmem:[%s2190 + $0x1] sm:$0xff]
      %v2486 = vld [vmem:[%s2190 + $0x9] sm:$0xff]
      %v2487 = vld [vmem:[%s2190 + $0x19] sm:$0xff]
      %v2488 = vld [vmem:[%s2190 + $0x21] sm:$0xff]
      %v2489 = vld [vmem:[%s2190 + $0x31] sm:$0xff]
      %v2490 = vld [vmem:[%s2190 + $0x39] sm:$0xff]
      %v2491 = vld [vmem:[%s2190 + $0x49] sm:$0xff]
      %v2492 = vld [vmem:[%s2190 + $0x51] sm:$0xff]
      %v2493 = vld [vmem:[%s2190 + $0x61] sm:$0xff]
      %v2494 = vld [vmem:[%s2190 + $0x69] sm:$0xff]
      %v2495 = vld [vmem:[%s2190 + $0x79] sm:$0xff]
      %v2496 = vld [vmem:[%s2190 + $0x81] sm:$0xff]
      %v2497 = vld [vmem:[%s2190 + $0x91] sm:$0xff]
      %v2498 = vld [vmem:[%s2190 + $0x99] sm:$0xff]
      %v2499 = vld [vmem:[%s2190 + $0xa9] sm:$0xff]
      %v2500 = vld [vmem:[%s2190 + $0xb1] sm:$0xff]
      %v2501 = vld [vmem:[%s2190 + $0xc1] sm:$0xff]
      %v2502 = vld [vmem:[%s2190 + $0xc9] sm:$0xff]
      %v2503 = vld [vmem:[%s2190 + $0xd9] sm:$0xff]
      %v2504 = vld [vmem:[%s2190 + $0xe1] sm:$0xff]
      %v2505 = vld [vmem:[%s2190 + $0xf1] sm:$0xff]
      %v2506 = vld [vmem:[%s2190 + $0xf9] sm:$0xff]
      %v2507 = vld [vmem:[%s2190 + $0x109] sm:$0xff]
      %v2508 = vld [vmem:[%s2190 + $0x111] sm:$0xff]
      %v2509 = vld [vmem:[%s2190 + $0x121] sm:$0xff]
      %v2510 = vld [vmem:[%s2190 + $0x129] sm:$0xff]
      %v2511 = vld [vmem:[%s2190 + $0x139] sm:$0xff]
      %v2512 = vld [vmem:[%s2190 + $0x141] sm:$0xff]
      %v2513 = vld [vmem:[%s2190 + $0x151] sm:$0xff]
      %v2514 = vld [vmem:[%s2190 + $0x159] sm:$0xff]
      %v2515 = vld [vmem:[%s2190 + $0x169] sm:$0xff]
      %v2516 = vld [vmem:[%s2190 + $0x171] sm:$0xff]
      %v2517 = vpack.c.bf16 %v2486, %v2485
      %v2518 = vpack.c.bf16 %v2488, %v2487
      %v2519 = vpack.c.bf16 %v2490, %v2489
      %v2520 = vpack.c.bf16 %v2492, %v2491
      %v2521 = vpack.c.bf16 %v2494, %v2493
      %v2522 = vpack.c.bf16 %v2496, %v2495
      %v2523 = vpack.c.bf16 %v2498, %v2497
      %v2524 = vpack.c.bf16 %v2500, %v2499
      %v2525 = vpack.c.bf16 %v2502, %v2501
      %v2526 = vpack.c.bf16 %v2504, %v2503
      %v2527 = vpack.c.bf16 %v2506, %v2505
      %v2528 = vpack.c.bf16 %v2508, %v2507
      %v2529 = vpack.c.bf16 %v2510, %v2509
      %v2530 = vpack.c.bf16 %v2512, %v2511
      %v2531 = vpack.c.bf16 %v2514, %v2513
      %v2532 = vpack.c.bf16 %v2516, %v2515
      %s2533 = scalar_lea.vmem %s1, 14
      %v2534 = vld [vmem:[%s2533] sm:$0x3]
      %v2536 = vsel %vm237, %v2517, 0
      %v2539 = vsel %vm237, %v2518, 0
      %v2542 = vsel %vm237, %v2519, 0
      %v2545 = vsel %vm237, %v2520, 0
      %v2548 = vsel %vm237, %v2521, 0
      %v2551 = vsel %vm237, %v2522, 0
      %v2554 = vsel %vm237, %v2523, 0
      %v2557 = vsel %vm237, %v2524, 0
      %v2560 = vsel %vm237, %v2525, 0
      %v2563 = vsel %vm237, %v2526, 0
      %v2566 = vsel %vm237, %v2527, 0
      %v2569 = vsel %vm237, %v2528, 0
      %v2572 = vsel %vm237, %v2529, 0
      %v2575 = vsel %vm237, %v2530, 0
      %v2578 = vsel %vm237, %v2531, 0
      %v2581 = vsel %vm237, %v2532, 0
      %v2584 = vsel %vm637, %v2534, 0
      %2586 = vmatprep.subr.bf16.mxu0 0
      %2587 = vmatpush1.bf16.msra.mxu0 %v2584
      %2588 = vmatprep.subr.bf16.mxu0 0
      %2589 = vmatpush1.bf16.msra.mxu0 0
      %2590 = vmatprep.subr.bf16.mxu0 0
      %2591 = vmatpush1.bf16.msra.mxu0 0
      %2592 = vmatprep.subr.bf16.mxu0 0
      %2593 = vmatpush1.bf16.msra.mxu0 0
      %2594 = vmatprep.subr.bf16.mxu0 0
      %2595 = vmatpush1.bf16.msra.mxu0 0
      %2596 = vmatprep.subr.bf16.mxu0 0
      %2597 = vmatpush1.bf16.msra.mxu0 0
      %2598 = vmatprep.subr.bf16.mxu0 0
      %2599 = vmatpush1.bf16.msra.mxu0 0
      %2600 = vmatprep.subr.bf16.mxu0 0
      %2601 = vmatpush1.bf16.msra.mxu0 0
      %2602 = vmatprep.subr.bf16.mxu0 0
      %2603 = vmatpush1.bf16.msra.mxu0 0
      %2604 = vmatprep.subr.bf16.mxu0 0
      %2605 = vmatpush1.bf16.msra.mxu0 0
      %2606 = vmatprep.subr.bf16.mxu0 0
      %2607 = vmatpush1.bf16.msra.mxu0 0
      %2608 = vmatprep.subr.bf16.mxu0 0
      %2609 = vmatpush1.bf16.msra.mxu0 0
      %2610 = vmatprep.subr.bf16.mxu0 0
      %2611 = vmatpush1.bf16.msra.mxu0 0
      %2612 = vmatprep.subr.bf16.mxu0 0
      %2613 = vmatpush1.bf16.msra.mxu0 0
      %2614 = vmatprep.subr.bf16.mxu0 0
      %2615 = vmatpush1.bf16.msra.mxu0 0
      %2616 = vmatprep.subr.bf16.mxu0 0
      %2617 = vmatpush1.bf16.msra.mxu0 0
      %2618 = vmatprep.mubr.bf16.mxu0 0
      %2619 = vmatmul.mubr.bf16.gmra.mrb[0].mxu0 %v2536
      %v2620 = vpop.f32.mrb[0].mxu0
      %v2621 = vadd.f32 0.0, %v2620
      %v2622 = vpop.f32.mrb[0].mxu0
      %v2623 = vpop.f32.mrb[0].mxu0
      %v2624 = vadd.f32 0.0, %v2623
      %v2625 = vpop.f32.mrb[0].mxu0
      %2626 = vmatprep.mubr.bf16.mxu0 0
      %2627 = vmatmul.mubr.bf16.gmra.mrb[0].mxu0 %v2539
      %v2628 = vpop.f32.mrb[0].mxu0
      %v2629 = vadd.f32 0.0, %v2628
      %v2630 = vpop.f32.mrb[0].mxu0
      %v2631 = vpop.f32.mrb[0].mxu0
      %v2632 = vadd.f32 0.0, %v2631
      %v2633 = vpop.f32.mrb[0].mxu0
      %2634 = vmatprep.mubr.bf16.mxu0 0
      %2635 = vmatmul.mubr.bf16.gmra.mrb[0].mxu0 %v2542
      %v2636 = vpop.f32.mrb[0].mxu0
      %v2637 = vadd.f32 0.0, %v2636
      %v2638 = vpop.f32.mrb[0].mxu0
      %v2639 = vpop.f32.mrb[0].mxu0
      %v2640 = vadd.f32 0.0, %v2639
      %v2641 = vpop.f32.mrb[0].mxu0
      %2642 = vmatprep.mubr.bf16.mxu0 0
      %2643 = vmatmul.mubr.bf16.gmra.mrb[0].mxu0 %v2545
      %v2644 = vpop.f32.mrb[0].mxu0
      %v2645 = vadd.f32 0.0, %v2644
      %v2646 = vpop.f32.mrb[0].mxu0
      %v2647 = vpop.f32.mrb[0].mxu0
      %v2648 = vadd.f32 0.0, %v2647
      %v2649 = vpop.f32.mrb[0].mxu0
      %2650 = vmatprep.mubr.bf16.mxu0 0
      %2651 = vmatmul.mubr.bf16.gmra.mrb[0].mxu0 %v2548
      %v2652 = vpop.f32.mrb[0].mxu0
      %v2653 = vadd.f32 0.0, %v2652
      %v2654 = vpop.f32.mrb[0].mxu0
      %v2655 = vpop.f32.mrb[0].mxu0
      %v2656 = vadd.f32 0.0, %v2655
      %v2657 = vpop.f32.mrb[0].mxu0
      %2658 = vmatprep.mubr.bf16.mxu0 0
      %2659 = vmatmul.mubr.bf16.gmra.mrb[0].mxu0 %v2551
      %v2660 = vpop.f32.mrb[0].mxu0
      %v2661 = vadd.f32 0.0, %v2660
      %v2662 = vpop.f32.mrb[0].mxu0
      %v2663 = vpop.f32.mrb[0].mxu0
      %v2664 = vadd.f32 0.0, %v2663
      %v2665 = vpop.f32.mrb[0].mxu0
      %2666 = vmatprep.mubr.bf16.mxu0 0
      %2667 = vmatmul.mubr.bf16.gmra.mrb[0].mxu0 %v2554
      %v2668 = vpop.f32.mrb[0].mxu0
      %v2669 = vadd.f32 0.0, %v2668
      %v2670 = vpop.f32.mrb[0].mxu0
      %v2671 = vpop.f32.mrb[0].mxu0
      %v2672 = vadd.f32 0.0, %v2671
      %v2673 = vpop.f32.mrb[0].mxu0
      %2674 = vmatprep.mubr.bf16.mxu0 0
      %2675 = vmatmul.mubr.bf16.gmra.mrb[0].mxu0 %v2557
      %v2676 = vpop.f32.mrb[0].mxu0
      %v2677 = vadd.f32 0.0, %v2676
      %v2678 = vpop.f32.mrb[0].mxu0
      %v2679 = vpop.f32.mrb[0].mxu0
      %v2680 = vadd.f32 0.0, %v2679
      %v2681 = vpop.f32.mrb[0].mxu0
      %2682 = vmatprep.mubr.bf16.mxu0 0
      %2683 = vmatmul.mubr.bf16.gmra.mrb[0].mxu0 %v2560
      %v2684 = vpop.f32.mrb[0].mxu0
      %v2685 = vadd.f32 0.0, %v2684
      %v2686 = vpop.f32.mrb[0].mxu0
      %v2687 = vpop.f32.mrb[0].mxu0
      %v2688 = vadd.f32 0.0, %v2687
      %v2689 = vpop.f32.mrb[0].mxu0
      %2690 = vmatprep.mubr.bf16.mxu0 0
      %2691 = vmatmul.mubr.bf16.gmra.mrb[0].mxu0 %v2563
      %v2692 = vpop.f32.mrb[0].mxu0
      %v2693 = vadd.f32 0.0, %v2692
      %v2694 = vpop.f32.mrb[0].mxu0
      %v2695 = vpop.f32.mrb[0].mxu0
      %v2696 = vadd.f32 0.0, %v2695
      %v2697 = vpop.f32.mrb[0].mxu0
      %2698 = vmatprep.mubr.bf16.mxu0 0
      %2699 = vmatmul.mubr.bf16.gmra.mrb[0].mxu0 %v2566
      %v2700 = vpop.f32.mrb[0].mxu0
      %v2701 = vadd.f32 0.0, %v2700
      %v2702 = vpop.f32.mrb[0].mxu0
      %v2703 = vpop.f32.mrb[0].mxu0
      %v2704 = vadd.f32 0.0, %v2703
      %v2705 = vpop.f32.mrb[0].mxu0
      %2706 = vmatprep.mubr.bf16.mxu0 0
      %2707 = vmatmul.mubr.bf16.gmra.mrb[0].mxu0 %v2569
      %v2708 = vpop.f32.mrb[0].mxu0
      %v2709 = vadd.f32 0.0, %v2708
      %v2710 = vpop.f32.mrb[0].mxu0
      %v2711 = vpop.f32.mrb[0].mxu0
      %v2712 = vadd.f32 0.0, %v2711
      %v2713 = vpop.f32.mrb[0].mxu0
      %2714 = vmatprep.mubr.bf16.mxu0 0
      %2715 = vmatmul.mubr.bf16.gmra.mrb[0].mxu0 %v2572
      %v2716 = vpop.f32.mrb[0].mxu0
      %v2717 = vadd.f32 0.0, %v2716
      %v2718 = vpop.f32.mrb[0].mxu0
      %v2719 = vpop.f32.mrb[0].mxu0
      %v2720 = vadd.f32 0.0, %v2719
      %v2721 = vpop.f32.mrb[0].mxu0
      %2722 = vmatprep.mubr.bf16.mxu0 0
      %2723 = vmatmul.mubr.bf16.gmra.mrb[0].mxu0 %v2575
      %v2724 = vpop.f32.mrb[0].mxu0
      %v2725 = vadd.f32 0.0, %v2724
      %v2726 = vpop.f32.mrb[0].mxu0
      %v2727 = vpop.f32.mrb[0].mxu0
      %v2728 = vadd.f32 0.0, %v2727
      %v2729 = vpop.f32.mrb[0].mxu0
      %2730 = vmatprep.mubr.bf16.mxu0 0
      %2731 = vmatmul.mubr.bf16.gmra.mrb[0].mxu0 %v2578
      %v2732 = vpop.f32.mrb[0].mxu0
      %v2733 = vadd.f32 0.0, %v2732
      %v2734 = vpop.f32.mrb[0].mxu0
      %v2735 = vpop.f32.mrb[0].mxu0
      %v2736 = vadd.f32 0.0, %v2735
      %v2737 = vpop.f32.mrb[0].mxu0
      %2738 = vmatprep.mubr.bf16.mxu0 0
      %2739 = vmatmul.mubr.bf16.gmra.mrb[0].mxu0 %v2581
      %v2740 = vpop.f32.mrb[0].mxu0
      %v2741 = vadd.f32 0.0, %v2740
      %v2742 = vpop.f32.mrb[0].mxu0
      %v2743 = vpop.f32.mrb[0].mxu0
      %v2744 = vadd.f32 0.0, %v2743
      %v2745 = vpop.f32.mrb[0].mxu0
      %2746 = vdwg.mxu0
      %v2747 = vadd.f32 %v2453, %v2621
      %v2748 = vadd.f32 %v2454, %v2624
      %v2749 = vadd.f32 %v2455, %v2629
      %v2750 = vadd.f32 %v2456, %v2632
      %v2751 = vadd.f32 %v2457, %v2637
      %v2752 = vadd.f32 %v2458, %v2640
      %v2753 = vadd.f32 %v2459, %v2645
      %v2754 = vadd.f32 %v2460, %v2648
      %v2755 = vadd.f32 %v2461, %v2653
      %v2756 = vadd.f32 %v2462, %v2656
      %v2757 = vadd.f32 %v2463, %v2661
      %v2758 = vadd.f32 %v2464, %v2664
      %v2759 = vadd.f32 %v2465, %v2669
      %v2760 = vadd.f32 %v2466, %v2672
      %v2761 = vadd.f32 %v2467, %v2677
      %v2762 = vadd.f32 %v2468, %v2680
      %v2763 = vadd.f32 %v2469, %v2685
      %v2764 = vadd.f32 %v2470, %v2688
      %v2765 = vadd.f32 %v2471, %v2693
      %v2766 = vadd.f32 %v2472, %v2696
      %v2767 = vadd.f32 %v2473, %v2701
      %v2768 = vadd.f32 %v2474, %v2704
      %v2769 = vadd.f32 %v2475, %v2709
      %v2770 = vadd.f32 %v2476, %v2712
      %v2771 = vadd.f32 %v2477, %v2717
      %v2772 = vadd.f32 %v2478, %v2720
      %v2773 = vadd.f32 %v2479, %v2725
      %v2774 = vadd.f32 %v2480, %v2728
      %v2775 = vadd.f32 %v2481, %v2733
      %v2776 = vadd.f32 %v2482, %v2736
      %v2777 = vadd.f32 %v2483, %v2741
      %v2778 = vadd.f32 %v2484, %v2744
      %v2779 = vld [vmem:[%s2190 + $0x2] sm:$0xff]
      %v2780 = vld [vmem:[%s2190 + $0xa] sm:$0xff]
      %v2781 = vld [vmem:[%s2190 + $0x1a] sm:$0xff]
      %v2782 = vld [vmem:[%s2190 + $0x22] sm:$0xff]
      %v2783 = vld [vmem:[%s2190 + $0x32] sm:$0xff]
      %v2784 = vld [vmem:[%s2190 + $0x3a] sm:$0xff]
      %v2785 = vld [vmem:[%s2190 + $0x4a] sm:$0xff]
      %v2786 = vld [vmem:[%s2190 + $0x52] sm:$0xff]
      %v2787 = vld [vmem:[%s2190 + $0x62] sm:$0xff]
      %v2788 = vld [vmem:[%s2190 + $0x6a] sm:$0xff]
      %v2789 = vld [vmem:[%s2190 + $0x7a] sm:$0xff]
      %v2790 = vld [vmem:[%s2190 + $0x82] sm:$0xff]
      %v2791 = vld [vmem:[%s2190 + $0x92] sm:$0xff]
      %v2792 = vld [vmem:[%s2190 + $0x9a] sm:$0xff]
      %v2793 = vld [vmem:[%s2190 + $0xaa] sm:$0xff]
      %v2794 = vld [vmem:[%s2190 + $0xb2] sm:$0xff]
      %v2795 = vld [vmem:[%s2190 + $0xc2] sm:$0xff]
      %v2796 = vld [vmem:[%s2190 + $0xca] sm:$0xff]
      %v2797 = vld [vmem:[%s2190 + $0xda] sm:$0xff]
      %v2798 = vld [vmem:[%s2190 + $0xe2] sm:$0xff]
      %v2799 = vld [vmem:[%s2190 + $0xf2] sm:$0xff]
      %v2800 = vld [vmem:[%s2190 + $0xfa] sm:$0xff]
      %v2801 = vld [vmem:[%s2190 + $0x10a] sm:$0xff]
      %v2802 = vld [vmem:[%s2190 + $0x112] sm:$0xff]
      %v2803 = vld [vmem:[%s2190 + $0x122] sm:$0xff]
      %v2804 = vld [vmem:[%s2190 + $0x12a] sm:$0xff]
      %v2805 = vld [vmem:[%s2190 + $0x13a] sm:$0xff]
      %v2806 = vld [vmem:[%s2190 + $0x142] sm:$0xff]
      %v2807 = vld [vmem:[%s2190 + $0x152] sm:$0xff]
      %v2808 = vld [vmem:[%s2190 + $0x15a] sm:$0xff]
      %v2809 = vld [vmem:[%s2190 + $0x16a] sm:$0xff]
      %v2810 = vld [vmem:[%s2190 + $0x172] sm:$0xff]
      %v2811 = vpack.c.bf16 %v2780, %v2779
      %v2812 = vpack.c.bf16 %v2782, %v2781
      %v2813 = vpack.c.bf16 %v2784, %v2783
      %v2814 = vpack.c.bf16 %v2786, %v2785
      %v2815 = vpack.c.bf16 %v2788, %v2787
      %v2816 = vpack.c.bf16 %v2790, %v2789
      %v2817 = vpack.c.bf16 %v2792, %v2791
      %v2818 = vpack.c.bf16 %v2794, %v2793
      %v2819 = vpack.c.bf16 %v2796, %v2795
      %v2820 = vpack.c.bf16 %v2798, %v2797
      %v2821 = vpack.c.bf16 %v2800, %v2799
      %v2822 = vpack.c.bf16 %v2802, %v2801
      %v2823 = vpack.c.bf16 %v2804, %v2803
      %v2824 = vpack.c.bf16 %v2806, %v2805
      %v2825 = vpack.c.bf16 %v2808, %v2807
      %v2826 = vpack.c.bf16 %v2810, %v2809
      %s2827 = scalar_lea.vmem %s1, 16
      %v2828 = vld [vmem:[%s2827] sm:$0x3]
      %v2830 = vsel %vm237, %v2811, 0
      %v2833 = vsel %vm237, %v2812, 0
      %v2836 = vsel %vm237, %v2813, 0
      %v2839 = vsel %vm237, %v2814, 0
      %v2842 = vsel %vm237, %v2815, 0
      %v2845 = vsel %vm237, %v2816, 0
      %v2848 = vsel %vm237, %v2817, 0
      %v2851 = vsel %vm237, %v2818, 0
      %v2854 = vsel %vm237, %v2819, 0
      %v2857 = vsel %vm237, %v2820, 0
      %v2860 = vsel %vm237, %v2821, 0
      %v2863 = vsel %vm237, %v2822, 0
      %v2866 = vsel %vm237, %v2823, 0
      %v2869 = vsel %vm237, %v2824, 0
      %v2872 = vsel %vm237, %v2825, 0
      %v2875 = vsel %vm237, %v2826, 0
      %v2878 = vsel %vm637, %v2828, 0
      %2880 = vmatprep.subr.bf16.mxu0 0
      %2881 = vmatpush1.bf16.msra.mxu0 %v2878
      %2882 = vmatprep.subr.bf16.mxu0 0
      %2883 = vmatpush1.bf16.msra.mxu0 0
      %2884 = vmatprep.subr.bf16.mxu0 0
      %2885 = vmatpush1.bf16.msra.mxu0 0
      %2886 = vmatprep.subr.bf16.mxu0 0
      %2887 = vmatpush1.bf16.msra.mxu0 0
      %2888 = vmatprep.subr.bf16.mxu0 0
      %2889 = vmatpush1.bf16.msra.mxu0 0
      %2890 = vmatprep.subr.bf16.mxu0 0
      %2891 = vmatpush1.bf16.msra.mxu0 0
      %2892 = vmatprep.subr.bf16.mxu0 0
      %2893 = vmatpush1.bf16.msra.mxu0 0
      %2894 = vmatprep.subr.bf16.mxu0 0
      %2895 = vmatpush1.bf16.msra.mxu0 0
      %2896 = vmatprep.subr.bf16.mxu0 0
      %2897 = vmatpush1.bf16.msra.mxu0 0
      %2898 = vmatprep.subr.bf16.mxu0 0
      %2899 = vmatpush1.bf16.msra.mxu0 0
      %2900 = vmatprep.subr.bf16.mxu0 0
      %2901 = vmatpush1.bf16.msra.mxu0 0
      %2902 = vmatprep.subr.bf16.mxu0 0
      %2903 = vmatpush1.bf16.msra.mxu0 0
      %2904 = vmatprep.subr.bf16.mxu0 0
      %2905 = vmatpush1.bf16.msra.mxu0 0
      %2906 = vmatprep.subr.bf16.mxu0 0
      %2907 = vmatpush1.bf16.msra.mxu0 0
      %2908 = vmatprep.subr.bf16.mxu0 0
      %2909 = vmatpush1.bf16.msra.mxu0 0
      %2910 = vmatprep.subr.bf16.mxu0 0
      %2911 = vmatpush1.bf16.msra.mxu0 0
      %2912 = vmatprep.mubr.bf16.mxu0 0
      %2913 = vmatmul.mubr.bf16.gmra.mrb[0].mxu0 %v2830
      %v2914 = vpop.f32.mrb[0].mxu0
      %v2915 = vadd.f32 0.0, %v2914
      %v2916 = vpop.f32.mrb[0].mxu0
      %v2917 = vpop.f32.mrb[0].mxu0
      %v2918 = vadd.f32 0.0, %v2917
      %v2919 = vpop.f32.mrb[0].mxu0
      %2920 = vmatprep.mubr.bf16.mxu0 0
      %2921 = vmatmul.mubr.bf16.gmra.mrb[0].mxu0 %v2833
      %v2922 = vpop.f32.mrb[0].mxu0
      %v2923 = vadd.f32 0.0, %v2922
      %v2924 = vpop.f32.mrb[0].mxu0
      %v2925 = vpop.f32.mrb[0].mxu0
      %v2926 = vadd.f32 0.0, %v2925
      %v2927 = vpop.f32.mrb[0].mxu0
      %2928 = vmatprep.mubr.bf16.mxu0 0
      %2929 = vmatmul.mubr.bf16.gmra.mrb[0].mxu0 %v2836
      %v2930 = vpop.f32.mrb[0].mxu0
      %v2931 = vadd.f32 0.0, %v2930
      %v2932 = vpop.f32.mrb[0].mxu0
      %v2933 = vpop.f32.mrb[0].mxu0
      %v2934 = vadd.f32 0.0, %v2933
      %v2935 = vpop.f32.mrb[0].mxu0
      %2936 = vmatprep.mubr.bf16.mxu0 0
      %2937 = vmatmul.mubr.bf16.gmra.mrb[0].mxu0 %v2839
      %v2938 = vpop.f32.mrb[0].mxu0
      %v2939 = vadd.f32 0.0, %v2938
      %v2940 = vpop.f32.mrb[0].mxu0
      %v2941 = vpop.f32.mrb[0].mxu0
      %v2942 = vadd.f32 0.0, %v2941
      %v2943 = vpop.f32.mrb[0].mxu0
      %2944 = vmatprep.mubr.bf16.mxu0 0
      %2945 = vmatmul.mubr.bf16.gmra.mrb[0].mxu0 %v2842
      %v2946 = vpop.f32.mrb[0].mxu0
      %v2947 = vadd.f32 0.0, %v2946
      %v2948 = vpop.f32.mrb[0].mxu0
      %v2949 = vpop.f32.mrb[0].mxu0
      %v2950 = vadd.f32 0.0, %v2949
      %v2951 = vpop.f32.mrb[0].mxu0
      %2952 = vmatprep.mubr.bf16.mxu0 0
      %2953 = vmatmul.mubr.bf16.gmra.mrb[0].mxu0 %v2845
      %v2954 = vpop.f32.mrb[0].mxu0
      %v2955 = vadd.f32 0.0, %v2954
      %v2956 = vpop.f32.mrb[0].mxu0
      %v2957 = vpop.f32.mrb[0].mxu0
      %v2958 = vadd.f32 0.0, %v2957
      %v2959 = vpop.f32.mrb[0].mxu0
      %2960 = vmatprep.mubr.bf16.mxu0 0
      %2961 = vmatmul.mubr.bf16.gmra.mrb[0].mxu0 %v2848
      %v2962 = vpop.f32.mrb[0].mxu0
      %v2963 = vadd.f32 0.0, %v2962
      %v2964 = vpop.f32.mrb[0].mxu0
      %v2965 = vpop.f32.mrb[0].mxu0
      %v2966 = vadd.f32 0.0, %v2965
      %v2967 = vpop.f32.mrb[0].mxu0
      %2968 = vmatprep.mubr.bf16.mxu0 0
      %2969 = vmatmul.mubr.bf16.gmra.mrb[0].mxu0 %v2851
      %v2970 = vpop.f32.mrb[0].mxu0
      %v2971 = vadd.f32 0.0, %v2970
      %v2972 = vpop.f32.mrb[0].mxu0
      %v2973 = vpop.f32.mrb[0].mxu0
      %v2974 = vadd.f32 0.0, %v2973
      %v2975 = vpop.f32.mrb[0].mxu0
      %2976 = vmatprep.mubr.bf16.mxu0 0
      %2977 = vmatmul.mubr.bf16.gmra.mrb[0].mxu0 %v2854
      %v2978 = vpop.f32.mrb[0].mxu0
      %v2979 = vadd.f32 0.0, %v2978
      %v2980 = vpop.f32.mrb[0].mxu0
      %v2981 = vpop.f32.mrb[0].mxu0
      %v2982 = vadd.f32 0.0, %v2981
      %v2983 = vpop.f32.mrb[0].mxu0
      %2984 = vmatprep.mubr.bf16.mxu0 0
      %2985 = vmatmul.mubr.bf16.gmra.mrb[0].mxu0 %v2857
      %v2986 = vpop.f32.mrb[0].mxu0
      %v2987 = vadd.f32 0.0, %v2986
      %v2988 = vpop.f32.mrb[0].mxu0
      %v2989 = vpop.f32.mrb[0].mxu0
      %v2990 = vadd.f32 0.0, %v2989
      %v2991 = vpop.f32.mrb[0].mxu0
      %2992 = vmatprep.mubr.bf16.mxu0 0
      %2993 = vmatmul.mubr.bf16.gmra.mrb[0].mxu0 %v2860
      %v2994 = vpop.f32.mrb[0].mxu0
      %v2995 = vadd.f32 0.0, %v2994
      %v2996 = vpop.f32.mrb[0].mxu0
      %v2997 = vpop.f32.mrb[0].mxu0
      %v2998 = vadd.f32 0.0, %v2997
      %v2999 = vpop.f32.mrb[0].mxu0
      %3000 = vmatprep.mubr.bf16.mxu0 0
      %3001 = vmatmul.mubr.bf16.gmra.mrb[0].mxu0 %v2863
      %v3002 = vpop.f32.mrb[0].mxu0
      %v3003 = vadd.f32 0.0, %v3002
      %v3004 = vpop.f32.mrb[0].mxu0
      %v3005 = vpop.f32.mrb[0].mxu0
      %v3006 = vadd.f32 0.0, %v3005
      %v3007 = vpop.f32.mrb[0].mxu0
      %3008 = vmatprep.mubr.bf16.mxu0 0
      %3009 = vmatmul.mubr.bf16.gmra.mrb[0].mxu0 %v2866
      %v3010 = vpop.f32.mrb[0].mxu0
      %v3011 = vadd.f32 0.0, %v3010
      %v3012 = vpop.f32.mrb[0].mxu0
      %v3013 = vpop.f32.mrb[0].mxu0
      %v3014 = vadd.f32 0.0, %v3013
      %v3015 = vpop.f32.mrb[0].mxu0
      %3016 = vmatprep.mubr.bf16.mxu0 0
      %3017 = vmatmul.mubr.bf16.gmra.mrb[0].mxu0 %v2869
      %v3018 = vpop.f32.mrb[0].mxu0
      %v3019 = vadd.f32 0.0, %v3018
      %v3020 = vpop.f32.mrb[0].mxu0
      %v3021 = vpop.f32.mrb[0].mxu0
      %v3022 = vadd.f32 0.0, %v3021
      %v3023 = vpop.f32.mrb[0].mxu0
      %3024 = vmatprep.mubr.bf16.mxu0 0
      %3025 = vmatmul.mubr.bf16.gmra.mrb[0].mxu0 %v2872
      %v3026 = vpop.f32.mrb[0].mxu0
      %v3027 = vadd.f32 0.0, %v3026
      %v3028 = vpop.f32.mrb[0].mxu0
      %v3029 = vpop.f32.mrb[0].mxu0
      %v3030 = vadd.f32 0.0, %v3029
      %v3031 = vpop.f32.mrb[0].mxu0
      %3032 = vmatprep.mubr.bf16.mxu0 0
      %3033 = vmatmul.mubr.bf16.gmra.mrb[0].mxu0 %v2875
      %v3034 = vpop.f32.mrb[0].mxu0
      %v3035 = vadd.f32 0.0, %v3034
      %v3036 = vpop.f32.mrb[0].mxu0
      %v3037 = vpop.f32.mrb[0].mxu0
      %v3038 = vadd.f32 0.0, %v3037
      %v3039 = vpop.f32.mrb[0].mxu0
      %3040 = vdwg.mxu0
      %v3041 = vadd.f32 %v2747, %v2915
      %v3042 = vadd.f32 %v2748, %v2918
      %v3043 = vadd.f32 %v2749, %v2923
      %v3044 = vadd.f32 %v2750, %v2926
      %v3045 = vadd.f32 %v2751, %v2931
      %v3046 = vadd.f32 %v2752, %v2934
      %v3047 = vadd.f32 %v2753, %v2939
      %v3048 = vadd.f32 %v2754, %v2942
      %v3049 = vadd.f32 %v2755, %v2947
      %v3050 = vadd.f32 %v2756, %v2950
      %v3051 = vadd.f32 %v2757, %v2955
      %v3052 = vadd.f32 %v2758, %v2958
      %v3053 = vadd.f32 %v2759, %v2963
      %v3054 = vadd.f32 %v2760, %v2966
      %v3055 = vadd.f32 %v2761, %v2971
      %v3056 = vadd.f32 %v2762, %v2974
      %v3057 = vadd.f32 %v2763, %v2979
      %v3058 = vadd.f32 %v2764, %v2982
      %v3059 = vadd.f32 %v2765, %v2987
      %v3060 = vadd.f32 %v2766, %v2990
      %v3061 = vadd.f32 %v2767, %v2995
      %v3062 = vadd.f32 %v2768, %v2998
      %v3063 = vadd.f32 %v2769, %v3003
      %v3064 = vadd.f32 %v2770, %v3006
      %v3065 = vadd.f32 %v2771, %v3011
      %v3066 = vadd.f32 %v2772, %v3014
      %v3067 = vadd.f32 %v2773, %v3019
      %v3068 = vadd.f32 %v2774, %v3022
      %v3069 = vadd.f32 %v2775, %v3027
      %v3070 = vadd.f32 %v2776, %v3030
      %v3071 = vadd.f32 %v2777, %v3035
      %v3072 = vadd.f32 %v2778, %v3038
      %v3073 = vpack.c.bf16 %v3042, %v3041
      %v3074 = vpack.c.bf16 %v3044, %v3043
      %v3075 = vpack.c.bf16 %v3046, %v3045
      %v3076 = vpack.c.bf16 %v3048, %v3047
      %v3077 = vpack.c.bf16 %v3050, %v3049
      %v3078 = vpack.c.bf16 %v3052, %v3051
      %v3079 = vpack.c.bf16 %v3054, %v3053
      %v3080 = vpack.c.bf16 %v3056, %v3055
      %v3081 = vpack.c.bf16 %v3058, %v3057
      %v3082 = vpack.c.bf16 %v3060, %v3059
      %v3083 = vpack.c.bf16 %v3062, %v3061
      %v3084 = vpack.c.bf16 %v3064, %v3063
      %v3085 = vpack.c.bf16 %v3066, %v3065
      %v3086 = vpack.c.bf16 %v3068, %v3067
      %v3087 = vpack.c.bf16 %v3070, %v3069
      %v3088 = vpack.c.bf16 %v3072, %v3071
      %v3105 = vunpack.c.l.b16 %v3073
      %v3106 = vunpack.c.h.b16 %v3073
      %v3107 = vunpack.c.l.b16 %v3074
      %v3108 = vunpack.c.h.b16 %v3074
      %v3109 = vunpack.c.l.b16 %v3075
      %v3110 = vunpack.c.h.b16 %v3075
      %v3111 = vunpack.c.l.b16 %v3076
      %v3112 = vunpack.c.h.b16 %v3076
      %v3113 = vunpack.c.l.b16 %v3077
      %v3114 = vunpack.c.h.b16 %v3077
      %v3115 = vunpack.c.l.b16 %v3078
      %v3116 = vunpack.c.h.b16 %v3078
      %v3117 = vunpack.c.l.b16 %v3079
      %v3118 = vunpack.c.h.b16 %v3079
      %v3119 = vunpack.c.l.b16 %v3080
      %v3120 = vunpack.c.h.b16 %v3080
      %v3121 = vunpack.c.l.b16 %v3081
      %v3122 = vunpack.c.h.b16 %v3081
      %v3123 = vunpack.c.l.b16 %v3082
      %v3124 = vunpack.c.h.b16 %v3082
      %v3125 = vunpack.c.l.b16 %v3083
      %v3126 = vunpack.c.h.b16 %v3083
      %v3127 = vunpack.c.l.b16 %v3084
      %v3128 = vunpack.c.h.b16 %v3084
      %v3129 = vunpack.c.l.b16 %v3085
      %v3130 = vunpack.c.h.b16 %v3085
      %v3131 = vunpack.c.l.b16 %v3086
      %v3132 = vunpack.c.h.b16 %v3086
      %v3133 = vunpack.c.l.b16 %v3087
      %v3134 = vunpack.c.h.b16 %v3087
      %v3135 = vunpack.c.l.b16 %v3088
      %v3136 = vunpack.c.h.b16 %v3088
      %v3137 = vpack.c.b16 %v3105, %v3105
      %v3138 = vpack.c.b16 %v3106, %v3106
      %v3139 = vpack.c.b16 %v3107, %v3107
      %v3140 = vpack.c.b16 %v3108, %v3108
      %v3141 = vpack.c.b16 %v3109, %v3109
      %v3142 = vpack.c.b16 %v3110, %v3110
      %v3143 = vpack.c.b16 %v3111, %v3111
      %v3144 = vpack.c.b16 %v3112, %v3112
      %v3145 = vpack.c.b16 %v3113, %v3113
      %v3146 = vpack.c.b16 %v3114, %v3114
      %v3147 = vpack.c.b16 %v3115, %v3115
      %v3148 = vpack.c.b16 %v3116, %v3116
      %v3149 = vpack.c.b16 %v3117, %v3117
      %v3150 = vpack.c.b16 %v3118, %v3118
      %v3151 = vpack.c.b16 %v3119, %v3119
      %v3152 = vpack.c.b16 %v3120, %v3120
      %v3153 = vpack.c.b16 %v3121, %v3121
      %v3154 = vpack.c.b16 %v3122, %v3122
      %v3155 = vpack.c.b16 %v3123, %v3123
      %v3156 = vpack.c.b16 %v3124, %v3124
      %v3157 = vpack.c.b16 %v3125, %v3125
      %v3158 = vpack.c.b16 %v3126, %v3126
      %v3159 = vpack.c.b16 %v3127, %v3127
      %v3160 = vpack.c.b16 %v3128, %v3128
      %v3161 = vpack.c.b16 %v3129, %v3129
      %v3162 = vpack.c.b16 %v3130, %v3130
      %v3163 = vpack.c.b16 %v3131, %v3131
      %v3164 = vpack.c.b16 %v3132, %v3132
      %v3165 = vpack.c.b16 %v3133, %v3133
      %v3166 = vpack.c.b16 %v3134, %v3134
      %v3167 = vpack.c.b16 %v3135, %v3135
      %v3168 = vpack.c.b16 %v3136, %v3136
      %vm3201 = vcmask 27648
      %3202 = vst.msk [vmem:[%s231] sm:$0xf] %vm3201, %v3137
      %3203 = vst.msk [vmem:[%s231 + $0x4] sm:$0xf] %vm3201, %v3138
      %3204 = vst.msk [vmem:[%s231 + $0x8] sm:$0xf] %vm3201, %v3139
      %3205 = vst.msk [vmem:[%s231 + $0xc] sm:$0xf] %vm3201, %v3140
      %3206 = vst.msk [vmem:[%s231 + $0x10] sm:$0xf] %vm3201, %v3141
      %3207 = vst.msk [vmem:[%s231 + $0x14] sm:$0xf] %vm3201, %v3142
      %3208 = vst.msk [vmem:[%s231 + $0x18] sm:$0xf] %vm3201, %v3143
      %3209 = vst.msk [vmem:[%s231 + $0x1c] sm:$0xf] %vm3201, %v3144
      %3210 = vst.msk [vmem:[%s231 + $0x20] sm:$0xf] %vm3201, %v3145
      %3211 = vst.msk [vmem:[%s231 + $0x24] sm:$0xf] %vm3201, %v3146
      %3212 = vst.msk [vmem:[%s231 + $0x28] sm:$0xf] %vm3201, %v3147
      %3213 = vst.msk [vmem:[%s231 + $0x2c] sm:$0xf] %vm3201, %v3148
      %3214 = vst.msk [vmem:[%s231 + $0x30] sm:$0xf] %vm3201, %v3149
      %3215 = vst.msk [vmem:[%s231 + $0x34] sm:$0xf] %vm3201, %v3150
      %3216 = vst.msk [vmem:[%s231 + $0x38] sm:$0xf] %vm3201, %v3151
      %3217 = vst.msk [vmem:[%s231 + $0x3c] sm:$0xf] %vm3201, %v3152
      %3218 = vst.msk [vmem:[%s231 + $0x40] sm:$0xf] %vm3201, %v3153
      %3219 = vst.msk [vmem:[%s231 + $0x44] sm:$0xf] %vm3201, %v3154
      %3220 = vst.msk [vmem:[%s231 + $0x48] sm:$0xf] %vm3201, %v3155
      %3221 = vst.msk [vmem:[%s231 + $0x4c] sm:$0xf] %vm3201, %v3156
      %3222 = vst.msk [vmem:[%s231 + $0x50] sm:$0xf] %vm3201, %v3157
      %3223 = vst.msk [vmem:[%s231 + $0x54] sm:$0xf] %vm3201, %v3158
      %3224 = vst.msk [vmem:[%s231 + $0x58] sm:$0xf] %vm3201, %v3159
      %3225 = vst.msk [vmem:[%s231 + $0x5c] sm:$0xf] %vm3201, %v3160
      %3226 = vst.msk [vmem:[%s231 + $0x60] sm:$0xf] %vm3201, %v3161
      %3227 = vst.msk [vmem:[%s231 + $0x64] sm:$0xf] %vm3201, %v3162
      %3228 = vst.msk [vmem:[%s231 + $0x68] sm:$0xf] %vm3201, %v3163
      %3229 = vst.msk [vmem:[%s231 + $0x6c] sm:$0xf] %vm3201, %v3164
      %3230 = vst.msk [vmem:[%s231 + $0x70] sm:$0xf] %vm3201, %v3165
      %3231 = vst.msk [vmem:[%s231 + $0x74] sm:$0xf] %vm3201, %v3166
      %3232 = vst.msk [vmem:[%s231 + $0x78] sm:$0xf] %vm3201, %v3167
      %3233 = vst.msk [vmem:[%s231 + $0x7c] sm:$0xf] %vm3201, %v3168
      %v3234 = vsel %vm237, %v3041, 0.0
      %v3235 = vsel %vm237, %v3042, 0.0
      %v3236 = vadd.f32 %v3234, %v3235
      %v3237 = vsel %vm237, %v3043, 0.0
      %v3238 = vadd.f32 %v3236, %v3237
      %v3239 = vsel %vm237, %v3044, 0.0
      %v3240 = vadd.f32 %v3238, %v3239
      %v3241 = vsel %vm237, %v3045, 0.0
      %v3242 = vadd.f32 %v3240, %v3241
      %v3243 = vsel %vm237, %v3046, 0.0
      %v3244 = vadd.f32 %v3242, %v3243
      %v3245 = vsel %vm237, %v3047, 0.0
      %v3246 = vadd.f32 %v3244, %v3245
      %v3247 = vsel %vm237, %v3048, 0.0
      %v3248 = vadd.f32 %v3246, %v3247
      %v3249 = vsel %vm237, %v3049, 0.0
      %v3250 = vadd.f32 %v3248, %v3249
      %v3251 = vsel %vm237, %v3050, 0.0
      %v3252 = vadd.f32 %v3250, %v3251
      %v3253 = vsel %vm237, %v3051, 0.0
      %v3254 = vadd.f32 %v3252, %v3253
      %v3255 = vsel %vm237, %v3052, 0.0
      %v3256 = vadd.f32 %v3254, %v3255
      %v3257 = vsel %vm237, %v3053, 0.0
      %v3258 = vadd.f32 %v3256, %v3257
      %v3259 = vsel %vm237, %v3054, 0.0
      %v3260 = vadd.f32 %v3258, %v3259
      %v3261 = vsel %vm237, %v3055, 0.0
      %v3262 = vadd.f32 %v3260, %v3261
      %v3263 = vsel %vm237, %v3056, 0.0
      %v3264 = vadd.f32 %v3262, %v3263
      %v3265 = vsel %vm237, %v3057, 0.0
      %v3266 = vadd.f32 %v3264, %v3265
      %v3267 = vsel %vm237, %v3058, 0.0
      %v3268 = vadd.f32 %v3266, %v3267
      %v3269 = vsel %vm237, %v3059, 0.0
      %v3270 = vadd.f32 %v3268, %v3269
      %v3271 = vsel %vm237, %v3060, 0.0
      %v3272 = vadd.f32 %v3270, %v3271
      %v3273 = vsel %vm237, %v3061, 0.0
      %v3274 = vadd.f32 %v3272, %v3273
      %v3275 = vsel %vm237, %v3062, 0.0
      %v3276 = vadd.f32 %v3274, %v3275
      %v3277 = vsel %vm237, %v3063, 0.0
      %v3278 = vadd.f32 %v3276, %v3277
      %v3279 = vsel %vm237, %v3064, 0.0
      %v3280 = vadd.f32 %v3278, %v3279
      %v3281 = vsel %vm237, %v3065, 0.0
      %v3282 = vadd.f32 %v3280, %v3281
      %v3283 = vsel %vm237, %v3066, 0.0
      %v3284 = vadd.f32 %v3282, %v3283
      %v3285 = vsel %vm237, %v3067, 0.0
      %v3286 = vadd.f32 %v3284, %v3285
      %v3287 = vsel %vm237, %v3068, 0.0
      %v3288 = vadd.f32 %v3286, %v3287
      %v3289 = vsel %vm237, %v3069, 0.0
      %v3290 = vadd.f32 %v3288, %v3289
      %v3291 = vsel %vm237, %v3070, 0.0
      %v3292 = vadd.f32 %v3290, %v3291
      %v3293 = vsel %vm237, %v3071, 0.0
      %v3294 = vadd.f32 %v3292, %v3293
      %v3295 = vsel %vm237, %v3072, 0.0
      %v3296 = vadd.f32 %v3294, %v3295
      %v3297 = vrot.slane %v3296, 4
      %v3298 = vadd.f32 %v3296, %v3297
      %v3299 = vrot.slane %v3298, 2
      %v3300 = vadd.f32 %v3298, %v3299
      %v3301 = vrot.slane %v3300, 1
      %v3302 = vadd.f32 %v3300, %v3301
      %v3303 = vmul.f32 %v3041, %v3041
      %v3304 = vmul.f32 %v3042, %v3042
      %v3305 = vmul.f32 %v3043, %v3043
      %v3306 = vmul.f32 %v3044, %v3044
      %v3307 = vmul.f32 %v3045, %v3045
      %v3308 = vmul.f32 %v3046, %v3046
      %v3309 = vmul.f32 %v3047, %v3047
      %v3310 = vmul.f32 %v3048, %v3048
      %v3311 = vmul.f32 %v3049, %v3049
      %v3312 = vmul.f32 %v3050, %v3050
      %v3313 = vmul.f32 %v3051, %v3051
      %v3314 = vmul.f32 %v3052, %v3052
      %v3315 = vmul.f32 %v3053, %v3053
      %v3316 = vmul.f32 %v3054, %v3054
      %v3317 = vmul.f32 %v3055, %v3055
      %v3318 = vmul.f32 %v3056, %v3056
      %v3319 = vmul.f32 %v3057, %v3057
      %v3320 = vmul.f32 %v3058, %v3058
      %v3321 = vmul.f32 %v3059, %v3059
      %v3322 = vmul.f32 %v3060, %v3060
      %v3323 = vmul.f32 %v3061, %v3061
      %v3324 = vmul.f32 %v3062, %v3062
      %v3325 = vmul.f32 %v3063, %v3063
      %v3326 = vmul.f32 %v3064, %v3064
      %v3327 = vmul.f32 %v3065, %v3065
      %v3328 = vmul.f32 %v3066, %v3066
      %v3329 = vmul.f32 %v3067, %v3067
      %v3330 = vmul.f32 %v3068, %v3068
      %v3331 = vmul.f32 %v3069, %v3069
      %v3332 = vmul.f32 %v3070, %v3070
      %v3333 = vmul.f32 %v3071, %v3071
      %v3334 = vmul.f32 %v3072, %v3072
      %v3335 = vsel %vm237, %v3303, 0.0
      %v3336 = vsel %vm237, %v3304, 0.0
      %v3337 = vadd.f32 %v3335, %v3336
      %v3338 = vsel %vm237, %v3305, 0.0
      %v3339 = vadd.f32 %v3337, %v3338
      %v3340 = vsel %vm237, %v3306, 0.0
      %v3341 = vadd.f32 %v3339, %v3340
      %v3342 = vsel %vm237, %v3307, 0.0
      %v3343 = vadd.f32 %v3341, %v3342
      %v3344 = vsel %vm237, %v3308, 0.0
      %v3345 = vadd.f32 %v3343, %v3344
      %v3346 = vsel %vm237, %v3309, 0.0
      %v3347 = vadd.f32 %v3345, %v3346
      %v3348 = vsel %vm237, %v3310, 0.0
      %v3349 = vadd.f32 %v3347, %v3348
      %v3350 = vsel %vm237, %v3311, 0.0
      %v3351 = vadd.f32 %v3349, %v3350
      %v3352 = vsel %vm237, %v3312, 0.0
      %v3353 = vadd.f32 %v3351, %v3352
      %v3354 = vsel %vm237, %v3313, 0.0
      %v3355 = vadd.f32 %v3353, %v3354
      %v3356 = vsel %vm237, %v3314, 0.0
      %v3357 = vadd.f32 %v3355, %v3356
      %v3358 = vsel %vm237, %v3315, 0.0
      %v3359 = vadd.f32 %v3357, %v3358
      %v3360 = vsel %vm237, %v3316, 0.0
      %v3361 = vadd.f32 %v3359, %v3360
      %v3362 = vsel %vm237, %v3317, 0.0
      %v3363 = vadd.f32 %v3361, %v3362
      %v3364 = vsel %vm237, %v3318, 0.0
      %v3365 = vadd.f32 %v3363, %v3364
      %v3366 = vsel %vm237, %v3319, 0.0
      %v3367 = vadd.f32 %v3365, %v3366
      %v3368 = vsel %vm237, %v3320, 0.0
      %v3369 = vadd.f32 %v3367, %v3368
      %v3370 = vsel %vm237, %v3321, 0.0
      %v3371 = vadd.f32 %v3369, %v3370
      %v3372 = vsel %vm237, %v3322, 0.0
      %v3373 = vadd.f32 %v3371, %v3372
      %v3374 = vsel %vm237, %v3323, 0.0
      %v3375 = vadd.f32 %v3373, %v3374
      %v3376 = vsel %vm237, %v3324, 0.0
      %v3377 = vadd.f32 %v3375, %v3376
      %v3378 = vsel %vm237, %v3325, 0.0
      %v3379 = vadd.f32 %v3377, %v3378
      %v3380 = vsel %vm237, %v3326, 0.0
      %v3381 = vadd.f32 %v3379, %v3380
      %v3382 = vsel %vm237, %v3327, 0.0
      %v3383 = vadd.f32 %v3381, %v3382
      %v3384 = vsel %vm237, %v3328, 0.0
      %v3385 = vadd.f32 %v3383, %v3384
      %v3386 = vsel %vm237, %v3329, 0.0
      %v3387 = vadd.f32 %v3385, %v3386
      %v3388 = vsel %vm237, %v3330, 0.0
      %v3389 = vadd.f32 %v3387, %v3388
      %v3390 = vsel %vm237, %v3331, 0.0
      %v3391 = vadd.f32 %v3389, %v3390
      %v3392 = vsel %vm237, %v3332, 0.0
      %v3393 = vadd.f32 %v3391, %v3392
      %v3394 = vsel %vm237, %v3333, 0.0
      %v3395 = vadd.f32 %v3393, %v3394
      %v3396 = vsel %vm237, %v3334, 0.0
      %v3397 = vadd.f32 %v3395, %v3396
      %v3398 = vrot.slane %v3397, 4
      %v3399 = vadd.f32 %v3397, %v3398
      %v3400 = vrot.slane %v3399, 2
      %v3401 = vadd.f32 %v3399, %v3400
      %v3402 = vrot.slane %v3401, 1
      %v3403 = vadd.f32 %v3401, %v3402
      %vm3404 = vcmask 1040384
      %v3405 = vsel %vm3404, %v3302, %v3403
      %3406 = vst.msk [vmem:[%s235] sm:$0x3] %vm240, %v3405
      %p3407 = scmp.lt.s32.totalorder %s17, 1
      %s3408 = scalar_select %p3407, %s17, 1
      %s3409 = smul.addr %s3408, 32
      %s3410 = smul.addr %s3409, 4
      %s3411 = scalar_lea.vmem %s4, %s3410
      %p3412 = scmp.lt.s32.totalorder %s17, 1
      %s3413 = scalar_select %p3412, %s17, 1
      %s3414 = smul.addr %s3413, 2
      %s3415 = scalar_lea.vmem %s5, %s3414
      // Predicated region
      $region37: #{bottleneck_pallas.5} parent=35 // pred_check
        %p3416 = pneg %p124
      $region38: #{bottleneck_pallas.5} parent=35 // pred_check_branch
        %3418 = sbr.rel (%p3416) target = $region40
      $region39: #{bottleneck_pallas.5} parent=35 // pred_region
        _
      $region40: #{bottleneck_pallas.5} parent=35 // pred_fallthru
        _
      // Predicated region
      $region41: #{bottleneck_pallas.5} parent=35 // pred_check
        %p3419 = pneg %p150
      $region42: #{bottleneck_pallas.5} parent=35 // pred_check_branch
        %3421 = sbr.rel (%p3419) target = $region44
      $region43: #{bottleneck_pallas.5} parent=35 // pred_region
        _
      $region44: #{bottleneck_pallas.5} parent=35 // pred_fallthru
        _
    $region36: #{bottleneck_pallas.5} parent=5 // pred_fallthru
      _
    %p3422 = scmp.le.s32.totalorder 2, %s12
    // Predicated region
    $region45: #{bottleneck_pallas.5} parent=5 // pred_check
      %p3423 = pneg %p3422
    $region46: #{bottleneck_pallas.5} parent=5 // pred_check_branch
      %3425 = sbr.rel (%p3423) target = $region48
    $region47: #{bottleneck_pallas.5} parent=5 // pred_region
      %s3426 = ssub.s32 %s12, 2
      // Predicated region
      $region49: #{bottleneck_pallas.5} parent=47 // pred_check
        %p3427 = pneg %p130
      $region50: #{bottleneck_pallas.5} parent=47 // pred_check_branch
        %3429 = sbr.rel (%p3427) target = $region52
      $region51: #{bottleneck_pallas.5} parent=47 // pred_region
        %p3430 = scmp.lt.s32.totalorder %s18, 1
        %s3431 = scalar_select %p3430, %s18, 1
        %s3432 = smul.addr %s3431, 32
        %s3433 = smul.addr %s3432, 4
        %s3434 = scalar_lea.vmem %s4, %s3433
      $region52: #{bottleneck_pallas.5} parent=47 // pred_fallthru
        _
      // Predicated region
      $region53: #{bottleneck_pallas.5} parent=47 // pred_check
        %p3435 = pneg %p156
      $region54: #{bottleneck_pallas.5} parent=47 // pred_check_branch
        %3437 = sbr.rel (%p3435) target = $region56
      $region55: #{bottleneck_pallas.5} parent=47 // pred_region
        %p3438 = scmp.lt.s32.totalorder %s18, 1
        %s3439 = scalar_select %p3438, %s18, 1
        %s3440 = smul.addr %s3439, 2
        %s3441 = scalar_lea.vmem %s5, %s3440
      $region56: #{bottleneck_pallas.5} parent=47 // pred_fallthru
        _
    $region48: #{bottleneck_pallas.5} parent=5 // pred_fallthru
      _
  $region6: #{bottleneck_pallas.5} parent=0 // loop_footer
    %s16 = sadd.s32 1, %s12
  $region7: #{bottleneck_pallas.5} parent=0 // loop_footer_branch
    %11 = sbr.rel target = $region3
  $region8: #{bottleneck_pallas.5} parent=0 // loop_exit
    _

</llo_original>
